<compile_context>
chip_gen: v5e
topology: v5e:2x2
jax: 0.10.0
libtpu: 0.0.40
codegen_flags: <defaults>
</compile_context>

<pallas_src>
import functools

import jax
import jax.numpy as jnp
from jax import lax
from jax.experimental import pallas as pl
from jax.experimental.pallas import tpu as pltpu


def padb_kernel(width,
                x_ref, cm_ref,
                w1d, b1d, w1r, b1r,
                w2d, b2d, w2r, b2r,
                w3d, b3d, w3r, b3r,
                w4, b4, w5, b5,
                wpa, bpa,
                out_ref,
                pad_ref):
    """One batch element per grid step.  x_ref: (1, C, H*W) in VMEM."""
    x = x_ref[0]                          # (C, HW)
    _, HW = x.shape
    pad_total = pad_ref.shape[1]
    padl = (pad_total - HW) // 2          # lane-aligned left halo (>= width + 1)

    mask_l = cm_ref[0:1, :]               # valid where col != 0      (dx = -1)
    mask_r = cm_ref[1:2, :]               # valid where col != W - 1  (dx = +1)

    # Zero the flat padded scratch once per grid step.  The interior
    # [padl, padl+HW) is always fully rewritten before it is read; only the
    # halo has to stay zero, so no per-conv zero fill is needed.
    pad_ref[...] = jnp.zeros_like(pad_ref)

    def lrelu(v):
        # LeakyReLU(0.2): max(v, 0.2*v) == where(v>=0, v, 0.2*v)
        return jnp.maximum(v, 0.2 * v)

    def channel_mix(v, w):
        # v: (Cin, HW), w: (Cout, Cin) -> (Cout, HW), unrolled VPU MACs
        # (outer-product broadcasts; no MXU for these tiny contractions).
        cin = v.shape[0]
        acc = w[:, 0:1] * v[0:1, :]
        for ci in range(1, cin):
            acc = acc + w[:, ci:ci + 1] * v[ci:ci + 1, :]
        return acc

    def conv1x1(v, w_r, b_r):
        return channel_mix(v, w_r[...]) + b_r[...]

    def conv3x3(v, w_r, b_r):
        # v: (Cin, HW); w_r: (Cout, 9*Cin) with columns ordered (ky, kx, ci);
        # b_r: (Cout, 1); padding = 1.
        w = w_r[...]
        cin = v.shape[0]
        # 128-lane-aligned, full-width interior store (unmasked vst).
        pad_ref[:, padl:padl + HW] = v
        acc = None
        for dy in (-1, 0, 1):
            for dx in (-1, 0, 1):
                k = dy * width + dx
                if k == 0:
                    tap = v                      # skip the read-back for the center tap
                else:
                    tap = pad_ref[:, padl + k:padl + k + HW]
                if dx == -1:
                    tap = tap * mask_l           # zero samples that wrapped from prev row
                elif dx == 1:
                    tap = tap * mask_r           # zero samples that wrapped from next row
                t = (dy + 1) * 3 + (dx + 1)
                contrib = channel_mix(tap, w[:, t * cin:(t + 1) * cin])
                acc = contrib if acc is None else acc + contrib
        return acc + b_r[...]

    # ---- PADB body ------------------------------------------------------
    d1 = lrelu(conv1x1(x, w1d, b1d))
    r1 = lrelu(conv3x3(x, w1r, b1r) + x)
    d2 = lrelu(conv1x1(r1, w2d, b2d))
    r2 = lrelu(conv3x3(r1, w2r, b2r) + r1)
    d3 = lrelu(conv1x1(r2, w3d, b3d))
    r3 = lrelu(conv3x3(r2, w3r, b3r) + r2)
    r4 = lrelu(conv3x3(r3, w4, b4))

    # c5 = 1x1 conv over concat([d1, d2, d3, r4], channel) == sum of 4 channel
    # mixes against column slices of w5 (no in-kernel concatenation needed).
    w5v = w5[...]                         # (Cout, 4*dc)
    dc = d1.shape[0]
    out5 = (channel_mix(d1, w5v[:, 0:dc])
            + channel_mix(d2, w5v[:, dc:2 * dc])
            + channel_mix(d3, w5v[:, 2 * dc:3 * dc])
            + channel_mix(r4, w5v[:, 3 * dc:4 * dc])
            + b5[...])

    # PA: out = out5 * sigmoid(conv1x1(out5)); exp + approx reciprocal -> EUP.
    y = channel_mix(out5, wpa[...]) + bpa[...]
    y = pl.reciprocal(1.0 + jnp.exp(-y), approx=True)
    out_ref[0] = out5 * y


@jax.jit
def padb_forward(x_nchw, params):
    """x_nchw: (N, C, H, W) f32; params in native PyTorch layouts (OIHW etc.)."""
    N, C, H, W = x_nchw.shape
    HW = H * W
    cout = params["w5"].shape[0]

    def w3x3(w):
        # OIHW (Cout, Cin, 3, 3) -> (Cout, 9*Cin), columns ordered (ky, kx, ci)
        co, ci = w.shape[0], w.shape[1]
        return jnp.transpose(w, (0, 2, 3, 1)).reshape(co, 9 * ci)

    def bias(b):
        return b.reshape(-1, 1)           # (Cout, 1) -> lane-broadcast in kernel

    x = x_nchw.reshape(N, C, HW)          # free reshape, stays channel-major

    # Column-boundary masks for the flattened-lane 3x3 taps (dx = -1 / +1).
    col = jnp.arange(HW, dtype=jnp.int32) % W
    col_mask = jnp.stack([(col != 0), (col != W - 1)]).astype(jnp.float32)  # (2, HW)

    weight_args = [
        params["w1d"], bias(params["b1d"]),
        w3x3(params["w1r"]), bias(params["b1r"]),
        params["w2d"], bias(params["b2d"]),
        w3x3(params["w2r"]), bias(params["b2r"]),
        params["w3d"], bias(params["b3d"]),
        w3x3(params["w3r"]), bias(params["b3r"]),
        w3x3(params["w4"]), bias(params["b4"]),
        params["w5"], bias(params["b5"]),
        params["wpa"], bias(params["bpa"]),
    ]

    # Lane-aligned halo on each side of the flattened spatial axis (>= W + 1).
    padl = ((W + 1 + 127) // 128) * 128
    pad_total = HW + 2 * padl

    in_specs = [pl.BlockSpec((1, C, HW), lambda n: (n, 0, 0)),
                pl.BlockSpec((2, HW), lambda n: (0, 0))]
    in_specs += [pl.BlockSpec(w.shape, lambda n, nd=w.ndim: (0,) * nd)
                 for w in weight_args]
    out_spec = pl.BlockSpec((1, cout, HW), lambda n: (n, 0, 0))

    out = pl.pallas_call(
        functools.partial(padb_kernel, W),
        out_shape=jax.ShapeDtypeStruct((N, cout, HW), jnp.float32),
        grid_spec=pltpu.PrefetchScalarGridSpec(
            num_scalar_prefetch=0,
            grid=(N,),
            in_specs=in_specs,
            out_specs=out_spec,
            scratch_shapes=[pltpu.VMEM((C, pad_total), jnp.float32)]),
        compiler_params=pltpu.CompilerParams(
            dimension_semantics=("parallel",)),   # batch axis -> both TCs on v7x
    )(x, col_mask, *weight_args)

    return out.reshape(N, cout, H, W)


# ------------------------- plain-JAX reference (NCHW) -----------------------
def _conv_nchw(x, w_oihw, b, pad):
    y = lax.conv_general_dilated(
        x, w_oihw, window_strides=(1, 1),
        padding=[(pad, pad), (pad, pad)],
        dimension_numbers=("NCHW", "OIHW", "NCHW"),
        precision=lax.Precision.HIGHEST)
    return y + b.reshape(1, -1, 1, 1)


def padb_ref_nchw(x, p):
    act = lambda v: jnp.where(v >= 0, v, 0.2 * v)
    c1 = lambda v, w, b: _conv_nchw(v, w[:, :, None, None], b, 0)
    c3 = lambda v, w, b: _conv_nchw(v, w, b, 1)

    d1 = act(c1(x, p["w1d"], p["b1d"]))
    r1 = act(c3(x, p["w1r"], p["b1r"]) + x)
    d2 = act(c1(r1, p["w2d"], p["b2d"]))
    r2 = act(c3(r1, p["w2r"], p["b2r"]) + r1)
    d3 = act(c1(r2, p["w3d"], p["b3d"]))
    r3 = act(c3(r2, p["w3r"], p["b3r"]) + r2)
    r4 = act(c3(r3, p["w4"], p["b4"]))
    cat = jnp.concatenate([d1, d2, d3, r4], axis=1)
    out5 = c1(cat, p["w5"], p["b5"])
    y = jax.nn.sigmoid(c1(out5, p["wpa"], p["bpa"]))
    return out5 * y


# --------------------------------- main -------------------------------------
if __name__ == "__main__":
    key = jax.random.PRNGKey(0)
    N, C, H, W = 2, 4, 16, 16           # in_channels = out_channels = 4
    Cout, dc = C, C                     # c_weight = 1 -> dc = in_channels

    keys = jax.random.split(key, 20)

    def w_init(k, shape, scale=0.1):
        return scale * jax.random.normal(k, shape, jnp.float32)

    # Native PyTorch layouts: 1x1 -> (Cout, Cin), 3x3 -> OIHW, bias -> (Cout,)
    params = {
        "w1d": w_init(keys[1], (dc, C)),        "b1d": w_init(keys[2], (dc,), 0.01),
        "w1r": w_init(keys[3], (C, C, 3, 3)),   "b1r": w_init(keys[4], (C,), 0.01),
        "w2d": w_init(keys[5], (dc, C)),        "b2d": w_init(keys[6], (dc,), 0.01),
        "w2r": w_init(keys[7], (C, C, 3, 3)),   "b2r": w_init(keys[8], (C,), 0.01),
        "w3d": w_init(keys[9], (dc, C)),        "b3d": w_init(keys[10], (dc,), 0.01),
        "w3r": w_init(keys[11], (C, C, 3, 3)),  "b3r": w_init(keys[12], (C,), 0.01),
        "w4":  w_init(keys[13], (dc, C, 3, 3)), "b4":  w_init(keys[14], (dc,), 0.01),
        "w5":  w_init(keys[15], (Cout, 4 * dc)),"b5":  w_init(keys[16], (Cout,), 0.01),
        "wpa": w_init(keys[17], (Cout, Cout)),  "bpa": w_init(keys[18], (Cout,), 0.01),
    }

    x_nchw = jax.random.normal(keys[0], (N, C, H, W), jnp.float32)

    out = padb_forward(x_nchw, params)
    out = jax.block_until_ready(out)
    assert out.shape == (N, Cout, H, W)

    ref = padb_ref_nchw(x_nchw, params)
    max_err = float(jnp.max(jnp.abs(out - ref)))
    # Tolerance accounts for the EUP approximate reciprocal in the PA sigmoid
    # (<= ~2^-12 relative); all other math is exact f32 on the VPU.
    assert max_err < 2e-3, f"mismatch vs reference, max_err={max_err}"

    print("KERNEL_OK")
</pallas_src>

<mosaic_0001>
module attributes {stable_mosaic.version = 11 : i64} {
  func.func @padb_kernel(%arg0: i32, %arg1: memref<1x4x256xf32, #tpu.memory_space<vmem>>, %arg2: memref<2x256xf32, #tpu.memory_space<vmem>>, %arg3: memref<4x4xf32, #tpu.memory_space<vmem>>, %arg4: memref<4x1xf32, #tpu.memory_space<vmem>>, %arg5: memref<4x36xf32, #tpu.memory_space<vmem>>, %arg6: memref<4x1xf32, #tpu.memory_space<vmem>>, %arg7: memref<4x4xf32, #tpu.memory_space<vmem>>, %arg8: memref<4x1xf32, #tpu.memory_space<vmem>>, %arg9: memref<4x36xf32, #tpu.memory_space<vmem>>, %arg10: memref<4x1xf32, #tpu.memory_space<vmem>>, %arg11: memref<4x4xf32, #tpu.memory_space<vmem>>, %arg12: memref<4x1xf32, #tpu.memory_space<vmem>>, %arg13: memref<4x36xf32, #tpu.memory_space<vmem>>, %arg14: memref<4x1xf32, #tpu.memory_space<vmem>>, %arg15: memref<4x36xf32, #tpu.memory_space<vmem>>, %arg16: memref<4x1xf32, #tpu.memory_space<vmem>>, %arg17: memref<4x16xf32, #tpu.memory_space<vmem>>, %arg18: memref<4x1xf32, #tpu.memory_space<vmem>>, %arg19: memref<4x4xf32, #tpu.memory_space<vmem>>, %arg20: memref<4x1xf32, #tpu.memory_space<vmem>>, %arg21: memref<1x4x256xf32, #tpu.memory_space<vmem>>, %arg22: memref<4x512xf32, #tpu.memory_space<vmem>>) attributes {dimension_semantics = [#tpu.dimension_semantics<parallel>], iteration_bounds = array<i64: 2>, scalar_prefetch = 0 : i64, scratch_operands = 1 : i64, tpu.core_type = #tpu.core_type<tc>, window_params = [{transform_indices = @transform_0, window_bounds = array<i64: 1, 4, 256>}, {pipeline_mode = #tpu.pipeline_mode<synchronous>, transform_indices = @transform_1, window_bounds = array<i64: 2, 256>}, {pipeline_mode = #tpu.pipeline_mode<synchronous>, transform_indices = @transform_2, window_bounds = array<i64: 4, 4>}, {pipeline_mode = #tpu.pipeline_mode<synchronous>, transform_indices = @transform_3, window_bounds = array<i64: 4, 1>}, {pipeline_mode = #tpu.pipeline_mode<synchronous>, transform_indices = @transform_4, window_bounds = array<i64: 4, 36>}, {pipeline_mode = #tpu.pipeline_mode<synchronous>, transform_indices = @transform_5, window_bounds = array<i64: 4, 1>}, {pipeline_mode = #tpu.pipeline_mode<synchronous>, transform_indices = @transform_6, window_bounds = array<i64: 4, 4>}, {pipeline_mode = #tpu.pipeline_mode<synchronous>, transform_indices = @transform_7, window_bounds = array<i64: 4, 1>}, {pipeline_mode = #tpu.pipeline_mode<synchronous>, transform_indices = @transform_8, window_bounds = array<i64: 4, 36>}, {pipeline_mode = #tpu.pipeline_mode<synchronous>, transform_indices = @transform_9, window_bounds = array<i64: 4, 1>}, {pipeline_mode = #tpu.pipeline_mode<synchronous>, transform_indices = @transform_10, window_bounds = array<i64: 4, 4>}, {pipeline_mode = #tpu.pipeline_mode<synchronous>, transform_indices = @transform_11, window_bounds = array<i64: 4, 1>}, {pipeline_mode = #tpu.pipeline_mode<synchronous>, transform_indices = @transform_12, window_bounds = array<i64: 4, 36>}, {pipeline_mode = #tpu.pipeline_mode<synchronous>, transform_indices = @transform_13, window_bounds = array<i64: 4, 1>}, {pipeline_mode = #tpu.pipeline_mode<synchronous>, transform_indices = @transform_14, window_bounds = array<i64: 4, 36>}, {pipeline_mode = #tpu.pipeline_mode<synchronous>, transform_indices = @transform_15, window_bounds = array<i64: 4, 1>}, {pipeline_mode = #tpu.pipeline_mode<synchronous>, transform_indices = @transform_16, window_bounds = array<i64: 4, 16>}, {pipeline_mode = #tpu.pipeline_mode<synchronous>, transform_indices = @transform_17, window_bounds = array<i64: 4, 1>}, {pipeline_mode = #tpu.pipeline_mode<synchronous>, transform_indices = @transform_18, window_bounds = array<i64: 4, 4>}, {pipeline_mode = #tpu.pipeline_mode<synchronous>, transform_indices = @transform_19, window_bounds = array<i64: 4, 1>}, {transform_indices = @transform_20, window_bounds = array<i64: 1, 4, 256>}]} {
    %c0 = arith.constant 0 : index
    %c0_0 = arith.constant 0 : index
    %c0_1 = arith.constant 0 : index
    %0 = vector.load %arg1[%c0, %c0_0, %c0_1] : memref<1x4x256xf32, #tpu.memory_space<vmem>>, vector<1x4x256xf32>
    %1 = vector.shape_cast %0 : vector<1x4x256xf32> to vector<4x256xf32>
    %c0_2 = arith.constant 0 : index
    %c0_3 = arith.constant 0 : index
    %2 = vector.load %arg2[%c0_2, %c0_3] : memref<2x256xf32, #tpu.memory_space<vmem>>, vector<1x256xf32>
    %c1 = arith.constant 1 : index
    %c0_4 = arith.constant 0 : index
    %3 = vector.load %arg2[%c1, %c0_4] : memref<2x256xf32, #tpu.memory_space<vmem>>, vector<1x256xf32>
    %cst = arith.constant 0.000000e+00 : f32
    %4 = vector.broadcast %cst : f32 to vector<4x512xf32>
    %c0_5 = arith.constant 0 : index
    %c0_6 = arith.constant 0 : index
    %5 = vector.load %arg22[%c0_5, %c0_6] : memref<4x512xf32, #tpu.memory_space<vmem>>, vector<4x512xf32>
    tpu.vector_store %arg22[%c0_5, %c0_6], %4 {strides = array<i32>} : memref<4x512xf32, #tpu.memory_space<vmem>>, vector<4x512xf32>,
    %c0_7 = arith.constant 0 : index
    %c0_8 = arith.constant 0 : index
    %6 = vector.load %arg3[%c0_7, %c0_8] : memref<4x4xf32, #tpu.memory_space<vmem>>, vector<4x4xf32>
    %7 = vector.extract_strided_slice %6 {offsets = [0, 0], sizes = [4, 1], strides = [1, 1]} : vector<4x4xf32> to vector<4x1xf32>
    %8 = vector.extract_strided_slice %1 {offsets = [0, 0], sizes = [1, 256], strides = [1, 1]} : vector<4x256xf32> to vector<1x256xf32>
    %9 = vector.broadcast %7 : vector<4x1xf32> to vector<4x256xf32>
    %10 = vector.broadcast %8 : vector<1x256xf32> to vector<4x256xf32>
    %11 = arith.mulf %9, %10 : vector<4x256xf32>
    %12 = vector.extract_strided_slice %6 {offsets = [0, 1], sizes = [4, 1], strides = [1, 1]} : vector<4x4xf32> to vector<4x1xf32>
    %13 = vector.extract_strided_slice %1 {offsets = [1, 0], sizes = [1, 256], strides = [1, 1]} : vector<4x256xf32> to vector<1x256xf32>
    %14 = vector.broadcast %12 : vector<4x1xf32> to vector<4x256xf32>
    %15 = vector.broadcast %13 : vector<1x256xf32> to vector<4x256xf32>
    %16 = arith.mulf %14, %15 : vector<4x256xf32>
    %17 = arith.addf %11, %16 : vector<4x256xf32>
    %18 = vector.extract_strided_slice %6 {offsets = [0, 2], sizes = [4, 1], strides = [1, 1]} : vector<4x4xf32> to vector<4x1xf32>
    %19 = vector.extract_strided_slice %1 {offsets = [2, 0], sizes = [1, 256], strides = [1, 1]} : vector<4x256xf32> to vector<1x256xf32>
    %20 = vector.broadcast %18 : vector<4x1xf32> to vector<4x256xf32>
    %21 = vector.broadcast %19 : vector<1x256xf32> to vector<4x256xf32>
    %22 = arith.mulf %20, %21 : vector<4x256xf32>
    %23 = arith.addf %17, %22 : vector<4x256xf32>
    %24 = vector.extract_strided_slice %6 {offsets = [0, 3], sizes = [4, 1], strides = [1, 1]} : vector<4x4xf32> to vector<4x1xf32>
    %25 = vector.extract_strided_slice %1 {offsets = [3, 0], sizes = [1, 256], strides = [1, 1]} : vector<4x256xf32> to vector<1x256xf32>
    %26 = vector.broadcast %24 : vector<4x1xf32> to vector<4x256xf32>
    %27 = vector.broadcast %25 : vector<1x256xf32> to vector<4x256xf32>
    %28 = arith.mulf %26, %27 : vector<4x256xf32>
    %29 = arith.addf %23, %28 : vector<4x256xf32>
    %c0_9 = arith.constant 0 : index
    %c0_10 = arith.constant 0 : index
    %30 = vector.load %arg4[%c0_9, %c0_10] : memref<4x1xf32, #tpu.memory_space<vmem>>, vector<4x1xf32>
    %31 = vector.broadcast %30 : vector<4x1xf32> to vector<4x256xf32>
    %32 = arith.addf %29, %31 : vector<4x256xf32>
    %cst_11 = arith.constant 2.000000e-01 : f32
    %33 = vector.broadcast %cst_11 : f32 to vector<4x256xf32>
    %34 = arith.mulf %33, %32 : vector<4x256xf32>
    %35 = arith.maximumf %32, %34 : vector<4x256xf32>
    %c0_12 = arith.constant 0 : index
    %c0_13 = arith.constant 0 : index
    %36 = vector.load %arg5[%c0_12, %c0_13] : memref<4x36xf32, #tpu.memory_space<vmem>>, vector<4x36xf32>
    %c0_14 = arith.constant 0 : index
    %c128 = arith.constant 128 : index
    %37 = vector.load %arg22[%c0_14, %c128] : memref<4x512xf32, #tpu.memory_space<vmem>>, vector<4x256xf32>
    tpu.vector_store %arg22[%c0_14, %c128], %1 {strides = array<i32>} : memref<4x512xf32, #tpu.memory_space<vmem>>, vector<4x256xf32>,
    %c0_15 = arith.constant 0 : index
    %c111 = arith.constant 111 : index
    %38 = vector.load %arg22[%c0_15, %c111] : memref<4x512xf32, #tpu.memory_space<vmem>>, vector<4x256xf32>
    %39 = vector.broadcast %2 : vector<1x256xf32> to vector<4x256xf32>
    %40 = arith.mulf %38, %39 : vector<4x256xf32>
    %41 = vector.extract_strided_slice %36 {offsets = [0, 0], sizes = [4, 4], strides = [1, 1]} : vector<4x36xf32> to vector<4x4xf32>
    %42 = vector.extract_strided_slice %41 {offsets = [0, 0], sizes = [4, 1], strides = [1, 1]} : vector<4x4xf32> to vector<4x1xf32>
    %43 = vector.extract_strided_slice %40 {offsets = [0, 0], sizes = [1, 256], strides = [1, 1]} : vector<4x256xf32> to vector<1x256xf32>
    %44 = vector.broadcast %42 : vector<4x1xf32> to vector<4x256xf32>
    %45 = vector.broadcast %43 : vector<1x256xf32> to vector<4x256xf32>
    %46 = arith.mulf %44, %45 : vector<4x256xf32>
    %47 = vector.extract_strided_slice %41 {offsets = [0, 1], sizes = [4, 1], strides = [1, 1]} : vector<4x4xf32> to vector<4x1xf32>
    %48 = vector.extract_strided_slice %40 {offsets = [1, 0], sizes = [1, 256], strides = [1, 1]} : vector<4x256xf32> to vector<1x256xf32>
    %49 = vector.broadcast %47 : vector<4x1xf32> to vector<4x256xf32>
    %50 = vector.broadcast %48 : vector<1x256xf32> to vector<4x256xf32>
    %51 = arith.mulf %49, %50 : vector<4x256xf32>
    %52 = arith.addf %46, %51 : vector<4x256xf32>
    %53 = vector.extract_strided_slice %41 {offsets = [0, 2], sizes = [4, 1], strides = [1, 1]} : vector<4x4xf32> to vector<4x1xf32>
    %54 = vector.extract_strided_slice %40 {offsets = [2, 0], sizes = [1, 256], strides = [1, 1]} : vector<4x256xf32> to vector<1x256xf32>
    %55 = vector.broadcast %53 : vector<4x1xf32> to vector<4x256xf32>
    %56 = vector.broadcast %54 : vector<1x256xf32> to vector<4x256xf32>
    %57 = arith.mulf %55, %56 : vector<4x256xf32>
    %58 = arith.addf %52, %57 : vector<4x256xf32>
    %59 = vector.extract_strided_slice %41 {offsets = [0, 3], sizes = [4, 1], strides = [1, 1]} : vector<4x4xf32> to vector<4x1xf32>
    %60 = vector.extract_strided_slice %40 {offsets = [3, 0], sizes = [1, 256], strides = [1, 1]} : vector<4x256xf32> to vector<1x256xf32>
    %61 = vector.broadcast %59 : vector<4x1xf32> to vector<4x256xf32>
    %62 = vector.broadcast %60 : vector<1x256xf32> to vector<4x256xf32>
    %63 = arith.mulf %61, %62 : vector<4x256xf32>
    %64 = arith.addf %58, %63 : vector<4x256xf32>
    %c0_16 = arith.constant 0 : index
    %c112 = arith.constant 112 : index
    %65 = vector.load %arg22[%c0_16, %c112] : memref<4x512xf32, #tpu.memory_space<vmem>>, vector<4x256xf32>
    %66 = vector.extract_strided_slice %36 {offsets = [0, 4], sizes = [4, 4], strides = [1, 1]} : vector<4x36xf32> to vector<4x4xf32>
    %67 = vector.extract_strided_slice %66 {offsets = [0, 0], sizes = [4, 1], strides = [1, 1]} : vector<4x4xf32> to vector<4x1xf32>
    %68 = vector.extract_strided_slice %65 {offsets = [0, 0], sizes = [1, 256], strides = [1, 1]} : vector<4x256xf32> to vector<1x256xf32>
    %69 = vector.broadcast %67 : vector<4x1xf32> to vector<4x256xf32>
    %70 = vector.broadcast %68 : vector<1x256xf32> to vector<4x256xf32>
    %71 = arith.mulf %69, %70 : vector<4x256xf32>
    %72 = vector.extract_strided_slice %66 {offsets = [0, 1], sizes = [4, 1], strides = [1, 1]} : vector<4x4xf32> to vector<4x1xf32>
    %73 = vector.extract_strided_slice %65 {offsets = [1, 0], sizes = [1, 256], strides = [1, 1]} : vector<4x256xf32> to vector<1x256xf32>
    %74 = vector.broadcast %72 : vector<4x1xf32> to vector<4x256xf32>
    %75 = vector.broadcast %73 : vector<1x256xf32> to vector<4x256xf32>
    %76 = arith.mulf %74, %75 : vector<4x256xf32>
    %77 = arith.addf %71, %76 : vector<4x256xf32>
    %78 = vector.extract_strided_slice %66 {offsets = [0, 2], sizes = [4, 1], strides = [1, 1]} : vector<4x4xf32> to vector<4x1xf32>
    %79 = vector.extract_strided_slice %65 {offsets = [2, 0], sizes = [1, 256], strides = [1, 1]} : vector<4x256xf32> to vector<1x256xf32>
    %80 = vector.broadcast %78 : vector<4x1xf32> to vector<4x256xf32>
    %81 = vector.broadcast %79 : vector<1x256xf32> to vector<4x256xf32>
    %82 = arith.mulf %80, %81 : vector<4x256xf32>
    %83 = arith.addf %77, %82 : vector<4x256xf32>
    %84 = vector.extract_strided_slice %66 {offsets = [0, 3], sizes = [4, 1], strides = [1, 1]} : vector<4x4xf32> to vector<4x1xf32>
    %85 = vector.extract_strided_slice %65 {offsets = [3, 0], sizes = [1, 256], strides = [1, 1]} : vector<4x256xf32> to vector<1x256xf32>
    %86 = vector.broadcast %84 : vector<4x1xf32> to vector<4x256xf32>
    %87 = vector.broadcast %85 : vector<1x256xf32> to vector<4x256xf32>
    %88 = arith.mulf %86, %87 : vector<4x256xf32>
    %89 = arith.addf %83, %88 : vector<4x256xf32>
    %90 = arith.addf %64, %89 : vector<4x256xf32>
    %c0_17 = arith.constant 0 : index
    %c113 = arith.constant 113 : index
    %91 = vector.load %arg22[%c0_17, %c113] : memref<4x512xf32, #tpu.memory_space<vmem>>, vector<4x256xf32>
    %92 = vector.broadcast %3 : vector<1x256xf32> to vector<4x256xf32>
    %93 = arith.mulf %91, %92 : vector<4x256xf32>
    %94 = vector.extract_strided_slice %36 {offsets = [0, 8], sizes = [4, 4], strides = [1, 1]} : vector<4x36xf32> to vector<4x4xf32>
    %95 = vector.extract_strided_slice %94 {offsets = [0, 0], sizes = [4, 1], strides = [1, 1]} : vector<4x4xf32> to vector<4x1xf32>
    %96 = vector.extract_strided_slice %93 {offsets = [0, 0], sizes = [1, 256], strides = [1, 1]} : vector<4x256xf32> to vector<1x256xf32>
    %97 = vector.broadcast %95 : vector<4x1xf32> to vector<4x256xf32>
    %98 = vector.broadcast %96 : vector<1x256xf32> to vector<4x256xf32>
    %99 = arith.mulf %97, %98 : vector<4x256xf32>
    %100 = vector.extract_strided_slice %94 {offsets = [0, 1], sizes = [4, 1], strides = [1, 1]} : vector<4x4xf32> to vector<4x1xf32>
    %101 = vector.extract_strided_slice %93 {offsets = [1, 0], sizes = [1, 256], strides = [1, 1]} : vector<4x256xf32> to vector<1x256xf32>
    %102 = vector.broadcast %100 : vector<4x1xf32> to vector<4x256xf32>
    %103 = vector.broadcast %101 : vector<1x256xf32> to vector<4x256xf32>
    %104 = arith.mulf %102, %103 : vector<4x256xf32>
    %105 = arith.addf %99, %104 : vector<4x256xf32>
    %106 = vector.extract_strided_slice %94 {offsets = [0, 2], sizes = [4, 1], strides = [1, 1]} : vector<4x4xf32> to vector<4x1xf32>
    %107 = vector.extract_strided_slice %93 {offsets = [2, 0], sizes = [1, 256], strides = [1, 1]} : vector<4x256xf32> to vector<1x256xf32>
    %108 = vector.broadcast %106 : vector<4x1xf32> to vector<4x256xf32>
    %109 = vector.broadcast %107 : vector<1x256xf32> to vector<4x256xf32>
    %110 = arith.mulf %108, %109 : vector<4x256xf32>
    %111 = arith.addf %105, %110 : vector<4x256xf32>
    %112 = vector.extract_strided_slice %94 {offsets = [0, 3], sizes = [4, 1], strides = [1, 1]} : vector<4x4xf32> to vector<4x1xf32>
    %113 = vector.extract_strided_slice %93 {offsets = [3, 0], sizes = [1, 256], strides = [1, 1]} : vector<4x256xf32> to vector<1x256xf32>
    %114 = vector.broadcast %112 : vector<4x1xf32> to vector<4x256xf32>
    %115 = vector.broadcast %113 : vector<1x256xf32> to vector<4x256xf32>
    %116 = arith.mulf %114, %115 : vector<4x256xf32>
    %117 = arith.addf %111, %116 : vector<4x256xf32>
    %118 = arith.addf %90, %117 : vector<4x256xf32>
    %c0_18 = arith.constant 0 : index
    %c127 = arith.constant 127 : index
    %119 = vector.load %arg22[%c0_18, %c127] : memref<4x512xf32, #tpu.memory_space<vmem>>, vector<4x256xf32>
    %120 = vector.broadcast %2 : vector<1x256xf32> to vector<4x256xf32>
    %121 = arith.mulf %119, %120 : vector<4x256xf32>
    %122 = vector.extract_strided_slice %36 {offsets = [0, 12], sizes = [4, 4], strides = [1, 1]} : vector<4x36xf32> to vector<4x4xf32>
    %123 = vector.extract_strided_slice %122 {offsets = [0, 0], sizes = [4, 1], strides = [1, 1]} : vector<4x4xf32> to vector<4x1xf32>
    %124 = vector.extract_strided_slice %121 {offsets = [0, 0], sizes = [1, 256], strides = [1, 1]} : vector<4x256xf32> to vector<1x256xf32>
    %125 = vector.broadcast %123 : vector<4x1xf32> to vector<4x256xf32>
    %126 = vector.broadcast %124 : vector<1x256xf32> to vector<4x256xf32>
    %127 = arith.mulf %125, %126 : vector<4x256xf32>
    %128 = vector.extract_strided_slice %122 {offsets = [0, 1], sizes = [4, 1], strides = [1, 1]} : vector<4x4xf32> to vector<4x1xf32>
    %129 = vector.extract_strided_slice %121 {offsets = [1, 0], sizes = [1, 256], strides = [1, 1]} : vector<4x256xf32> to vector<1x256xf32>
    %130 = vector.broadcast %128 : vector<4x1xf32> to vector<4x256xf32>
    %131 = vector.broadcast %129 : vector<1x256xf32> to vector<4x256xf32>
    %132 = arith.mulf %130, %131 : vector<4x256xf32>
    %133 = arith.addf %127, %132 : vector<4x256xf32>
    %134 = vector.extract_strided_slice %122 {offsets = [0, 2], sizes = [4, 1], strides = [1, 1]} : vector<4x4xf32> to vector<4x1xf32>
    %135 = vector.extract_strided_slice %121 {offsets = [2, 0], sizes = [1, 256], strides = [1, 1]} : vector<4x256xf32> to vector<1x256xf32>
    %136 = vector.broadcast %134 : vector<4x1xf32> to vector<4x256xf32>
    %137 = vector.broadcast %135 : vector<1x256xf32> to vector<4x256xf32>
    %138 = arith.mulf %136, %137 : vector<4x256xf32>
    %139 = arith.addf %133, %138 : vector<4x256xf32>
    %140 = vector.extract_strided_slice %122 {offsets = [0, 3], sizes = [4, 1], strides = [1, 1]} : vector<4x4xf32> to vector<4x1xf32>
    %141 = vector.extract_strided_slice %121 {offsets = [3, 0], sizes = [1, 256], strides = [1, 1]} : vector<4x256xf32> to vector<1x256xf32>
    %142 = vector.broadcast %140 : vector<4x1xf32> to vector<4x256xf32>
    %143 = vector.broadcast %141 : vector<1x256xf32> to vector<4x256xf32>
    %144 = arith.mulf %142, %143 : vector<4x256xf32>
    %145 = arith.addf %139, %144 : vector<4x256xf32>
    %146 = arith.addf %118, %145 : vector<4x256xf32>
    %147 = vector.extract_strided_slice %36 {offsets = [0, 16], sizes = [4, 4], strides = [1, 1]} : vector<4x36xf32> to vector<4x4xf32>
    %148 = vector.extract_strided_slice %147 {offsets = [0, 0], sizes = [4, 1], strides = [1, 1]} : vector<4x4xf32> to vector<4x1xf32>
    %149 = vector.extract_strided_slice %1 {offsets = [0, 0], sizes = [1, 256], strides = [1, 1]} : vector<4x256xf32> to vector<1x256xf32>
    %150 = vector.broadcast %148 : vector<4x1xf32> to vector<4x256xf32>
    %151 = vector.broadcast %149 : vector<1x256xf32> to vector<4x256xf32>
    %152 = arith.mulf %150, %151 : vector<4x256xf32>
    %153 = vector.extract_strided_slice %147 {offsets = [0, 1], sizes = [4, 1], strides = [1, 1]} : vector<4x4xf32> to vector<4x1xf32>
    %154 = vector.extract_strided_slice %1 {offsets = [1, 0], sizes = [1, 256], strides = [1, 1]} : vector<4x256xf32> to vector<1x256xf32>
    %155 = vector.broadcast %153 : vector<4x1xf32> to vector<4x256xf32>
    %156 = vector.broadcast %154 : vector<1x256xf32> to vector<4x256xf32>
    %157 = arith.mulf %155, %156 : vector<4x256xf32>
    %158 = arith.addf %152, %157 : vector<4x256xf32>
    %159 = vector.extract_strided_slice %147 {offsets = [0, 2], sizes = [4, 1], strides = [1, 1]} : vector<4x4xf32> to vector<4x1xf32>
    %160 = vector.extract_strided_slice %1 {offsets = [2, 0], sizes = [1, 256], strides = [1, 1]} : vector<4x256xf32> to vector<1x256xf32>
    %161 = vector.broadcast %159 : vector<4x1xf32> to vector<4x256xf32>
    %162 = vector.broadcast %160 : vector<1x256xf32> to vector<4x256xf32>
    %163 = arith.mulf %161, %162 : vector<4x256xf32>
    %164 = arith.addf %158, %163 : vector<4x256xf32>
    %165 = vector.extract_strided_slice %147 {offsets = [0, 3], sizes = [4, 1], strides = [1, 1]} : vector<4x4xf32> to vector<4x1xf32>
    %166 = vector.extract_strided_slice %1 {offsets = [3, 0], sizes = [1, 256], strides = [1, 1]} : vector<4x256xf32> to vector<1x256xf32>
    %167 = vector.broadcast %165 : vector<4x1xf32> to vector<4x256xf32>
    %168 = vector.broadcast %166 : vector<1x256xf32> to vector<4x256xf32>
    %169 = arith.mulf %167, %168 : vector<4x256xf32>
    %170 = arith.addf %164, %169 : vector<4x256xf32>
    %171 = arith.addf %146, %170 : vector<4x256xf32>
    %c0_19 = arith.constant 0 : index
    %c129 = arith.constant 129 : index
    %172 = vector.load %arg22[%c0_19, %c129] : memref<4x512xf32, #tpu.memory_space<vmem>>, vector<4x256xf32>
    %173 = vector.broadcast %3 : vector<1x256xf32> to vector<4x256xf32>
    %174 = arith.mulf %172, %173 : vector<4x256xf32>
    %175 = vector.extract_strided_slice %36 {offsets = [0, 20], sizes = [4, 4], strides = [1, 1]} : vector<4x36xf32> to vector<4x4xf32>
    %176 = vector.extract_strided_slice %175 {offsets = [0, 0], sizes = [4, 1], strides = [1, 1]} : vector<4x4xf32> to vector<4x1xf32>
    %177 = vector.extract_strided_slice %174 {offsets = [0, 0], sizes = [1, 256], strides = [1, 1]} : vector<4x256xf32> to vector<1x256xf32>
    %178 = vector.broadcast %176 : vector<4x1xf32> to vector<4x256xf32>
    %179 = vector.broadcast %177 : vector<1x256xf32> to vector<4x256xf32>
    %180 = arith.mulf %178, %179 : vector<4x256xf32>
    %181 = vector.extract_strided_slice %175 {offsets = [0, 1], sizes = [4, 1], strides = [1, 1]} : vector<4x4xf32> to vector<4x1xf32>
    %182 = vector.extract_strided_slice %174 {offsets = [1, 0], sizes = [1, 256], strides = [1, 1]} : vector<4x256xf32> to vector<1x256xf32>
    %183 = vector.broadcast %181 : vector<4x1xf32> to vector<4x256xf32>
    %184 = vector.broadcast %182 : vector<1x256xf32> to vector<4x256xf32>
    %185 = arith.mulf %183, %184 : vector<4x256xf32>
    %186 = arith.addf %180, %185 : vector<4x256xf32>
    %187 = vector.extract_strided_slice %175 {offsets = [0, 2], sizes = [4, 1], strides = [1, 1]} : vector<4x4xf32> to vector<4x1xf32>
    %188 = vector.extract_strided_slice %174 {offsets = [2, 0], sizes = [1, 256], strides = [1, 1]} : vector<4x256xf32> to vector<1x256xf32>
    %189 = vector.broadcast %187 : vector<4x1xf32> to vector<4x256xf32>
    %190 = vector.broadcast %188 : vector<1x256xf32> to vector<4x256xf32>
    %191 = arith.mulf %189, %190 : vector<4x256xf32>
    %192 = arith.addf %186, %191 : vector<4x256xf32>
    %193 = vector.extract_strided_slice %175 {offsets = [0, 3], sizes = [4, 1], strides = [1, 1]} : vector<4x4xf32> to vector<4x1xf32>
    %194 = vector.extract_strided_slice %174 {offsets = [3, 0], sizes = [1, 256], strides = [1, 1]} : vector<4x256xf32> to vector<1x256xf32>
    %195 = vector.broadcast %193 : vector<4x1xf32> to vector<4x256xf32>
    %196 = vector.broadcast %194 : vector<1x256xf32> to vector<4x256xf32>
    %197 = arith.mulf %195, %196 : vector<4x256xf32>
    %198 = arith.addf %192, %197 : vector<4x256xf32>
    %199 = arith.addf %171, %198 : vector<4x256xf32>
    %c0_20 = arith.constant 0 : index
    %c143 = arith.constant 143 : index
    %200 = vector.load %arg22[%c0_20, %c143] : memref<4x512xf32, #tpu.memory_space<vmem>>, vector<4x256xf32>
    %201 = vector.broadcast %2 : vector<1x256xf32> to vector<4x256xf32>
    %202 = arith.mulf %200, %201 : vector<4x256xf32>
    %203 = vector.extract_strided_slice %36 {offsets = [0, 24], sizes = [4, 4], strides = [1, 1]} : vector<4x36xf32> to vector<4x4xf32>
    %204 = vector.extract_strided_slice %203 {offsets = [0, 0], sizes = [4, 1], strides = [1, 1]} : vector<4x4xf32> to vector<4x1xf32>
    %205 = vector.extract_strided_slice %202 {offsets = [0, 0], sizes = [1, 256], strides = [1, 1]} : vector<4x256xf32> to vector<1x256xf32>
    %206 = vector.broadcast %204 : vector<4x1xf32> to vector<4x256xf32>
    %207 = vector.broadcast %205 : vector<1x256xf32> to vector<4x256xf32>
    %208 = arith.mulf %206, %207 : vector<4x256xf32>
    %209 = vector.extract_strided_slice %203 {offsets = [0, 1], sizes = [4, 1], strides = [1, 1]} : vector<4x4xf32> to vector<4x1xf32>
    %210 = vector.extract_strided_slice %202 {offsets = [1, 0], sizes = [1, 256], strides = [1, 1]} : vector<4x256xf32> to vector<1x256xf32>
    %211 = vector.broadcast %209 : vector<4x1xf32> to vector<4x256xf32>
    %212 = vector.broadcast %210 : vector<1x256xf32> to vector<4x256xf32>
    %213 = arith.mulf %211, %212 : vector<4x256xf32>
    %214 = arith.addf %208, %213 : vector<4x256xf32>
    %215 = vector.extract_strided_slice %203 {offsets = [0, 2], sizes = [4, 1], strides = [1, 1]} : vector<4x4xf32> to vector<4x1xf32>
    %216 = vector.extract_strided_slice %202 {offsets = [2, 0], sizes = [1, 256], strides = [1, 1]} : vector<4x256xf32> to vector<1x256xf32>
    %217 = vector.broadcast %215 : vector<4x1xf32> to vector<4x256xf32>
    %218 = vector.broadcast %216 : vector<1x256xf32> to vector<4x256xf32>
    %219 = arith.mulf %217, %218 : vector<4x256xf32>
    %220 = arith.addf %214, %219 : vector<4x256xf32>
    %221 = vector.extract_strided_slice %203 {offsets = [0, 3], sizes = [4, 1], strides = [1, 1]} : vector<4x4xf32> to vector<4x1xf32>
    %222 = vector.extract_strided_slice %202 {offsets = [3, 0], sizes = [1, 256], strides = [1, 1]} : vector<4x256xf32> to vector<1x256xf32>
    %223 = vector.broadcast %221 : vector<4x1xf32> to vector<4x256xf32>
    %224 = vector.broadcast %222 : vector<1x256xf32> to vector<4x256xf32>
    %225 = arith.mulf %223, %224 : vector<4x256xf32>
    %226 = arith.addf %220, %225 : vector<4x256xf32>
    %227 = arith.addf %199, %226 : vector<4x256xf32>
    %c0_21 = arith.constant 0 : index
    %c144 = arith.constant 144 : index
    %228 = vector.load %arg22[%c0_21, %c144] : memref<4x512xf32, #tpu.memory_space<vmem>>, vector<4x256xf32>
    %229 = vector.extract_strided_slice %36 {offsets = [0, 28], sizes = [4, 4], strides = [1, 1]} : vector<4x36xf32> to vector<4x4xf32>
    %230 = vector.extract_strided_slice %229 {offsets = [0, 0], sizes = [4, 1], strides = [1, 1]} : vector<4x4xf32> to vector<4x1xf32>
    %231 = vector.extract_strided_slice %228 {offsets = [0, 0], sizes = [1, 256], strides = [1, 1]} : vector<4x256xf32> to vector<1x256xf32>
    %232 = vector.broadcast %230 : vector<4x1xf32> to vector<4x256xf32>
    %233 = vector.broadcast %231 : vector<1x256xf32> to vector<4x256xf32>
    %234 = arith.mulf %232, %233 : vector<4x256xf32>
    %235 = vector.extract_strided_slice %229 {offsets = [0, 1], sizes = [4, 1], strides = [1, 1]} : vector<4x4xf32> to vector<4x1xf32>
    %236 = vector.extract_strided_slice %228 {offsets = [1, 0], sizes = [1, 256], strides = [1, 1]} : vector<4x256xf32> to vector<1x256xf32>
    %237 = vector.broadcast %235 : vector<4x1xf32> to vector<4x256xf32>
    %238 = vector.broadcast %236 : vector<1x256xf32> to vector<4x256xf32>
    %239 = arith.mulf %237, %238 : vector<4x256xf32>
    %240 = arith.addf %234, %239 : vector<4x256xf32>
    %241 = vector.extract_strided_slice %229 {offsets = [0, 2], sizes = [4, 1], strides = [1, 1]} : vector<4x4xf32> to vector<4x1xf32>
    %242 = vector.extract_strided_slice %228 {offsets = [2, 0], sizes = [1, 256], strides = [1, 1]} : vector<4x256xf32> to vector<1x256xf32>
    %243 = vector.broadcast %241 : vector<4x1xf32> to vector<4x256xf32>
    %244 = vector.broadcast %242 : vector<1x256xf32> to vector<4x256xf32>
    %245 = arith.mulf %243, %244 : vector<4x256xf32>
    %246 = arith.addf %240, %245 : vector<4x256xf32>
    %247 = vector.extract_strided_slice %229 {offsets = [0, 3], sizes = [4, 1], strides = [1, 1]} : vector<4x4xf32> to vector<4x1xf32>
    %248 = vector.extract_strided_slice %228 {offsets = [3, 0], sizes = [1, 256], strides = [1, 1]} : vector<4x256xf32> to vector<1x256xf32>
    %249 = vector.broadcast %247 : vector<4x1xf32> to vector<4x256xf32>
    %250 = vector.broadcast %248 : vector<1x256xf32> to vector<4x256xf32>
    %251 = arith.mulf %249, %250 : vector<4x256xf32>
    %252 = arith.addf %246, %251 : vector<4x256xf32>
    %253 = arith.addf %227, %252 : vector<4x256xf32>
    %c0_22 = arith.constant 0 : index
    %c145 = arith.constant 145 : index
    %254 = vector.load %arg22[%c0_22, %c145] : memref<4x512xf32, #tpu.memory_space<vmem>>, vector<4x256xf32>
    %255 = vector.broadcast %3 : vector<1x256xf32> to vector<4x256xf32>
    %256 = arith.mulf %254, %255 : vector<4x256xf32>
    %257 = vector.extract_strided_slice %36 {offsets = [0, 32], sizes = [4, 4], strides = [1, 1]} : vector<4x36xf32> to vector<4x4xf32>
    %258 = vector.extract_strided_slice %257 {offsets = [0, 0], sizes = [4, 1], strides = [1, 1]} : vector<4x4xf32> to vector<4x1xf32>
    %259 = vector.extract_strided_slice %256 {offsets = [0, 0], sizes = [1, 256], strides = [1, 1]} : vector<4x256xf32> to vector<1x256xf32>
    %260 = vector.broadcast %258 : vector<4x1xf32> to vector<4x256xf32>
    %261 = vector.broadcast %259 : vector<1x256xf32> to vector<4x256xf32>
    %262 = arith.mulf %260, %261 : vector<4x256xf32>
    %263 = vector.extract_strided_slice %257 {offsets = [0, 1], sizes = [4, 1], strides = [1, 1]} : vector<4x4xf32> to vector<4x1xf32>
    %264 = vector.extract_strided_slice %256 {offsets = [1, 0], sizes = [1, 256], strides = [1, 1]} : vector<4x256xf32> to vector<1x256xf32>
    %265 = vector.broadcast %263 : vector<4x1xf32> to vector<4x256xf32>
    %266 = vector.broadcast %264 : vector<1x256xf32> to vector<4x256xf32>
    %267 = arith.mulf %265, %266 : vector<4x256xf32>
    %268 = arith.addf %262, %267 : vector<4x256xf32>
    %269 = vector.extract_strided_slice %257 {offsets = [0, 2], sizes = [4, 1], strides = [1, 1]} : vector<4x4xf32> to vector<4x1xf32>
    %270 = vector.extract_strided_slice %256 {offsets = [2, 0], sizes = [1, 256], strides = [1, 1]} : vector<4x256xf32> to vector<1x256xf32>
    %271 = vector.broadcast %269 : vector<4x1xf32> to vector<4x256xf32>
    %272 = vector.broadcast %270 : vector<1x256xf32> to vector<4x256xf32>
    %273 = arith.mulf %271, %272 : vector<4x256xf32>
    %274 = arith.addf %268, %273 : vector<4x256xf32>
    %275 = vector.extract_strided_slice %257 {offsets = [0, 3], sizes = [4, 1], strides = [1, 1]} : vector<4x4xf32> to vector<4x1xf32>
    %276 = vector.extract_strided_slice %256 {offsets = [3, 0], sizes = [1, 256], strides = [1, 1]} : vector<4x256xf32> to vector<1x256xf32>
    %277 = vector.broadcast %275 : vector<4x1xf32> to vector<4x256xf32>
    %278 = vector.broadcast %276 : vector<1x256xf32> to vector<4x256xf32>
    %279 = arith.mulf %277, %278 : vector<4x256xf32>
    %280 = arith.addf %274, %279 : vector<4x256xf32>
    %281 = arith.addf %253, %280 : vector<4x256xf32>
    %c0_23 = arith.constant 0 : index
    %c0_24 = arith.constant 0 : index
    %282 = vector.load %arg6[%c0_23, %c0_24] : memref<4x1xf32, #tpu.memory_space<vmem>>, vector<4x1xf32>
    %283 = vector.broadcast %282 : vector<4x1xf32> to vector<4x256xf32>
    %284 = arith.addf %281, %283 : vector<4x256xf32>
    %285 = arith.addf %284, %1 : vector<4x256xf32>
    %cst_25 = arith.constant 2.000000e-01 : f32
    %286 = vector.broadcast %cst_25 : f32 to vector<4x256xf32>
    %287 = arith.mulf %286, %285 : vector<4x256xf32>
    %288 = arith.maximumf %285, %287 : vector<4x256xf32>
    %c0_26 = arith.constant 0 : index
    %c0_27 = arith.constant 0 : index
    %289 = vector.load %arg7[%c0_26, %c0_27] : memref<4x4xf32, #tpu.memory_space<vmem>>, vector<4x4xf32>
    %290 = vector.extract_strided_slice %289 {offsets = [0, 0], sizes = [4, 1], strides = [1, 1]} : vector<4x4xf32> to vector<4x1xf32>
    %291 = vector.extract_strided_slice %288 {offsets = [0, 0], sizes = [1, 256], strides = [1, 1]} : vector<4x256xf32> to vector<1x256xf32>
    %292 = vector.broadcast %290 : vector<4x1xf32> to vector<4x256xf32>
    %293 = vector.broadcast %291 : vector<1x256xf32> to vector<4x256xf32>
    %294 = arith.mulf %292, %293 : vector<4x256xf32>
    %295 = vector.extract_strided_slice %289 {offsets = [0, 1], sizes = [4, 1], strides = [1, 1]} : vector<4x4xf32> to vector<4x1xf32>
    %296 = vector.extract_strided_slice %288 {offsets = [1, 0], sizes = [1, 256], strides = [1, 1]} : vector<4x256xf32> to vector<1x256xf32>
    %297 = vector.broadcast %295 : vector<4x1xf32> to vector<4x256xf32>
    %298 = vector.broadcast %296 : vector<1x256xf32> to vector<4x256xf32>
    %299 = arith.mulf %297, %298 : vector<4x256xf32>
    %300 = arith.addf %294, %299 : vector<4x256xf32>
    %301 = vector.extract_strided_slice %289 {offsets = [0, 2], sizes = [4, 1], strides = [1, 1]} : vector<4x4xf32> to vector<4x1xf32>
    %302 = vector.extract_strided_slice %288 {offsets = [2, 0], sizes = [1, 256], strides = [1, 1]} : vector<4x256xf32> to vector<1x256xf32>
    %303 = vector.broadcast %301 : vector<4x1xf32> to vector<4x256xf32>
    %304 = vector.broadcast %302 : vector<1x256xf32> to vector<4x256xf32>
    %305 = arith.mulf %303, %304 : vector<4x256xf32>
    %306 = arith.addf %300, %305 : vector<4x256xf32>
    %307 = vector.extract_strided_slice %289 {offsets = [0, 3], sizes = [4, 1], strides = [1, 1]} : vector<4x4xf32> to vector<4x1xf32>
    %308 = vector.extract_strided_slice %288 {offsets = [3, 0], sizes = [1, 256], strides = [1, 1]} : vector<4x256xf32> to vector<1x256xf32>
    %309 = vector.broadcast %307 : vector<4x1xf32> to vector<4x256xf32>
    %310 = vector.broadcast %308 : vector<1x256xf32> to vector<4x256xf32>
    %311 = arith.mulf %309, %310 : vector<4x256xf32>
    %312 = arith.addf %306, %311 : vector<4x256xf32>
    %c0_28 = arith.constant 0 : index
    %c0_29 = arith.constant 0 : index
    %313 = vector.load %arg8[%c0_28, %c0_29] : memref<4x1xf32, #tpu.memory_space<vmem>>, vector<4x1xf32>
    %314 = vector.broadcast %313 : vector<4x1xf32> to vector<4x256xf32>
    %315 = arith.addf %312, %314 : vector<4x256xf32>
    %cst_30 = arith.constant 2.000000e-01 : f32
    %316 = vector.broadcast %cst_30 : f32 to vector<4x256xf32>
    %317 = arith.mulf %316, %315 : vector<4x256xf32>
    %318 = arith.maximumf %315, %317 : vector<4x256xf32>
    %c0_31 = arith.constant 0 : index
    %c0_32 = arith.constant 0 : index
    %319 = vector.load %arg9[%c0_31, %c0_32] : memref<4x36xf32, #tpu.memory_space<vmem>>, vector<4x36xf32>
    %c0_33 = arith.constant 0 : index
    %c128_34 = arith.constant 128 : index
    %320 = vector.load %arg22[%c0_33, %c128_34] : memref<4x512xf32, #tpu.memory_space<vmem>>, vector<4x256xf32>
    tpu.vector_store %arg22[%c0_33, %c128_34], %288 {strides = array<i32>} : memref<4x512xf32, #tpu.memory_space<vmem>>, vector<4x256xf32>,
    %c0_35 = arith.constant 0 : index
    %c111_36 = arith.constant 111 : index
    %321 = vector.load %arg22[%c0_35, %c111_36] : memref<4x512xf32, #tpu.memory_space<vmem>>, vector<4x256xf32>
    %322 = vector.broadcast %2 : vector<1x256xf32> to vector<4x256xf32>
    %323 = arith.mulf %321, %322 : vector<4x256xf32>
    %324 = vector.extract_strided_slice %319 {offsets = [0, 0], sizes = [4, 4], strides = [1, 1]} : vector<4x36xf32> to vector<4x4xf32>
    %325 = vector.extract_strided_slice %324 {offsets = [0, 0], sizes = [4, 1], strides = [1, 1]} : vector<4x4xf32> to vector<4x1xf32>
    %326 = vector.extract_strided_slice %323 {offsets = [0, 0], sizes = [1, 256], strides = [1, 1]} : vector<4x256xf32> to vector<1x256xf32>
    %327 = vector.broadcast %325 : vector<4x1xf32> to vector<4x256xf32>
    %328 = vector.broadcast %326 : vector<1x256xf32> to vector<4x256xf32>
    %329 = arith.mulf %327, %328 : vector<4x256xf32>
    %330 = vector.extract_strided_slice %324 {offsets = [0, 1], sizes = [4, 1], strides = [1, 1]} : vector<4x4xf32> to vector<4x1xf32>
    %331 = vector.extract_strided_slice %323 {offsets = [1, 0], sizes = [1, 256], strides = [1, 1]} : vector<4x256xf32> to vector<1x256xf32>
    %332 = vector.broadcast %330 : vector<4x1xf32> to vector<4x256xf32>
    %333 = vector.broadcast %331 : vector<1x256xf32> to vector<4x256xf32>
    %334 = arith.mulf %332, %333 : vector<4x256xf32>
    %335 = arith.addf %329, %334 : vector<4x256xf32>
    %336 = vector.extract_strided_slice %324 {offsets = [0, 2], sizes = [4, 1], strides = [1, 1]} : vector<4x4xf32> to vector<4x1xf32>
    %337 = vector.extract_strided_slice %323 {offsets = [2, 0], sizes = [1, 256], strides = [1, 1]} : vector<4x256xf32> to vector<1x256xf32>
    %338 = vector.broadcast %336 : vector<4x1xf32> to vector<4x256xf32>
    %339 = vector.broadcast %337 : vector<1x256xf32> to vector<4x256xf32>
    %340 = arith.mulf %338, %339 : vector<4x256xf32>
    %341 = arith.addf %335, %340 : vector<4x256xf32>
    %342 = vector.extract_strided_slice %324 {offsets = [0, 3], sizes = [4, 1], strides = [1, 1]} : vector<4x4xf32> to vector<4x1xf32>
    %343 = vector.extract_strided_slice %323 {offsets = [3, 0], sizes = [1, 256], strides = [1, 1]} : vector<4x256xf32> to vector<1x256xf32>
    %344 = vector.broadcast %342 : vector<4x1xf32> to vector<4x256xf32>
    %345 = vector.broadcast %343 : vector<1x256xf32> to vector<4x256xf32>
    %346 = arith.mulf %344, %345 : vector<4x256xf32>
    %347 = arith.addf %341, %346 : vector<4x256xf32>
    %c0_37 = arith.constant 0 : index
    %c112_38 = arith.constant 112 : index
    %348 = vector.load %arg22[%c0_37, %c112_38] : memref<4x512xf32, #tpu.memory_space<vmem>>, vector<4x256xf32>
    %349 = vector.extract_strided_slice %319 {offsets = [0, 4], sizes = [4, 4], strides = [1, 1]} : vector<4x36xf32> to vector<4x4xf32>
    %350 = vector.extract_strided_slice %349 {offsets = [0, 0], sizes = [4, 1], strides = [1, 1]} : vector<4x4xf32> to vector<4x1xf32>
    %351 = vector.extract_strided_slice %348 {offsets = [0, 0], sizes = [1, 256], strides = [1, 1]} : vector<4x256xf32> to vector<1x256xf32>
    %352 = vector.broadcast %350 : vector<4x1xf32> to vector<4x256xf32>
    %353 = vector.broadcast %351 : vector<1x256xf32> to vector<4x256xf32>
    %354 = arith.mulf %352, %353 : vector<4x256xf32>
    %355 = vector.extract_strided_slice %349 {offsets = [0, 1], sizes = [4, 1], strides = [1, 1]} : vector<4x4xf32> to vector<4x1xf32>
    %356 = vector.extract_strided_slice %348 {offsets = [1, 0], sizes = [1, 256], strides = [1, 1]} : vector<4x256xf32> to vector<1x256xf32>
    %357 = vector.broadcast %355 : vector<4x1xf32> to vector<4x256xf32>
    %358 = vector.broadcast %356 : vector<1x256xf32> to vector<4x256xf32>
    %359 = arith.mulf %357, %358 : vector<4x256xf32>
    %360 = arith.addf %354, %359 : vector<4x256xf32>
    %361 = vector.extract_strided_slice %349 {offsets = [0, 2], sizes = [4, 1], strides = [1, 1]} : vector<4x4xf32> to vector<4x1xf32>
    %362 = vector.extract_strided_slice %348 {offsets = [2, 0], sizes = [1, 256], strides = [1, 1]} : vector<4x256xf32> to vector<1x256xf32>
    %363 = vector.broadcast %361 : vector<4x1xf32> to vector<4x256xf32>
    %364 = vector.broadcast %362 : vector<1x256xf32> to vector<4x256xf32>
    %365 = arith.mulf %363, %364 : vector<4x256xf32>
    %366 = arith.addf %360, %365 : vector<4x256xf32>
    %367 = vector.extract_strided_slice %349 {offsets = [0, 3], sizes = [4, 1], strides = [1, 1]} : vector<4x4xf32> to vector<4x1xf32>
    %368 = vector.extract_strided_slice %348 {offsets = [3, 0], sizes = [1, 256], strides = [1, 1]} : vector<4x256xf32> to vector<1x256xf32>
    %369 = vector.broadcast %367 : vector<4x1xf32> to vector<4x256xf32>
    %370 = vector.broadcast %368 : vector<1x256xf32> to vector<4x256xf32>
    %371 = arith.mulf %369, %370 : vector<4x256xf32>
    %372 = arith.addf %366, %371 : vector<4x256xf32>
    %373 = arith.addf %347, %372 : vector<4x256xf32>
    %c0_39 = arith.constant 0 : index
    %c113_40 = arith.constant 113 : index
    %374 = vector.load %arg22[%c0_39, %c113_40] : memref<4x512xf32, #tpu.memory_space<vmem>>, vector<4x256xf32>
    %375 = vector.broadcast %3 : vector<1x256xf32> to vector<4x256xf32>
    %376 = arith.mulf %374, %375 : vector<4x256xf32>
    %377 = vector.extract_strided_slice %319 {offsets = [0, 8], sizes = [4, 4], strides = [1, 1]} : vector<4x36xf32> to vector<4x4xf32>
    %378 = vector.extract_strided_slice %377 {offsets = [0, 0], sizes = [4, 1], strides = [1, 1]} : vector<4x4xf32> to vector<4x1xf32>
    %379 = vector.extract_strided_slice %376 {offsets = [0, 0], sizes = [1, 256], strides = [1, 1]} : vector<4x256xf32> to vector<1x256xf32>
    %380 = vector.broadcast %378 : vector<4x1xf32> to vector<4x256xf32>
    %381 = vector.broadcast %379 : vector<1x256xf32> to vector<4x256xf32>
    %382 = arith.mulf %380, %381 : vector<4x256xf32>
    %383 = vector.extract_strided_slice %377 {offsets = [0, 1], sizes = [4, 1], strides = [1, 1]} : vector<4x4xf32> to vector<4x1xf32>
    %384 = vector.extract_strided_slice %376 {offsets = [1, 0], sizes = [1, 256], strides = [1, 1]} : vector<4x256xf32> to vector<1x256xf32>
    %385 = vector.broadcast %383 : vector<4x1xf32> to vector<4x256xf32>
    %386 = vector.broadcast %384 : vector<1x256xf32> to vector<4x256xf32>
    %387 = arith.mulf %385, %386 : vector<4x256xf32>
    %388 = arith.addf %382, %387 : vector<4x256xf32>
    %389 = vector.extract_strided_slice %377 {offsets = [0, 2], sizes = [4, 1], strides = [1, 1]} : vector<4x4xf32> to vector<4x1xf32>
    %390 = vector.extract_strided_slice %376 {offsets = [2, 0], sizes = [1, 256], strides = [1, 1]} : vector<4x256xf32> to vector<1x256xf32>
    %391 = vector.broadcast %389 : vector<4x1xf32> to vector<4x256xf32>
    %392 = vector.broadcast %390 : vector<1x256xf32> to vector<4x256xf32>
    %393 = arith.mulf %391, %392 : vector<4x256xf32>
    %394 = arith.addf %388, %393 : vector<4x256xf32>
    %395 = vector.extract_strided_slice %377 {offsets = [0, 3], sizes = [4, 1], strides = [1, 1]} : vector<4x4xf32> to vector<4x1xf32>
    %396 = vector.extract_strided_slice %376 {offsets = [3, 0], sizes = [1, 256], strides = [1, 1]} : vector<4x256xf32> to vector<1x256xf32>
    %397 = vector.broadcast %395 : vector<4x1xf32> to vector<4x256xf32>
    %398 = vector.broadcast %396 : vector<1x256xf32> to vector<4x256xf32>
    %399 = arith.mulf %397, %398 : vector<4x256xf32>
    %400 = arith.addf %394, %399 : vector<4x256xf32>
    %401 = arith.addf %373, %400 : vector<4x256xf32>
    %c0_41 = arith.constant 0 : index
    %c127_42 = arith.constant 127 : index
    %402 = vector.load %arg22[%c0_41, %c127_42] : memref<4x512xf32, #tpu.memory_space<vmem>>, vector<4x256xf32>
    %403 = vector.broadcast %2 : vector<1x256xf32> to vector<4x256xf32>
    %404 = arith.mulf %402, %403 : vector<4x256xf32>
    %405 = vector.extract_strided_slice %319 {offsets = [0, 12], sizes = [4, 4], strides = [1, 1]} : vector<4x36xf32> to vector<4x4xf32>
    %406 = vector.extract_strided_slice %405 {offsets = [0, 0], sizes = [4, 1], strides = [1, 1]} : vector<4x4xf32> to vector<4x1xf32>
    %407 = vector.extract_strided_slice %404 {offsets = [0, 0], sizes = [1, 256], strides = [1, 1]} : vector<4x256xf32> to vector<1x256xf32>
    %408 = vector.broadcast %406 : vector<4x1xf32> to vector<4x256xf32>
    %409 = vector.broadcast %407 : vector<1x256xf32> to vector<4x256xf32>
    %410 = arith.mulf %408, %409 : vector<4x256xf32>
    %411 = vector.extract_strided_slice %405 {offsets = [0, 1], sizes = [4, 1], strides = [1, 1]} : vector<4x4xf32> to vector<4x1xf32>
    %412 = vector.extract_strided_slice %404 {offsets = [1, 0], sizes = [1, 256], strides = [1, 1]} : vector<4x256xf32> to vector<1x256xf32>
    %413 = vector.broadcast %411 : vector<4x1xf32> to vector<4x256xf32>
    %414 = vector.broadcast %412 : vector<1x256xf32> to vector<4x256xf32>
    %415 = arith.mulf %413, %414 : vector<4x256xf32>
    %416 = arith.addf %410, %415 : vector<4x256xf32>
    %417 = vector.extract_strided_slice %405 {offsets = [0, 2], sizes = [4, 1], strides = [1, 1]} : vector<4x4xf32> to vector<4x1xf32>
    %418 = vector.extract_strided_slice %404 {offsets = [2, 0], sizes = [1, 256], strides = [1, 1]} : vector<4x256xf32> to vector<1x256xf32>
    %419 = vector.broadcast %417 : vector<4x1xf32> to vector<4x256xf32>
    %420 = vector.broadcast %418 : vector<1x256xf32> to vector<4x256xf32>
    %421 = arith.mulf %419, %420 : vector<4x256xf32>
    %422 = arith.addf %416, %421 : vector<4x256xf32>
    %423 = vector.extract_strided_slice %405 {offsets = [0, 3], sizes = [4, 1], strides = [1, 1]} : vector<4x4xf32> to vector<4x1xf32>
    %424 = vector.extract_strided_slice %404 {offsets = [3, 0], sizes = [1, 256], strides = [1, 1]} : vector<4x256xf32> to vector<1x256xf32>
    %425 = vector.broadcast %423 : vector<4x1xf32> to vector<4x256xf32>
    %426 = vector.broadcast %424 : vector<1x256xf32> to vector<4x256xf32>
    %427 = arith.mulf %425, %426 : vector<4x256xf32>
    %428 = arith.addf %422, %427 : vector<4x256xf32>
    %429 = arith.addf %401, %428 : vector<4x256xf32>
    %430 = vector.extract_strided_slice %319 {offsets = [0, 16], sizes = [4, 4], strides = [1, 1]} : vector<4x36xf32> to vector<4x4xf32>
    %431 = vector.extract_strided_slice %430 {offsets = [0, 0], sizes = [4, 1], strides = [1, 1]} : vector<4x4xf32> to vector<4x1xf32>
    %432 = vector.extract_strided_slice %288 {offsets = [0, 0], sizes = [1, 256], strides = [1, 1]} : vector<4x256xf32> to vector<1x256xf32>
    %433 = vector.broadcast %431 : vector<4x1xf32> to vector<4x256xf32>
    %434 = vector.broadcast %432 : vector<1x256xf32> to vector<4x256xf32>
    %435 = arith.mulf %433, %434 : vector<4x256xf32>
    %436 = vector.extract_strided_slice %430 {offsets = [0, 1], sizes = [4, 1], strides = [1, 1]} : vector<4x4xf32> to vector<4x1xf32>
    %437 = vector.extract_strided_slice %288 {offsets = [1, 0], sizes = [1, 256], strides = [1, 1]} : vector<4x256xf32> to vector<1x256xf32>
    %438 = vector.broadcast %436 : vector<4x1xf32> to vector<4x256xf32>
    %439 = vector.broadcast %437 : vector<1x256xf32> to vector<4x256xf32>
    %440 = arith.mulf %438, %439 : vector<4x256xf32>
    %441 = arith.addf %435, %440 : vector<4x256xf32>
    %442 = vector.extract_strided_slice %430 {offsets = [0, 2], sizes = [4, 1], strides = [1, 1]} : vector<4x4xf32> to vector<4x1xf32>
    %443 = vector.extract_strided_slice %288 {offsets = [2, 0], sizes = [1, 256], strides = [1, 1]} : vector<4x256xf32> to vector<1x256xf32>
    %444 = vector.broadcast %442 : vector<4x1xf32> to vector<4x256xf32>
    %445 = vector.broadcast %443 : vector<1x256xf32> to vector<4x256xf32>
    %446 = arith.mulf %444, %445 : vector<4x256xf32>
    %447 = arith.addf %441, %446 : vector<4x256xf32>
    %448 = vector.extract_strided_slice %430 {offsets = [0, 3], sizes = [4, 1], strides = [1, 1]} : vector<4x4xf32> to vector<4x1xf32>
    %449 = vector.extract_strided_slice %288 {offsets = [3, 0], sizes = [1, 256], strides = [1, 1]} : vector<4x256xf32> to vector<1x256xf32>
    %450 = vector.broadcast %448 : vector<4x1xf32> to vector<4x256xf32>
    %451 = vector.broadcast %449 : vector<1x256xf32> to vector<4x256xf32>
    %452 = arith.mulf %450, %451 : vector<4x256xf32>
    %453 = arith.addf %447, %452 : vector<4x256xf32>
    %454 = arith.addf %429, %453 : vector<4x256xf32>
    %c0_43 = arith.constant 0 : index
    %c129_44 = arith.constant 129 : index
    %455 = vector.load %arg22[%c0_43, %c129_44] : memref<4x512xf32, #tpu.memory_space<vmem>>, vector<4x256xf32>
    %456 = vector.broadcast %3 : vector<1x256xf32> to vector<4x256xf32>
    %457 = arith.mulf %455, %456 : vector<4x256xf32>
    %458 = vector.extract_strided_slice %319 {offsets = [0, 20], sizes = [4, 4], strides = [1, 1]} : vector<4x36xf32> to vector<4x4xf32>
    %459 = vector.extract_strided_slice %458 {offsets = [0, 0], sizes = [4, 1], strides = [1, 1]} : vector<4x4xf32> to vector<4x1xf32>
    %460 = vector.extract_strided_slice %457 {offsets = [0, 0], sizes = [1, 256], strides = [1, 1]} : vector<4x256xf32> to vector<1x256xf32>
    %461 = vector.broadcast %459 : vector<4x1xf32> to vector<4x256xf32>
    %462 = vector.broadcast %460 : vector<1x256xf32> to vector<4x256xf32>
    %463 = arith.mulf %461, %462 : vector<4x256xf32>
    %464 = vector.extract_strided_slice %458 {offsets = [0, 1], sizes = [4, 1], strides = [1, 1]} : vector<4x4xf32> to vector<4x1xf32>
    %465 = vector.extract_strided_slice %457 {offsets = [1, 0], sizes = [1, 256], strides = [1, 1]} : vector<4x256xf32> to vector<1x256xf32>
    %466 = vector.broadcast %464 : vector<4x1xf32> to vector<4x256xf32>
    %467 = vector.broadcast %465 : vector<1x256xf32> to vector<4x256xf32>
    %468 = arith.mulf %466, %467 : vector<4x256xf32>
    %469 = arith.addf %463, %468 : vector<4x256xf32>
    %470 = vector.extract_strided_slice %458 {offsets = [0, 2], sizes = [4, 1], strides = [1, 1]} : vector<4x4xf32> to vector<4x1xf32>
    %471 = vector.extract_strided_slice %457 {offsets = [2, 0], sizes = [1, 256], strides = [1, 1]} : vector<4x256xf32> to vector<1x256xf32>
    %472 = vector.broadcast %470 : vector<4x1xf32> to vector<4x256xf32>
    %473 = vector.broadcast %471 : vector<1x256xf32> to vector<4x256xf32>
    %474 = arith.mulf %472, %473 : vector<4x256xf32>
    %475 = arith.addf %469, %474 : vector<4x256xf32>
    %476 = vector.extract_strided_slice %458 {offsets = [0, 3], sizes = [4, 1], strides = [1, 1]} : vector<4x4xf32> to vector<4x1xf32>
    %477 = vector.extract_strided_slice %457 {offsets = [3, 0], sizes = [1, 256], strides = [1, 1]} : vector<4x256xf32> to vector<1x256xf32>
    %478 = vector.broadcast %476 : vector<4x1xf32> to vector<4x256xf32>
    %479 = vector.broadcast %477 : vector<1x256xf32> to vector<4x256xf32>
    %480 = arith.mulf %478, %479 : vector<4x256xf32>
    %481 = arith.addf %475, %480 : vector<4x256xf32>
    %482 = arith.addf %454, %481 : vector<4x256xf32>
    %c0_45 = arith.constant 0 : index
    %c143_46 = arith.constant 143 : index
    %483 = vector.load %arg22[%c0_45, %c143_46] : memref<4x512xf32, #tpu.memory_space<vmem>>, vector<4x256xf32>
    %484 = vector.broadcast %2 : vector<1x256xf32> to vector<4x256xf32>
    %485 = arith.mulf %483, %484 : vector<4x256xf32>
    %486 = vector.extract_strided_slice %319 {offsets = [0, 24], sizes = [4, 4], strides = [1, 1]} : vector<4x36xf32> to vector<4x4xf32>
    %487 = vector.extract_strided_slice %486 {offsets = [0, 0], sizes = [4, 1], strides = [1, 1]} : vector<4x4xf32> to vector<4x1xf32>
    %488 = vector.extract_strided_slice %485 {offsets = [0, 0], sizes = [1, 256], strides = [1, 1]} : vector<4x256xf32> to vector<1x256xf32>
    %489 = vector.broadcast %487 : vector<4x1xf32> to vector<4x256xf32>
    %490 = vector.broadcast %488 : vector<1x256xf32> to vector<4x256xf32>
    %491 = arith.mulf %489, %490 : vector<4x256xf32>
    %492 = vector.extract_strided_slice %486 {offsets = [0, 1], sizes = [4, 1], strides = [1, 1]} : vector<4x4xf32> to vector<4x1xf32>
    %493 = vector.extract_strided_slice %485 {offsets = [1, 0], sizes = [1, 256], strides = [1, 1]} : vector<4x256xf32> to vector<1x256xf32>
    %494 = vector.broadcast %492 : vector<4x1xf32> to vector<4x256xf32>
    %495 = vector.broadcast %493 : vector<1x256xf32> to vector<4x256xf32>
    %496 = arith.mulf %494, %495 : vector<4x256xf32>
    %497 = arith.addf %491, %496 : vector<4x256xf32>
    %498 = vector.extract_strided_slice %486 {offsets = [0, 2], sizes = [4, 1], strides = [1, 1]} : vector<4x4xf32> to vector<4x1xf32>
    %499 = vector.extract_strided_slice %485 {offsets = [2, 0], sizes = [1, 256], strides = [1, 1]} : vector<4x256xf32> to vector<1x256xf32>
    %500 = vector.broadcast %498 : vector<4x1xf32> to vector<4x256xf32>
    %501 = vector.broadcast %499 : vector<1x256xf32> to vector<4x256xf32>
    %502 = arith.mulf %500, %501 : vector<4x256xf32>
    %503 = arith.addf %497, %502 : vector<4x256xf32>
    %504 = vector.extract_strided_slice %486 {offsets = [0, 3], sizes = [4, 1], strides = [1, 1]} : vector<4x4xf32> to vector<4x1xf32>
    %505 = vector.extract_strided_slice %485 {offsets = [3, 0], sizes = [1, 256], strides = [1, 1]} : vector<4x256xf32> to vector<1x256xf32>
    %506 = vector.broadcast %504 : vector<4x1xf32> to vector<4x256xf32>
    %507 = vector.broadcast %505 : vector<1x256xf32> to vector<4x256xf32>
    %508 = arith.mulf %506, %507 : vector<4x256xf32>
    %509 = arith.addf %503, %508 : vector<4x256xf32>
    %510 = arith.addf %482, %509 : vector<4x256xf32>
    %c0_47 = arith.constant 0 : index
    %c144_48 = arith.constant 144 : index
    %511 = vector.load %arg22[%c0_47, %c144_48] : memref<4x512xf32, #tpu.memory_space<vmem>>, vector<4x256xf32>
    %512 = vector.extract_strided_slice %319 {offsets = [0, 28], sizes = [4, 4], strides = [1, 1]} : vector<4x36xf32> to vector<4x4xf32>
    %513 = vector.extract_strided_slice %512 {offsets = [0, 0], sizes = [4, 1], strides = [1, 1]} : vector<4x4xf32> to vector<4x1xf32>
    %514 = vector.extract_strided_slice %511 {offsets = [0, 0], sizes = [1, 256], strides = [1, 1]} : vector<4x256xf32> to vector<1x256xf32>
    %515 = vector.broadcast %513 : vector<4x1xf32> to vector<4x256xf32>
    %516 = vector.broadcast %514 : vector<1x256xf32> to vector<4x256xf32>
    %517 = arith.mulf %515, %516 : vector<4x256xf32>
    %518 = vector.extract_strided_slice %512 {offsets = [0, 1], sizes = [4, 1], strides = [1, 1]} : vector<4x4xf32> to vector<4x1xf32>
    %519 = vector.extract_strided_slice %511 {offsets = [1, 0], sizes = [1, 256], strides = [1, 1]} : vector<4x256xf32> to vector<1x256xf32>
    %520 = vector.broadcast %518 : vector<4x1xf32> to vector<4x256xf32>
    %521 = vector.broadcast %519 : vector<1x256xf32> to vector<4x256xf32>
    %522 = arith.mulf %520, %521 : vector<4x256xf32>
    %523 = arith.addf %517, %522 : vector<4x256xf32>
    %524 = vector.extract_strided_slice %512 {offsets = [0, 2], sizes = [4, 1], strides = [1, 1]} : vector<4x4xf32> to vector<4x1xf32>
    %525 = vector.extract_strided_slice %511 {offsets = [2, 0], sizes = [1, 256], strides = [1, 1]} : vector<4x256xf32> to vector<1x256xf32>
    %526 = vector.broadcast %524 : vector<4x1xf32> to vector<4x256xf32>
    %527 = vector.broadcast %525 : vector<1x256xf32> to vector<4x256xf32>
    %528 = arith.mulf %526, %527 : vector<4x256xf32>
    %529 = arith.addf %523, %528 : vector<4x256xf32>
    %530 = vector.extract_strided_slice %512 {offsets = [0, 3], sizes = [4, 1], strides = [1, 1]} : vector<4x4xf32> to vector<4x1xf32>
    %531 = vector.extract_strided_slice %511 {offsets = [3, 0], sizes = [1, 256], strides = [1, 1]} : vector<4x256xf32> to vector<1x256xf32>
    %532 = vector.broadcast %530 : vector<4x1xf32> to vector<4x256xf32>
    %533 = vector.broadcast %531 : vector<1x256xf32> to vector<4x256xf32>
    %534 = arith.mulf %532, %533 : vector<4x256xf32>
    %535 = arith.addf %529, %534 : vector<4x256xf32>
    %536 = arith.addf %510, %535 : vector<4x256xf32>
    %c0_49 = arith.constant 0 : index
    %c145_50 = arith.constant 145 : index
    %537 = vector.load %arg22[%c0_49, %c145_50] : memref<4x512xf32, #tpu.memory_space<vmem>>, vector<4x256xf32>
    %538 = vector.broadcast %3 : vector<1x256xf32> to vector<4x256xf32>
    %539 = arith.mulf %537, %538 : vector<4x256xf32>
    %540 = vector.extract_strided_slice %319 {offsets = [0, 32], sizes = [4, 4], strides = [1, 1]} : vector<4x36xf32> to vector<4x4xf32>
    %541 = vector.extract_strided_slice %540 {offsets = [0, 0], sizes = [4, 1], strides = [1, 1]} : vector<4x4xf32> to vector<4x1xf32>
    %542 = vector.extract_strided_slice %539 {offsets = [0, 0], sizes = [1, 256], strides = [1, 1]} : vector<4x256xf32> to vector<1x256xf32>
    %543 = vector.broadcast %541 : vector<4x1xf32> to vector<4x256xf32>
    %544 = vector.broadcast %542 : vector<1x256xf32> to vector<4x256xf32>
    %545 = arith.mulf %543, %544 : vector<4x256xf32>
    %546 = vector.extract_strided_slice %540 {offsets = [0, 1], sizes = [4, 1], strides = [1, 1]} : vector<4x4xf32> to vector<4x1xf32>
    %547 = vector.extract_strided_slice %539 {offsets = [1, 0], sizes = [1, 256], strides = [1, 1]} : vector<4x256xf32> to vector<1x256xf32>
    %548 = vector.broadcast %546 : vector<4x1xf32> to vector<4x256xf32>
    %549 = vector.broadcast %547 : vector<1x256xf32> to vector<4x256xf32>
    %550 = arith.mulf %548, %549 : vector<4x256xf32>
    %551 = arith.addf %545, %550 : vector<4x256xf32>
    %552 = vector.extract_strided_slice %540 {offsets = [0, 2], sizes = [4, 1], strides = [1, 1]} : vector<4x4xf32> to vector<4x1xf32>
    %553 = vector.extract_strided_slice %539 {offsets = [2, 0], sizes = [1, 256], strides = [1, 1]} : vector<4x256xf32> to vector<1x256xf32>
    %554 = vector.broadcast %552 : vector<4x1xf32> to vector<4x256xf32>
    %555 = vector.broadcast %553 : vector<1x256xf32> to vector<4x256xf32>
    %556 = arith.mulf %554, %555 : vector<4x256xf32>
    %557 = arith.addf %551, %556 : vector<4x256xf32>
    %558 = vector.extract_strided_slice %540 {offsets = [0, 3], sizes = [4, 1], strides = [1, 1]} : vector<4x4xf32> to vector<4x1xf32>
    %559 = vector.extract_strided_slice %539 {offsets = [3, 0], sizes = [1, 256], strides = [1, 1]} : vector<4x256xf32> to vector<1x256xf32>
    %560 = vector.broadcast %558 : vector<4x1xf32> to vector<4x256xf32>
    %561 = vector.broadcast %559 : vector<1x256xf32> to vector<4x256xf32>
    %562 = arith.mulf %560, %561 : vector<4x256xf32>
    %563 = arith.addf %557, %562 : vector<4x256xf32>
    %564 = arith.addf %536, %563 : vector<4x256xf32>
    %c0_51 = arith.constant 0 : index
    %c0_52 = arith.constant 0 : index
    %565 = vector.load %arg10[%c0_51, %c0_52] : memref<4x1xf32, #tpu.memory_space<vmem>>, vector<4x1xf32>
    %566 = vector.broadcast %565 : vector<4x1xf32> to vector<4x256xf32>
    %567 = arith.addf %564, %566 : vector<4x256xf32>
    %568 = arith.addf %567, %288 : vector<4x256xf32>
    %cst_53 = arith.constant 2.000000e-01 : f32
    %569 = vector.broadcast %cst_53 : f32 to vector<4x256xf32>
    %570 = arith.mulf %569, %568 : vector<4x256xf32>
    %571 = arith.maximumf %568, %570 : vector<4x256xf32>
    %c0_54 = arith.constant 0 : index
    %c0_55 = arith.constant 0 : index
    %572 = vector.load %arg11[%c0_54, %c0_55] : memref<4x4xf32, #tpu.memory_space<vmem>>, vector<4x4xf32>
    %573 = vector.extract_strided_slice %572 {offsets = [0, 0], sizes = [4, 1], strides = [1, 1]} : vector<4x4xf32> to vector<4x1xf32>
    %574 = vector.extract_strided_slice %571 {offsets = [0, 0], sizes = [1, 256], strides = [1, 1]} : vector<4x256xf32> to vector<1x256xf32>
    %575 = vector.broadcast %573 : vector<4x1xf32> to vector<4x256xf32>
    %576 = vector.broadcast %574 : vector<1x256xf32> to vector<4x256xf32>
    %577 = arith.mulf %575, %576 : vector<4x256xf32>
    %578 = vector.extract_strided_slice %572 {offsets = [0, 1], sizes = [4, 1], strides = [1, 1]} : vector<4x4xf32> to vector<4x1xf32>
    %579 = vector.extract_strided_slice %571 {offsets = [1, 0], sizes = [1, 256], strides = [1, 1]} : vector<4x256xf32> to vector<1x256xf32>
    %580 = vector.broadcast %578 : vector<4x1xf32> to vector<4x256xf32>
    %581 = vector.broadcast %579 : vector<1x256xf32> to vector<4x256xf32>
    %582 = arith.mulf %580, %581 : vector<4x256xf32>
    %583 = arith.addf %577, %582 : vector<4x256xf32>
    %584 = vector.extract_strided_slice %572 {offsets = [0, 2], sizes = [4, 1], strides = [1, 1]} : vector<4x4xf32> to vector<4x1xf32>
    %585 = vector.extract_strided_slice %571 {offsets = [2, 0], sizes = [1, 256], strides = [1, 1]} : vector<4x256xf32> to vector<1x256xf32>
    %586 = vector.broadcast %584 : vector<4x1xf32> to vector<4x256xf32>
    %587 = vector.broadcast %585 : vector<1x256xf32> to vector<4x256xf32>
    %588 = arith.mulf %586, %587 : vector<4x256xf32>
    %589 = arith.addf %583, %588 : vector<4x256xf32>
    %590 = vector.extract_strided_slice %572 {offsets = [0, 3], sizes = [4, 1], strides = [1, 1]} : vector<4x4xf32> to vector<4x1xf32>
    %591 = vector.extract_strided_slice %571 {offsets = [3, 0], sizes = [1, 256], strides = [1, 1]} : vector<4x256xf32> to vector<1x256xf32>
    %592 = vector.broadcast %590 : vector<4x1xf32> to vector<4x256xf32>
    %593 = vector.broadcast %591 : vector<1x256xf32> to vector<4x256xf32>
    %594 = arith.mulf %592, %593 : vector<4x256xf32>
    %595 = arith.addf %589, %594 : vector<4x256xf32>
    %c0_56 = arith.constant 0 : index
    %c0_57 = arith.constant 0 : index
    %596 = vector.load %arg12[%c0_56, %c0_57] : memref<4x1xf32, #tpu.memory_space<vmem>>, vector<4x1xf32>
    %597 = vector.broadcast %596 : vector<4x1xf32> to vector<4x256xf32>
    %598 = arith.addf %595, %597 : vector<4x256xf32>
    %cst_58 = arith.constant 2.000000e-01 : f32
    %599 = vector.broadcast %cst_58 : f32 to vector<4x256xf32>
    %600 = arith.mulf %599, %598 : vector<4x256xf32>
    %601 = arith.maximumf %598, %600 : vector<4x256xf32>
    %c0_59 = arith.constant 0 : index
    %c0_60 = arith.constant 0 : index
    %602 = vector.load %arg13[%c0_59, %c0_60] : memref<4x36xf32, #tpu.memory_space<vmem>>, vector<4x36xf32>
    %c0_61 = arith.constant 0 : index
    %c128_62 = arith.constant 128 : index
    %603 = vector.load %arg22[%c0_61, %c128_62] : memref<4x512xf32, #tpu.memory_space<vmem>>, vector<4x256xf32>
    tpu.vector_store %arg22[%c0_61, %c128_62], %571 {strides = array<i32>} : memref<4x512xf32, #tpu.memory_space<vmem>>, vector<4x256xf32>,
    %c0_63 = arith.constant 0 : index
    %c111_64 = arith.constant 111 : index
    %604 = vector.load %arg22[%c0_63, %c111_64] : memref<4x512xf32, #tpu.memory_space<vmem>>, vector<4x256xf32>
    %605 = vector.broadcast %2 : vector<1x256xf32> to vector<4x256xf32>
    %606 = arith.mulf %604, %605 : vector<4x256xf32>
    %607 = vector.extract_strided_slice %602 {offsets = [0, 0], sizes = [4, 4], strides = [1, 1]} : vector<4x36xf32> to vector<4x4xf32>
    %608 = vector.extract_strided_slice %607 {offsets = [0, 0], sizes = [4, 1], strides = [1, 1]} : vector<4x4xf32> to vector<4x1xf32>
    %609 = vector.extract_strided_slice %606 {offsets = [0, 0], sizes = [1, 256], strides = [1, 1]} : vector<4x256xf32> to vector<1x256xf32>
    %610 = vector.broadcast %608 : vector<4x1xf32> to vector<4x256xf32>
    %611 = vector.broadcast %609 : vector<1x256xf32> to vector<4x256xf32>
    %612 = arith.mulf %610, %611 : vector<4x256xf32>
    %613 = vector.extract_strided_slice %607 {offsets = [0, 1], sizes = [4, 1], strides = [1, 1]} : vector<4x4xf32> to vector<4x1xf32>
    %614 = vector.extract_strided_slice %606 {offsets = [1, 0], sizes = [1, 256], strides = [1, 1]} : vector<4x256xf32> to vector<1x256xf32>
    %615 = vector.broadcast %613 : vector<4x1xf32> to vector<4x256xf32>
    %616 = vector.broadcast %614 : vector<1x256xf32> to vector<4x256xf32>
    %617 = arith.mulf %615, %616 : vector<4x256xf32>
    %618 = arith.addf %612, %617 : vector<4x256xf32>
    %619 = vector.extract_strided_slice %607 {offsets = [0, 2], sizes = [4, 1], strides = [1, 1]} : vector<4x4xf32> to vector<4x1xf32>
    %620 = vector.extract_strided_slice %606 {offsets = [2, 0], sizes = [1, 256], strides = [1, 1]} : vector<4x256xf32> to vector<1x256xf32>
    %621 = vector.broadcast %619 : vector<4x1xf32> to vector<4x256xf32>
    %622 = vector.broadcast %620 : vector<1x256xf32> to vector<4x256xf32>
    %623 = arith.mulf %621, %622 : vector<4x256xf32>
    %624 = arith.addf %618, %623 : vector<4x256xf32>
    %625 = vector.extract_strided_slice %607 {offsets = [0, 3], sizes = [4, 1], strides = [1, 1]} : vector<4x4xf32> to vector<4x1xf32>
    %626 = vector.extract_strided_slice %606 {offsets = [3, 0], sizes = [1, 256], strides = [1, 1]} : vector<4x256xf32> to vector<1x256xf32>
    %627 = vector.broadcast %625 : vector<4x1xf32> to vector<4x256xf32>
    %628 = vector.broadcast %626 : vector<1x256xf32> to vector<4x256xf32>
    %629 = arith.mulf %627, %628 : vector<4x256xf32>
    %630 = arith.addf %624, %629 : vector<4x256xf32>
    %c0_65 = arith.constant 0 : index
    %c112_66 = arith.constant 112 : index
    %631 = vector.load %arg22[%c0_65, %c112_66] : memref<4x512xf32, #tpu.memory_space<vmem>>, vector<4x256xf32>
    %632 = vector.extract_strided_slice %602 {offsets = [0, 4], sizes = [4, 4], strides = [1, 1]} : vector<4x36xf32> to vector<4x4xf32>
    %633 = vector.extract_strided_slice %632 {offsets = [0, 0], sizes = [4, 1], strides = [1, 1]} : vector<4x4xf32> to vector<4x1xf32>
    %634 = vector.extract_strided_slice %631 {offsets = [0, 0], sizes = [1, 256], strides = [1, 1]} : vector<4x256xf32> to vector<1x256xf32>
    %635 = vector.broadcast %633 : vector<4x1xf32> to vector<4x256xf32>
    %636 = vector.broadcast %634 : vector<1x256xf32> to vector<4x256xf32>
    %637 = arith.mulf %635, %636 : vector<4x256xf32>
    %638 = vector.extract_strided_slice %632 {offsets = [0, 1], sizes = [4, 1], strides = [1, 1]} : vector<4x4xf32> to vector<4x1xf32>
    %639 = vector.extract_strided_slice %631 {offsets = [1, 0], sizes = [1, 256], strides = [1, 1]} : vector<4x256xf32> to vector<1x256xf32>
    %640 = vector.broadcast %638 : vector<4x1xf32> to vector<4x256xf32>
    %641 = vector.broadcast %639 : vector<1x256xf32> to vector<4x256xf32>
    %642 = arith.mulf %640, %641 : vector<4x256xf32>
    %643 = arith.addf %637, %642 : vector<4x256xf32>
    %644 = vector.extract_strided_slice %632 {offsets = [0, 2], sizes = [4, 1], strides = [1, 1]} : vector<4x4xf32> to vector<4x1xf32>
    %645 = vector.extract_strided_slice %631 {offsets = [2, 0], sizes = [1, 256], strides = [1, 1]} : vector<4x256xf32> to vector<1x256xf32>
    %646 = vector.broadcast %644 : vector<4x1xf32> to vector<4x256xf32>
    %647 = vector.broadcast %645 : vector<1x256xf32> to vector<4x256xf32>
    %648 = arith.mulf %646, %647 : vector<4x256xf32>
    %649 = arith.addf %643, %648 : vector<4x256xf32>
    %650 = vector.extract_strided_slice %632 {offsets = [0, 3], sizes = [4, 1], strides = [1, 1]} : vector<4x4xf32> to vector<4x1xf32>
    %651 = vector.extract_strided_slice %631 {offsets = [3, 0], sizes = [1, 256], strides = [1, 1]} : vector<4x256xf32> to vector<1x256xf32>
    %652 = vector.broadcast %650 : vector<4x1xf32> to vector<4x256xf32>
    %653 = vector.broadcast %651 : vector<1x256xf32> to vector<4x256xf32>
    %654 = arith.mulf %652, %653 : vector<4x256xf32>
    %655 = arith.addf %649, %654 : vector<4x256xf32>
    %656 = arith.addf %630, %655 : vector<4x256xf32>
    %c0_67 = arith.constant 0 : index
    %c113_68 = arith.constant 113 : index
    %657 = vector.load %arg22[%c0_67, %c113_68] : memref<4x512xf32, #tpu.memory_space<vmem>>, vector<4x256xf32>
    %658 = vector.broadcast %3 : vector<1x256xf32> to vector<4x256xf32>
    %659 = arith.mulf %657, %658 : vector<4x256xf32>
    %660 = vector.extract_strided_slice %602 {offsets = [0, 8], sizes = [4, 4], strides = [1, 1]} : vector<4x36xf32> to vector<4x4xf32>
    %661 = vector.extract_strided_slice %660 {offsets = [0, 0], sizes = [4, 1], strides = [1, 1]} : vector<4x4xf32> to vector<4x1xf32>
    %662 = vector.extract_strided_slice %659 {offsets = [0, 0], sizes = [1, 256], strides = [1, 1]} : vector<4x256xf32> to vector<1x256xf32>
    %663 = vector.broadcast %661 : vector<4x1xf32> to vector<4x256xf32>
    %664 = vector.broadcast %662 : vector<1x256xf32> to vector<4x256xf32>
    %665 = arith.mulf %663, %664 : vector<4x256xf32>
    %666 = vector.extract_strided_slice %660 {offsets = [0, 1], sizes = [4, 1], strides = [1, 1]} : vector<4x4xf32> to vector<4x1xf32>
    %667 = vector.extract_strided_slice %659 {offsets = [1, 0], sizes = [1, 256], strides = [1, 1]} : vector<4x256xf32> to vector<1x256xf32>
    %668 = vector.broadcast %666 : vector<4x1xf32> to vector<4x256xf32>
    %669 = vector.broadcast %667 : vector<1x256xf32> to vector<4x256xf32>
    %670 = arith.mulf %668, %669 : vector<4x256xf32>
    %671 = arith.addf %665, %670 : vector<4x256xf32>
    %672 = vector.extract_strided_slice %660 {offsets = [0, 2], sizes = [4, 1], strides = [1, 1]} : vector<4x4xf32> to vector<4x1xf32>
    %673 = vector.extract_strided_slice %659 {offsets = [2, 0], sizes = [1, 256], strides = [1, 1]} : vector<4x256xf32> to vector<1x256xf32>
    %674 = vector.broadcast %672 : vector<4x1xf32> to vector<4x256xf32>
    %675 = vector.broadcast %673 : vector<1x256xf32> to vector<4x256xf32>
    %676 = arith.mulf %674, %675 : vector<4x256xf32>
    %677 = arith.addf %671, %676 : vector<4x256xf32>
    %678 = vector.extract_strided_slice %660 {offsets = [0, 3], sizes = [4, 1], strides = [1, 1]} : vector<4x4xf32> to vector<4x1xf32>
    %679 = vector.extract_strided_slice %659 {offsets = [3, 0], sizes = [1, 256], strides = [1, 1]} : vector<4x256xf32> to vector<1x256xf32>
    %680 = vector.broadcast %678 : vector<4x1xf32> to vector<4x256xf32>
    %681 = vector.broadcast %679 : vector<1x256xf32> to vector<4x256xf32>
    %682 = arith.mulf %680, %681 : vector<4x256xf32>
    %683 = arith.addf %677, %682 : vector<4x256xf32>
    %684 = arith.addf %656, %683 : vector<4x256xf32>
    %c0_69 = arith.constant 0 : index
    %c127_70 = arith.constant 127 : index
    %685 = vector.load %arg22[%c0_69, %c127_70] : memref<4x512xf32, #tpu.memory_space<vmem>>, vector<4x256xf32>
    %686 = vector.broadcast %2 : vector<1x256xf32> to vector<4x256xf32>
    %687 = arith.mulf %685, %686 : vector<4x256xf32>
    %688 = vector.extract_strided_slice %602 {offsets = [0, 12], sizes = [4, 4], strides = [1, 1]} : vector<4x36xf32> to vector<4x4xf32>
    %689 = vector.extract_strided_slice %688 {offsets = [0, 0], sizes = [4, 1], strides = [1, 1]} : vector<4x4xf32> to vector<4x1xf32>
    %690 = vector.extract_strided_slice %687 {offsets = [0, 0], sizes = [1, 256], strides = [1, 1]} : vector<4x256xf32> to vector<1x256xf32>
    %691 = vector.broadcast %689 : vector<4x1xf32> to vector<4x256xf32>
    %692 = vector.broadcast %690 : vector<1x256xf32> to vector<4x256xf32>
    %693 = arith.mulf %691, %692 : vector<4x256xf32>
    %694 = vector.extract_strided_slice %688 {offsets = [0, 1], sizes = [4, 1], strides = [1, 1]} : vector<4x4xf32> to vector<4x1xf32>
    %695 = vector.extract_strided_slice %687 {offsets = [1, 0], sizes = [1, 256], strides = [1, 1]} : vector<4x256xf32> to vector<1x256xf32>
    %696 = vector.broadcast %694 : vector<4x1xf32> to vector<4x256xf32>
    %697 = vector.broadcast %695 : vector<1x256xf32> to vector<4x256xf32>
    %698 = arith.mulf %696, %697 : vector<4x256xf32>
    %699 = arith.addf %693, %698 : vector<4x256xf32>
    %700 = vector.extract_strided_slice %688 {offsets = [0, 2], sizes = [4, 1], strides = [1, 1]} : vector<4x4xf32> to vector<4x1xf32>
    %701 = vector.extract_strided_slice %687 {offsets = [2, 0], sizes = [1, 256], strides = [1, 1]} : vector<4x256xf32> to vector<1x256xf32>
    %702 = vector.broadcast %700 : vector<4x1xf32> to vector<4x256xf32>
    %703 = vector.broadcast %701 : vector<1x256xf32> to vector<4x256xf32>
    %704 = arith.mulf %702, %703 : vector<4x256xf32>
    %705 = arith.addf %699, %704 : vector<4x256xf32>
    %706 = vector.extract_strided_slice %688 {offsets = [0, 3], sizes = [4, 1], strides = [1, 1]} : vector<4x4xf32> to vector<4x1xf32>
    %707 = vector.extract_strided_slice %687 {offsets = [3, 0], sizes = [1, 256], strides = [1, 1]} : vector<4x256xf32> to vector<1x256xf32>
    %708 = vector.broadcast %706 : vector<4x1xf32> to vector<4x256xf32>
    %709 = vector.broadcast %707 : vector<1x256xf32> to vector<4x256xf32>
    %710 = arith.mulf %708, %709 : vector<4x256xf32>
    %711 = arith.addf %705, %710 : vector<4x256xf32>
    %712 = arith.addf %684, %711 : vector<4x256xf32>
    %713 = vector.extract_strided_slice %602 {offsets = [0, 16], sizes = [4, 4], strides = [1, 1]} : vector<4x36xf32> to vector<4x4xf32>
    %714 = vector.extract_strided_slice %713 {offsets = [0, 0], sizes = [4, 1], strides = [1, 1]} : vector<4x4xf32> to vector<4x1xf32>
    %715 = vector.extract_strided_slice %571 {offsets = [0, 0], sizes = [1, 256], strides = [1, 1]} : vector<4x256xf32> to vector<1x256xf32>
    %716 = vector.broadcast %714 : vector<4x1xf32> to vector<4x256xf32>
    %717 = vector.broadcast %715 : vector<1x256xf32> to vector<4x256xf32>
    %718 = arith.mulf %716, %717 : vector<4x256xf32>
    %719 = vector.extract_strided_slice %713 {offsets = [0, 1], sizes = [4, 1], strides = [1, 1]} : vector<4x4xf32> to vector<4x1xf32>
    %720 = vector.extract_strided_slice %571 {offsets = [1, 0], sizes = [1, 256], strides = [1, 1]} : vector<4x256xf32> to vector<1x256xf32>
    %721 = vector.broadcast %719 : vector<4x1xf32> to vector<4x256xf32>
    %722 = vector.broadcast %720 : vector<1x256xf32> to vector<4x256xf32>
    %723 = arith.mulf %721, %722 : vector<4x256xf32>
    %724 = arith.addf %718, %723 : vector<4x256xf32>
    %725 = vector.extract_strided_slice %713 {offsets = [0, 2], sizes = [4, 1], strides = [1, 1]} : vector<4x4xf32> to vector<4x1xf32>
    %726 = vector.extract_strided_slice %571 {offsets = [2, 0], sizes = [1, 256], strides = [1, 1]} : vector<4x256xf32> to vector<1x256xf32>
    %727 = vector.broadcast %725 : vector<4x1xf32> to vector<4x256xf32>
    %728 = vector.broadcast %726 : vector<1x256xf32> to vector<4x256xf32>
    %729 = arith.mulf %727, %728 : vector<4x256xf32>
    %730 = arith.addf %724, %729 : vector<4x256xf32>
    %731 = vector.extract_strided_slice %713 {offsets = [0, 3], sizes = [4, 1], strides = [1, 1]} : vector<4x4xf32> to vector<4x1xf32>
    %732 = vector.extract_strided_slice %571 {offsets = [3, 0], sizes = [1, 256], strides = [1, 1]} : vector<4x256xf32> to vector<1x256xf32>
    %733 = vector.broadcast %731 : vector<4x1xf32> to vector<4x256xf32>
    %734 = vector.broadcast %732 : vector<1x256xf32> to vector<4x256xf32>
    %735 = arith.mulf %733, %734 : vector<4x256xf32>
    %736 = arith.addf %730, %735 : vector<4x256xf32>
    %737 = arith.addf %712, %736 : vector<4x256xf32>
    %c0_71 = arith.constant 0 : index
    %c129_72 = arith.constant 129 : index
    %738 = vector.load %arg22[%c0_71, %c129_72] : memref<4x512xf32, #tpu.memory_space<vmem>>, vector<4x256xf32>
    %739 = vector.broadcast %3 : vector<1x256xf32> to vector<4x256xf32>
    %740 = arith.mulf %738, %739 : vector<4x256xf32>
    %741 = vector.extract_strided_slice %602 {offsets = [0, 20], sizes = [4, 4], strides = [1, 1]} : vector<4x36xf32> to vector<4x4xf32>
    %742 = vector.extract_strided_slice %741 {offsets = [0, 0], sizes = [4, 1], strides = [1, 1]} : vector<4x4xf32> to vector<4x1xf32>
    %743 = vector.extract_strided_slice %740 {offsets = [0, 0], sizes = [1, 256], strides = [1, 1]} : vector<4x256xf32> to vector<1x256xf32>
    %744 = vector.broadcast %742 : vector<4x1xf32> to vector<4x256xf32>
    %745 = vector.broadcast %743 : vector<1x256xf32> to vector<4x256xf32>
    %746 = arith.mulf %744, %745 : vector<4x256xf32>
    %747 = vector.extract_strided_slice %741 {offsets = [0, 1], sizes = [4, 1], strides = [1, 1]} : vector<4x4xf32> to vector<4x1xf32>
    %748 = vector.extract_strided_slice %740 {offsets = [1, 0], sizes = [1, 256], strides = [1, 1]} : vector<4x256xf32> to vector<1x256xf32>
    %749 = vector.broadcast %747 : vector<4x1xf32> to vector<4x256xf32>
    %750 = vector.broadcast %748 : vector<1x256xf32> to vector<4x256xf32>
    %751 = arith.mulf %749, %750 : vector<4x256xf32>
    %752 = arith.addf %746, %751 : vector<4x256xf32>
    %753 = vector.extract_strided_slice %741 {offsets = [0, 2], sizes = [4, 1], strides = [1, 1]} : vector<4x4xf32> to vector<4x1xf32>
    %754 = vector.extract_strided_slice %740 {offsets = [2, 0], sizes = [1, 256], strides = [1, 1]} : vector<4x256xf32> to vector<1x256xf32>
    %755 = vector.broadcast %753 : vector<4x1xf32> to vector<4x256xf32>
    %756 = vector.broadcast %754 : vector<1x256xf32> to vector<4x256xf32>
    %757 = arith.mulf %755, %756 : vector<4x256xf32>
    %758 = arith.addf %752, %757 : vector<4x256xf32>
    %759 = vector.extract_strided_slice %741 {offsets = [0, 3], sizes = [4, 1], strides = [1, 1]} : vector<4x4xf32> to vector<4x1xf32>
    %760 = vector.extract_strided_slice %740 {offsets = [3, 0], sizes = [1, 256], strides = [1, 1]} : vector<4x256xf32> to vector<1x256xf32>
    %761 = vector.broadcast %759 : vector<4x1xf32> to vector<4x256xf32>
    %762 = vector.broadcast %760 : vector<1x256xf32> to vector<4x256xf32>
    %763 = arith.mulf %761, %762 : vector<4x256xf32>
    %764 = arith.addf %758, %763 : vector<4x256xf32>
    %765 = arith.addf %737, %764 : vector<4x256xf32>
    %c0_73 = arith.constant 0 : index
    %c143_74 = arith.constant 143 : index
    %766 = vector.load %arg22[%c0_73, %c143_74] : memref<4x512xf32, #tpu.memory_space<vmem>>, vector<4x256xf32>
    %767 = vector.broadcast %2 : vector<1x256xf32> to vector<4x256xf32>
    %768 = arith.mulf %766, %767 : vector<4x256xf32>
    %769 = vector.extract_strided_slice %602 {offsets = [0, 24], sizes = [4, 4], strides = [1, 1]} : vector<4x36xf32> to vector<4x4xf32>
    %770 = vector.extract_strided_slice %769 {offsets = [0, 0], sizes = [4, 1], strides = [1, 1]} : vector<4x4xf32> to vector<4x1xf32>
    %771 = vector.extract_strided_slice %768 {offsets = [0, 0], sizes = [1, 256], strides = [1, 1]} : vector<4x256xf32> to vector<1x256xf32>
    %772 = vector.broadcast %770 : vector<4x1xf32> to vector<4x256xf32>
    %773 = vector.broadcast %771 : vector<1x256xf32> to vector<4x256xf32>
    %774 = arith.mulf %772, %773 : vector<4x256xf32>
    %775 = vector.extract_strided_slice %769 {offsets = [0, 1], sizes = [4, 1], strides = [1, 1]} : vector<4x4xf32> to vector<4x1xf32>
    %776 = vector.extract_strided_slice %768 {offsets = [1, 0], sizes = [1, 256], strides = [1, 1]} : vector<4x256xf32> to vector<1x256xf32>
    %777 = vector.broadcast %775 : vector<4x1xf32> to vector<4x256xf32>
    %778 = vector.broadcast %776 : vector<1x256xf32> to vector<4x256xf32>
    %779 = arith.mulf %777, %778 : vector<4x256xf32>
    %780 = arith.addf %774, %779 : vector<4x256xf32>
    %781 = vector.extract_strided_slice %769 {offsets = [0, 2], sizes = [4, 1], strides = [1, 1]} : vector<4x4xf32> to vector<4x1xf32>
    %782 = vector.extract_strided_slice %768 {offsets = [2, 0], sizes = [1, 256], strides = [1, 1]} : vector<4x256xf32> to vector<1x256xf32>
    %783 = vector.broadcast %781 : vector<4x1xf32> to vector<4x256xf32>
    %784 = vector.broadcast %782 : vector<1x256xf32> to vector<4x256xf32>
    %785 = arith.mulf %783, %784 : vector<4x256xf32>
    %786 = arith.addf %780, %785 : vector<4x256xf32>
    %787 = vector.extract_strided_slice %769 {offsets = [0, 3], sizes = [4, 1], strides = [1, 1]} : vector<4x4xf32> to vector<4x1xf32>
    %788 = vector.extract_strided_slice %768 {offsets = [3, 0], sizes = [1, 256], strides = [1, 1]} : vector<4x256xf32> to vector<1x256xf32>
    %789 = vector.broadcast %787 : vector<4x1xf32> to vector<4x256xf32>
    %790 = vector.broadcast %788 : vector<1x256xf32> to vector<4x256xf32>
    %791 = arith.mulf %789, %790 : vector<4x256xf32>
    %792 = arith.addf %786, %791 : vector<4x256xf32>
    %793 = arith.addf %765, %792 : vector<4x256xf32>
    %c0_75 = arith.constant 0 : index
    %c144_76 = arith.constant 144 : index
    %794 = vector.load %arg22[%c0_75, %c144_76] : memref<4x512xf32, #tpu.memory_space<vmem>>, vector<4x256xf32>
    %795 = vector.extract_strided_slice %602 {offsets = [0, 28], sizes = [4, 4], strides = [1, 1]} : vector<4x36xf32> to vector<4x4xf32>
    %796 = vector.extract_strided_slice %795 {offsets = [0, 0], sizes = [4, 1], strides = [1, 1]} : vector<4x4xf32> to vector<4x1xf32>
    %797 = vector.extract_strided_slice %794 {offsets = [0, 0], sizes = [1, 256], strides = [1, 1]} : vector<4x256xf32> to vector<1x256xf32>
    %798 = vector.broadcast %796 : vector<4x1xf32> to vector<4x256xf32>
    %799 = vector.broadcast %797 : vector<1x256xf32> to vector<4x256xf32>
    %800 = arith.mulf %798, %799 : vector<4x256xf32>
    %801 = vector.extract_strided_slice %795 {offsets = [0, 1], sizes = [4, 1], strides = [1, 1]} : vector<4x4xf32> to vector<4x1xf32>
    %802 = vector.extract_strided_slice %794 {offsets = [1, 0], sizes = [1, 256], strides = [1, 1]} : vector<4x256xf32> to vector<1x256xf32>
    %803 = vector.broadcast %801 : vector<4x1xf32> to vector<4x256xf32>
    %804 = vector.broadcast %802 : vector<1x256xf32> to vector<4x256xf32>
    %805 = arith.mulf %803, %804 : vector<4x256xf32>
    %806 = arith.addf %800, %805 : vector<4x256xf32>
    %807 = vector.extract_strided_slice %795 {offsets = [0, 2], sizes = [4, 1], strides = [1, 1]} : vector<4x4xf32> to vector<4x1xf32>
    %808 = vector.extract_strided_slice %794 {offsets = [2, 0], sizes = [1, 256], strides = [1, 1]} : vector<4x256xf32> to vector<1x256xf32>
    %809 = vector.broadcast %807 : vector<4x1xf32> to vector<4x256xf32>
    %810 = vector.broadcast %808 : vector<1x256xf32> to vector<4x256xf32>
    %811 = arith.mulf %809, %810 : vector<4x256xf32>
    %812 = arith.addf %806, %811 : vector<4x256xf32>
    %813 = vector.extract_strided_slice %795 {offsets = [0, 3], sizes = [4, 1], strides = [1, 1]} : vector<4x4xf32> to vector<4x1xf32>
    %814 = vector.extract_strided_slice %794 {offsets = [3, 0], sizes = [1, 256], strides = [1, 1]} : vector<4x256xf32> to vector<1x256xf32>
    %815 = vector.broadcast %813 : vector<4x1xf32> to vector<4x256xf32>
    %816 = vector.broadcast %814 : vector<1x256xf32> to vector<4x256xf32>
    %817 = arith.mulf %815, %816 : vector<4x256xf32>
    %818 = arith.addf %812, %817 : vector<4x256xf32>
    %819 = arith.addf %793, %818 : vector<4x256xf32>
    %c0_77 = arith.constant 0 : index
    %c145_78 = arith.constant 145 : index
    %820 = vector.load %arg22[%c0_77, %c145_78] : memref<4x512xf32, #tpu.memory_space<vmem>>, vector<4x256xf32>
    %821 = vector.broadcast %3 : vector<1x256xf32> to vector<4x256xf32>
    %822 = arith.mulf %820, %821 : vector<4x256xf32>
    %823 = vector.extract_strided_slice %602 {offsets = [0, 32], sizes = [4, 4], strides = [1, 1]} : vector<4x36xf32> to vector<4x4xf32>
    %824 = vector.extract_strided_slice %823 {offsets = [0, 0], sizes = [4, 1], strides = [1, 1]} : vector<4x4xf32> to vector<4x1xf32>
    %825 = vector.extract_strided_slice %822 {offsets = [0, 0], sizes = [1, 256], strides = [1, 1]} : vector<4x256xf32> to vector<1x256xf32>
    %826 = vector.broadcast %824 : vector<4x1xf32> to vector<4x256xf32>
    %827 = vector.broadcast %825 : vector<1x256xf32> to vector<4x256xf32>
    %828 = arith.mulf %826, %827 : vector<4x256xf32>
    %829 = vector.extract_strided_slice %823 {offsets = [0, 1], sizes = [4, 1], strides = [1, 1]} : vector<4x4xf32> to vector<4x1xf32>
    %830 = vector.extract_strided_slice %822 {offsets = [1, 0], sizes = [1, 256], strides = [1, 1]} : vector<4x256xf32> to vector<1x256xf32>
    %831 = vector.broadcast %829 : vector<4x1xf32> to vector<4x256xf32>
    %832 = vector.broadcast %830 : vector<1x256xf32> to vector<4x256xf32>
    %833 = arith.mulf %831, %832 : vector<4x256xf32>
    %834 = arith.addf %828, %833 : vector<4x256xf32>
    %835 = vector.extract_strided_slice %823 {offsets = [0, 2], sizes = [4, 1], strides = [1, 1]} : vector<4x4xf32> to vector<4x1xf32>
    %836 = vector.extract_strided_slice %822 {offsets = [2, 0], sizes = [1, 256], strides = [1, 1]} : vector<4x256xf32> to vector<1x256xf32>
    %837 = vector.broadcast %835 : vector<4x1xf32> to vector<4x256xf32>
    %838 = vector.broadcast %836 : vector<1x256xf32> to vector<4x256xf32>
    %839 = arith.mulf %837, %838 : vector<4x256xf32>
    %840 = arith.addf %834, %839 : vector<4x256xf32>
    %841 = vector.extract_strided_slice %823 {offsets = [0, 3], sizes = [4, 1], strides = [1, 1]} : vector<4x4xf32> to vector<4x1xf32>
    %842 = vector.extract_strided_slice %822 {offsets = [3, 0], sizes = [1, 256], strides = [1, 1]} : vector<4x256xf32> to vector<1x256xf32>
    %843 = vector.broadcast %841 : vector<4x1xf32> to vector<4x256xf32>
    %844 = vector.broadcast %842 : vector<1x256xf32> to vector<4x256xf32>
    %845 = arith.mulf %843, %844 : vector<4x256xf32>
    %846 = arith.addf %840, %845 : vector<4x256xf32>
    %847 = arith.addf %819, %846 : vector<4x256xf32>
    %c0_79 = arith.constant 0 : index
    %c0_80 = arith.constant 0 : index
    %848 = vector.load %arg14[%c0_79, %c0_80] : memref<4x1xf32, #tpu.memory_space<vmem>>, vector<4x1xf32>
    %849 = vector.broadcast %848 : vector<4x1xf32> to vector<4x256xf32>
    %850 = arith.addf %847, %849 : vector<4x256xf32>
    %851 = arith.addf %850, %571 : vector<4x256xf32>
    %cst_81 = arith.constant 2.000000e-01 : f32
    %852 = vector.broadcast %cst_81 : f32 to vector<4x256xf32>
    %853 = arith.mulf %852, %851 : vector<4x256xf32>
    %854 = arith.maximumf %851, %853 : vector<4x256xf32>
    %c0_82 = arith.constant 0 : index
    %c0_83 = arith.constant 0 : index
    %855 = vector.load %arg15[%c0_82, %c0_83] : memref<4x36xf32, #tpu.memory_space<vmem>>, vector<4x36xf32>
    %c0_84 = arith.constant 0 : index
    %c128_85 = arith.constant 128 : index
    %856 = vector.load %arg22[%c0_84, %c128_85] : memref<4x512xf32, #tpu.memory_space<vmem>>, vector<4x256xf32>
    tpu.vector_store %arg22[%c0_84, %c128_85], %854 {strides = array<i32>} : memref<4x512xf32, #tpu.memory_space<vmem>>, vector<4x256xf32>,
    %c0_86 = arith.constant 0 : index
    %c111_87 = arith.constant 111 : index
    %857 = vector.load %arg22[%c0_86, %c111_87] : memref<4x512xf32, #tpu.memory_space<vmem>>, vector<4x256xf32>
    %858 = vector.broadcast %2 : vector<1x256xf32> to vector<4x256xf32>
    %859 = arith.mulf %857, %858 : vector<4x256xf32>
    %860 = vector.extract_strided_slice %855 {offsets = [0, 0], sizes = [4, 4], strides = [1, 1]} : vector<4x36xf32> to vector<4x4xf32>
    %861 = vector.extract_strided_slice %860 {offsets = [0, 0], sizes = [4, 1], strides = [1, 1]} : vector<4x4xf32> to vector<4x1xf32>
    %862 = vector.extract_strided_slice %859 {offsets = [0, 0], sizes = [1, 256], strides = [1, 1]} : vector<4x256xf32> to vector<1x256xf32>
    %863 = vector.broadcast %861 : vector<4x1xf32> to vector<4x256xf32>
    %864 = vector.broadcast %862 : vector<1x256xf32> to vector<4x256xf32>
    %865 = arith.mulf %863, %864 : vector<4x256xf32>
    %866 = vector.extract_strided_slice %860 {offsets = [0, 1], sizes = [4, 1], strides = [1, 1]} : vector<4x4xf32> to vector<4x1xf32>
    %867 = vector.extract_strided_slice %859 {offsets = [1, 0], sizes = [1, 256], strides = [1, 1]} : vector<4x256xf32> to vector<1x256xf32>
    %868 = vector.broadcast %866 : vector<4x1xf32> to vector<4x256xf32>
    %869 = vector.broadcast %867 : vector<1x256xf32> to vector<4x256xf32>
    %870 = arith.mulf %868, %869 : vector<4x256xf32>
    %871 = arith.addf %865, %870 : vector<4x256xf32>
    %872 = vector.extract_strided_slice %860 {offsets = [0, 2], sizes = [4, 1], strides = [1, 1]} : vector<4x4xf32> to vector<4x1xf32>
    %873 = vector.extract_strided_slice %859 {offsets = [2, 0], sizes = [1, 256], strides = [1, 1]} : vector<4x256xf32> to vector<1x256xf32>
    %874 = vector.broadcast %872 : vector<4x1xf32> to vector<4x256xf32>
    %875 = vector.broadcast %873 : vector<1x256xf32> to vector<4x256xf32>
    %876 = arith.mulf %874, %875 : vector<4x256xf32>
    %877 = arith.addf %871, %876 : vector<4x256xf32>
    %878 = vector.extract_strided_slice %860 {offsets = [0, 3], sizes = [4, 1], strides = [1, 1]} : vector<4x4xf32> to vector<4x1xf32>
    %879 = vector.extract_strided_slice %859 {offsets = [3, 0], sizes = [1, 256], strides = [1, 1]} : vector<4x256xf32> to vector<1x256xf32>
    %880 = vector.broadcast %878 : vector<4x1xf32> to vector<4x256xf32>
    %881 = vector.broadcast %879 : vector<1x256xf32> to vector<4x256xf32>
    %882 = arith.mulf %880, %881 : vector<4x256xf32>
    %883 = arith.addf %877, %882 : vector<4x256xf32>
    %c0_88 = arith.constant 0 : index
    %c112_89 = arith.constant 112 : index
    %884 = vector.load %arg22[%c0_88, %c112_89] : memref<4x512xf32, #tpu.memory_space<vmem>>, vector<4x256xf32>
    %885 = vector.extract_strided_slice %855 {offsets = [0, 4], sizes = [4, 4], strides = [1, 1]} : vector<4x36xf32> to vector<4x4xf32>
    %886 = vector.extract_strided_slice %885 {offsets = [0, 0], sizes = [4, 1], strides = [1, 1]} : vector<4x4xf32> to vector<4x1xf32>
    %887 = vector.extract_strided_slice %884 {offsets = [0, 0], sizes = [1, 256], strides = [1, 1]} : vector<4x256xf32> to vector<1x256xf32>
    %888 = vector.broadcast %886 : vector<4x1xf32> to vector<4x256xf32>
    %889 = vector.broadcast %887 : vector<1x256xf32> to vector<4x256xf32>
    %890 = arith.mulf %888, %889 : vector<4x256xf32>
    %891 = vector.extract_strided_slice %885 {offsets = [0, 1], sizes = [4, 1], strides = [1, 1]} : vector<4x4xf32> to vector<4x1xf32>
    %892 = vector.extract_strided_slice %884 {offsets = [1, 0], sizes = [1, 256], strides = [1, 1]} : vector<4x256xf32> to vector<1x256xf32>
    %893 = vector.broadcast %891 : vector<4x1xf32> to vector<4x256xf32>
    %894 = vector.broadcast %892 : vector<1x256xf32> to vector<4x256xf32>
    %895 = arith.mulf %893, %894 : vector<4x256xf32>
    %896 = arith.addf %890, %895 : vector<4x256xf32>
    %897 = vector.extract_strided_slice %885 {offsets = [0, 2], sizes = [4, 1], strides = [1, 1]} : vector<4x4xf32> to vector<4x1xf32>
    %898 = vector.extract_strided_slice %884 {offsets = [2, 0], sizes = [1, 256], strides = [1, 1]} : vector<4x256xf32> to vector<1x256xf32>
    %899 = vector.broadcast %897 : vector<4x1xf32> to vector<4x256xf32>
    %900 = vector.broadcast %898 : vector<1x256xf32> to vector<4x256xf32>
    %901 = arith.mulf %899, %900 : vector<4x256xf32>
    %902 = arith.addf %896, %901 : vector<4x256xf32>
    %903 = vector.extract_strided_slice %885 {offsets = [0, 3], sizes = [4, 1], strides = [1, 1]} : vector<4x4xf32> to vector<4x1xf32>
    %904 = vector.extract_strided_slice %884 {offsets = [3, 0], sizes = [1, 256], strides = [1, 1]} : vector<4x256xf32> to vector<1x256xf32>
    %905 = vector.broadcast %903 : vector<4x1xf32> to vector<4x256xf32>
    %906 = vector.broadcast %904 : vector<1x256xf32> to vector<4x256xf32>
    %907 = arith.mulf %905, %906 : vector<4x256xf32>
    %908 = arith.addf %902, %907 : vector<4x256xf32>
    %909 = arith.addf %883, %908 : vector<4x256xf32>
    %c0_90 = arith.constant 0 : index
    %c113_91 = arith.constant 113 : index
    %910 = vector.load %arg22[%c0_90, %c113_91] : memref<4x512xf32, #tpu.memory_space<vmem>>, vector<4x256xf32>
    %911 = vector.broadcast %3 : vector<1x256xf32> to vector<4x256xf32>
    %912 = arith.mulf %910, %911 : vector<4x256xf32>
    %913 = vector.extract_strided_slice %855 {offsets = [0, 8], sizes = [4, 4], strides = [1, 1]} : vector<4x36xf32> to vector<4x4xf32>
    %914 = vector.extract_strided_slice %913 {offsets = [0, 0], sizes = [4, 1], strides = [1, 1]} : vector<4x4xf32> to vector<4x1xf32>
    %915 = vector.extract_strided_slice %912 {offsets = [0, 0], sizes = [1, 256], strides = [1, 1]} : vector<4x256xf32> to vector<1x256xf32>
    %916 = vector.broadcast %914 : vector<4x1xf32> to vector<4x256xf32>
    %917 = vector.broadcast %915 : vector<1x256xf32> to vector<4x256xf32>
    %918 = arith.mulf %916, %917 : vector<4x256xf32>
    %919 = vector.extract_strided_slice %913 {offsets = [0, 1], sizes = [4, 1], strides = [1, 1]} : vector<4x4xf32> to vector<4x1xf32>
    %920 = vector.extract_strided_slice %912 {offsets = [1, 0], sizes = [1, 256], strides = [1, 1]} : vector<4x256xf32> to vector<1x256xf32>
    %921 = vector.broadcast %919 : vector<4x1xf32> to vector<4x256xf32>
    %922 = vector.broadcast %920 : vector<1x256xf32> to vector<4x256xf32>
    %923 = arith.mulf %921, %922 : vector<4x256xf32>
    %924 = arith.addf %918, %923 : vector<4x256xf32>
    %925 = vector.extract_strided_slice %913 {offsets = [0, 2], sizes = [4, 1], strides = [1, 1]} : vector<4x4xf32> to vector<4x1xf32>
    %926 = vector.extract_strided_slice %912 {offsets = [2, 0], sizes = [1, 256], strides = [1, 1]} : vector<4x256xf32> to vector<1x256xf32>
    %927 = vector.broadcast %925 : vector<4x1xf32> to vector<4x256xf32>
    %928 = vector.broadcast %926 : vector<1x256xf32> to vector<4x256xf32>
    %929 = arith.mulf %927, %928 : vector<4x256xf32>
    %930 = arith.addf %924, %929 : vector<4x256xf32>
    %931 = vector.extract_strided_slice %913 {offsets = [0, 3], sizes = [4, 1], strides = [1, 1]} : vector<4x4xf32> to vector<4x1xf32>
    %932 = vector.extract_strided_slice %912 {offsets = [3, 0], sizes = [1, 256], strides = [1, 1]} : vector<4x256xf32> to vector<1x256xf32>
    %933 = vector.broadcast %931 : vector<4x1xf32> to vector<4x256xf32>
    %934 = vector.broadcast %932 : vector<1x256xf32> to vector<4x256xf32>
    %935 = arith.mulf %933, %934 : vector<4x256xf32>
    %936 = arith.addf %930, %935 : vector<4x256xf32>
    %937 = arith.addf %909, %936 : vector<4x256xf32>
    %c0_92 = arith.constant 0 : index
    %c127_93 = arith.constant 127 : index
    %938 = vector.load %arg22[%c0_92, %c127_93] : memref<4x512xf32, #tpu.memory_space<vmem>>, vector<4x256xf32>
    %939 = vector.broadcast %2 : vector<1x256xf32> to vector<4x256xf32>
    %940 = arith.mulf %938, %939 : vector<4x256xf32>
    %941 = vector.extract_strided_slice %855 {offsets = [0, 12], sizes = [4, 4], strides = [1, 1]} : vector<4x36xf32> to vector<4x4xf32>
    %942 = vector.extract_strided_slice %941 {offsets = [0, 0], sizes = [4, 1], strides = [1, 1]} : vector<4x4xf32> to vector<4x1xf32>
    %943 = vector.extract_strided_slice %940 {offsets = [0, 0], sizes = [1, 256], strides = [1, 1]} : vector<4x256xf32> to vector<1x256xf32>
    %944 = vector.broadcast %942 : vector<4x1xf32> to vector<4x256xf32>
    %945 = vector.broadcast %943 : vector<1x256xf32> to vector<4x256xf32>
    %946 = arith.mulf %944, %945 : vector<4x256xf32>
    %947 = vector.extract_strided_slice %941 {offsets = [0, 1], sizes = [4, 1], strides = [1, 1]} : vector<4x4xf32> to vector<4x1xf32>
    %948 = vector.extract_strided_slice %940 {offsets = [1, 0], sizes = [1, 256], strides = [1, 1]} : vector<4x256xf32> to vector<1x256xf32>
    %949 = vector.broadcast %947 : vector<4x1xf32> to vector<4x256xf32>
    %950 = vector.broadcast %948 : vector<1x256xf32> to vector<4x256xf32>
    %951 = arith.mulf %949, %950 : vector<4x256xf32>
    %952 = arith.addf %946, %951 : vector<4x256xf32>
    %953 = vector.extract_strided_slice %941 {offsets = [0, 2], sizes = [4, 1], strides = [1, 1]} : vector<4x4xf32> to vector<4x1xf32>
    %954 = vector.extract_strided_slice %940 {offsets = [2, 0], sizes = [1, 256], strides = [1, 1]} : vector<4x256xf32> to vector<1x256xf32>
    %955 = vector.broadcast %953 : vector<4x1xf32> to vector<4x256xf32>
    %956 = vector.broadcast %954 : vector<1x256xf32> to vector<4x256xf32>
    %957 = arith.mulf %955, %956 : vector<4x256xf32>
    %958 = arith.addf %952, %957 : vector<4x256xf32>
    %959 = vector.extract_strided_slice %941 {offsets = [0, 3], sizes = [4, 1], strides = [1, 1]} : vector<4x4xf32> to vector<4x1xf32>
    %960 = vector.extract_strided_slice %940 {offsets = [3, 0], sizes = [1, 256], strides = [1, 1]} : vector<4x256xf32> to vector<1x256xf32>
    %961 = vector.broadcast %959 : vector<4x1xf32> to vector<4x256xf32>
    %962 = vector.broadcast %960 : vector<1x256xf32> to vector<4x256xf32>
    %963 = arith.mulf %961, %962 : vector<4x256xf32>
    %964 = arith.addf %958, %963 : vector<4x256xf32>
    %965 = arith.addf %937, %964 : vector<4x256xf32>
    %966 = vector.extract_strided_slice %855 {offsets = [0, 16], sizes = [4, 4], strides = [1, 1]} : vector<4x36xf32> to vector<4x4xf32>
    %967 = vector.extract_strided_slice %966 {offsets = [0, 0], sizes = [4, 1], strides = [1, 1]} : vector<4x4xf32> to vector<4x1xf32>
    %968 = vector.extract_strided_slice %854 {offsets = [0, 0], sizes = [1, 256], strides = [1, 1]} : vector<4x256xf32> to vector<1x256xf32>
    %969 = vector.broadcast %967 : vector<4x1xf32> to vector<4x256xf32>
    %970 = vector.broadcast %968 : vector<1x256xf32> to vector<4x256xf32>
    %971 = arith.mulf %969, %970 : vector<4x256xf32>
    %972 = vector.extract_strided_slice %966 {offsets = [0, 1], sizes = [4, 1], strides = [1, 1]} : vector<4x4xf32> to vector<4x1xf32>
    %973 = vector.extract_strided_slice %854 {offsets = [1, 0], sizes = [1, 256], strides = [1, 1]} : vector<4x256xf32> to vector<1x256xf32>
    %974 = vector.broadcast %972 : vector<4x1xf32> to vector<4x256xf32>
    %975 = vector.broadcast %973 : vector<1x256xf32> to vector<4x256xf32>
    %976 = arith.mulf %974, %975 : vector<4x256xf32>
    %977 = arith.addf %971, %976 : vector<4x256xf32>
    %978 = vector.extract_strided_slice %966 {offsets = [0, 2], sizes = [4, 1], strides = [1, 1]} : vector<4x4xf32> to vector<4x1xf32>
    %979 = vector.extract_strided_slice %854 {offsets = [2, 0], sizes = [1, 256], strides = [1, 1]} : vector<4x256xf32> to vector<1x256xf32>
    %980 = vector.broadcast %978 : vector<4x1xf32> to vector<4x256xf32>
    %981 = vector.broadcast %979 : vector<1x256xf32> to vector<4x256xf32>
    %982 = arith.mulf %980, %981 : vector<4x256xf32>
    %983 = arith.addf %977, %982 : vector<4x256xf32>
    %984 = vector.extract_strided_slice %966 {offsets = [0, 3], sizes = [4, 1], strides = [1, 1]} : vector<4x4xf32> to vector<4x1xf32>
    %985 = vector.extract_strided_slice %854 {offsets = [3, 0], sizes = [1, 256], strides = [1, 1]} : vector<4x256xf32> to vector<1x256xf32>
    %986 = vector.broadcast %984 : vector<4x1xf32> to vector<4x256xf32>
    %987 = vector.broadcast %985 : vector<1x256xf32> to vector<4x256xf32>
    %988 = arith.mulf %986, %987 : vector<4x256xf32>
    %989 = arith.addf %983, %988 : vector<4x256xf32>
    %990 = arith.addf %965, %989 : vector<4x256xf32>
    %c0_94 = arith.constant 0 : index
    %c129_95 = arith.constant 129 : index
    %991 = vector.load %arg22[%c0_94, %c129_95] : memref<4x512xf32, #tpu.memory_space<vmem>>, vector<4x256xf32>
    %992 = vector.broadcast %3 : vector<1x256xf32> to vector<4x256xf32>
    %993 = arith.mulf %991, %992 : vector<4x256xf32>
    %994 = vector.extract_strided_slice %855 {offsets = [0, 20], sizes = [4, 4], strides = [1, 1]} : vector<4x36xf32> to vector<4x4xf32>
    %995 = vector.extract_strided_slice %994 {offsets = [0, 0], sizes = [4, 1], strides = [1, 1]} : vector<4x4xf32> to vector<4x1xf32>
    %996 = vector.extract_strided_slice %993 {offsets = [0, 0], sizes = [1, 256], strides = [1, 1]} : vector<4x256xf32> to vector<1x256xf32>
    %997 = vector.broadcast %995 : vector<4x1xf32> to vector<4x256xf32>
    %998 = vector.broadcast %996 : vector<1x256xf32> to vector<4x256xf32>
    %999 = arith.mulf %997, %998 : vector<4x256xf32>
    %1000 = vector.extract_strided_slice %994 {offsets = [0, 1], sizes = [4, 1], strides = [1, 1]} : vector<4x4xf32> to vector<4x1xf32>
    %1001 = vector.extract_strided_slice %993 {offsets = [1, 0], sizes = [1, 256], strides = [1, 1]} : vector<4x256xf32> to vector<1x256xf32>
    %1002 = vector.broadcast %1000 : vector<4x1xf32> to vector<4x256xf32>
    %1003 = vector.broadcast %1001 : vector<1x256xf32> to vector<4x256xf32>
    %1004 = arith.mulf %1002, %1003 : vector<4x256xf32>
    %1005 = arith.addf %999, %1004 : vector<4x256xf32>
    %1006 = vector.extract_strided_slice %994 {offsets = [0, 2], sizes = [4, 1], strides = [1, 1]} : vector<4x4xf32> to vector<4x1xf32>
    %1007 = vector.extract_strided_slice %993 {offsets = [2, 0], sizes = [1, 256], strides = [1, 1]} : vector<4x256xf32> to vector<1x256xf32>
    %1008 = vector.broadcast %1006 : vector<4x1xf32> to vector<4x256xf32>
    %1009 = vector.broadcast %1007 : vector<1x256xf32> to vector<4x256xf32>
    %1010 = arith.mulf %1008, %1009 : vector<4x256xf32>
    %1011 = arith.addf %1005, %1010 : vector<4x256xf32>
    %1012 = vector.extract_strided_slice %994 {offsets = [0, 3], sizes = [4, 1], strides = [1, 1]} : vector<4x4xf32> to vector<4x1xf32>
    %1013 = vector.extract_strided_slice %993 {offsets = [3, 0], sizes = [1, 256], strides = [1, 1]} : vector<4x256xf32> to vector<1x256xf32>
    %1014 = vector.broadcast %1012 : vector<4x1xf32> to vector<4x256xf32>
    %1015 = vector.broadcast %1013 : vector<1x256xf32> to vector<4x256xf32>
    %1016 = arith.mulf %1014, %1015 : vector<4x256xf32>
    %1017 = arith.addf %1011, %1016 : vector<4x256xf32>
    %1018 = arith.addf %990, %1017 : vector<4x256xf32>
    %c0_96 = arith.constant 0 : index
    %c143_97 = arith.constant 143 : index
    %1019 = vector.load %arg22[%c0_96, %c143_97] : memref<4x512xf32, #tpu.memory_space<vmem>>, vector<4x256xf32>
    %1020 = vector.broadcast %2 : vector<1x256xf32> to vector<4x256xf32>
    %1021 = arith.mulf %1019, %1020 : vector<4x256xf32>
    %1022 = vector.extract_strided_slice %855 {offsets = [0, 24], sizes = [4, 4], strides = [1, 1]} : vector<4x36xf32> to vector<4x4xf32>
    %1023 = vector.extract_strided_slice %1022 {offsets = [0, 0], sizes = [4, 1], strides = [1, 1]} : vector<4x4xf32> to vector<4x1xf32>
    %1024 = vector.extract_strided_slice %1021 {offsets = [0, 0], sizes = [1, 256], strides = [1, 1]} : vector<4x256xf32> to vector<1x256xf32>
    %1025 = vector.broadcast %1023 : vector<4x1xf32> to vector<4x256xf32>
    %1026 = vector.broadcast %1024 : vector<1x256xf32> to vector<4x256xf32>
    %1027 = arith.mulf %1025, %1026 : vector<4x256xf32>
    %1028 = vector.extract_strided_slice %1022 {offsets = [0, 1], sizes = [4, 1], strides = [1, 1]} : vector<4x4xf32> to vector<4x1xf32>
    %1029 = vector.extract_strided_slice %1021 {offsets = [1, 0], sizes = [1, 256], strides = [1, 1]} : vector<4x256xf32> to vector<1x256xf32>
    %1030 = vector.broadcast %1028 : vector<4x1xf32> to vector<4x256xf32>
    %1031 = vector.broadcast %1029 : vector<1x256xf32> to vector<4x256xf32>
    %1032 = arith.mulf %1030, %1031 : vector<4x256xf32>
    %1033 = arith.addf %1027, %1032 : vector<4x256xf32>
    %1034 = vector.extract_strided_slice %1022 {offsets = [0, 2], sizes = [4, 1], strides = [1, 1]} : vector<4x4xf32> to vector<4x1xf32>
    %1035 = vector.extract_strided_slice %1021 {offsets = [2, 0], sizes = [1, 256], strides = [1, 1]} : vector<4x256xf32> to vector<1x256xf32>
    %1036 = vector.broadcast %1034 : vector<4x1xf32> to vector<4x256xf32>
    %1037 = vector.broadcast %1035 : vector<1x256xf32> to vector<4x256xf32>
    %1038 = arith.mulf %1036, %1037 : vector<4x256xf32>
    %1039 = arith.addf %1033, %1038 : vector<4x256xf32>
    %1040 = vector.extract_strided_slice %1022 {offsets = [0, 3], sizes = [4, 1], strides = [1, 1]} : vector<4x4xf32> to vector<4x1xf32>
    %1041 = vector.extract_strided_slice %1021 {offsets = [3, 0], sizes = [1, 256], strides = [1, 1]} : vector<4x256xf32> to vector<1x256xf32>
    %1042 = vector.broadcast %1040 : vector<4x1xf32> to vector<4x256xf32>
    %1043 = vector.broadcast %1041 : vector<1x256xf32> to vector<4x256xf32>
    %1044 = arith.mulf %1042, %1043 : vector<4x256xf32>
    %1045 = arith.addf %1039, %1044 : vector<4x256xf32>
    %1046 = arith.addf %1018, %1045 : vector<4x256xf32>
    %c0_98 = arith.constant 0 : index
    %c144_99 = arith.constant 144 : index
    %1047 = vector.load %arg22[%c0_98, %c144_99] : memref<4x512xf32, #tpu.memory_space<vmem>>, vector<4x256xf32>
    %1048 = vector.extract_strided_slice %855 {offsets = [0, 28], sizes = [4, 4], strides = [1, 1]} : vector<4x36xf32> to vector<4x4xf32>
    %1049 = vector.extract_strided_slice %1048 {offsets = [0, 0], sizes = [4, 1], strides = [1, 1]} : vector<4x4xf32> to vector<4x1xf32>
    %1050 = vector.extract_strided_slice %1047 {offsets = [0, 0], sizes = [1, 256], strides = [1, 1]} : vector<4x256xf32> to vector<1x256xf32>
    %1051 = vector.broadcast %1049 : vector<4x1xf32> to vector<4x256xf32>
    %1052 = vector.broadcast %1050 : vector<1x256xf32> to vector<4x256xf32>
    %1053 = arith.mulf %1051, %1052 : vector<4x256xf32>
    %1054 = vector.extract_strided_slice %1048 {offsets = [0, 1], sizes = [4, 1], strides = [1, 1]} : vector<4x4xf32> to vector<4x1xf32>
    %1055 = vector.extract_strided_slice %1047 {offsets = [1, 0], sizes = [1, 256], strides = [1, 1]} : vector<4x256xf32> to vector<1x256xf32>
    %1056 = vector.broadcast %1054 : vector<4x1xf32> to vector<4x256xf32>
    %1057 = vector.broadcast %1055 : vector<1x256xf32> to vector<4x256xf32>
    %1058 = arith.mulf %1056, %1057 : vector<4x256xf32>
    %1059 = arith.addf %1053, %1058 : vector<4x256xf32>
    %1060 = vector.extract_strided_slice %1048 {offsets = [0, 2], sizes = [4, 1], strides = [1, 1]} : vector<4x4xf32> to vector<4x1xf32>
    %1061 = vector.extract_strided_slice %1047 {offsets = [2, 0], sizes = [1, 256], strides = [1, 1]} : vector<4x256xf32> to vector<1x256xf32>
    %1062 = vector.broadcast %1060 : vector<4x1xf32> to vector<4x256xf32>
    %1063 = vector.broadcast %1061 : vector<1x256xf32> to vector<4x256xf32>
    %1064 = arith.mulf %1062, %1063 : vector<4x256xf32>
    %1065 = arith.addf %1059, %1064 : vector<4x256xf32>
    %1066 = vector.extract_strided_slice %1048 {offsets = [0, 3], sizes = [4, 1], strides = [1, 1]} : vector<4x4xf32> to vector<4x1xf32>
    %1067 = vector.extract_strided_slice %1047 {offsets = [3, 0], sizes = [1, 256], strides = [1, 1]} : vector<4x256xf32> to vector<1x256xf32>
    %1068 = vector.broadcast %1066 : vector<4x1xf32> to vector<4x256xf32>
    %1069 = vector.broadcast %1067 : vector<1x256xf32> to vector<4x256xf32>
    %1070 = arith.mulf %1068, %1069 : vector<4x256xf32>
    %1071 = arith.addf %1065, %1070 : vector<4x256xf32>
    %1072 = arith.addf %1046, %1071 : vector<4x256xf32>
    %c0_100 = arith.constant 0 : index
    %c145_101 = arith.constant 145 : index
    %1073 = vector.load %arg22[%c0_100, %c145_101] : memref<4x512xf32, #tpu.memory_space<vmem>>, vector<4x256xf32>
    %1074 = vector.broadcast %3 : vector<1x256xf32> to vector<4x256xf32>
    %1075 = arith.mulf %1073, %1074 : vector<4x256xf32>
    %1076 = vector.extract_strided_slice %855 {offsets = [0, 32], sizes = [4, 4], strides = [1, 1]} : vector<4x36xf32> to vector<4x4xf32>
    %1077 = vector.extract_strided_slice %1076 {offsets = [0, 0], sizes = [4, 1], strides = [1, 1]} : vector<4x4xf32> to vector<4x1xf32>
    %1078 = vector.extract_strided_slice %1075 {offsets = [0, 0], sizes = [1, 256], strides = [1, 1]} : vector<4x256xf32> to vector<1x256xf32>
    %1079 = vector.broadcast %1077 : vector<4x1xf32> to vector<4x256xf32>
    %1080 = vector.broadcast %1078 : vector<1x256xf32> to vector<4x256xf32>
    %1081 = arith.mulf %1079, %1080 : vector<4x256xf32>
    %1082 = vector.extract_strided_slice %1076 {offsets = [0, 1], sizes = [4, 1], strides = [1, 1]} : vector<4x4xf32> to vector<4x1xf32>
    %1083 = vector.extract_strided_slice %1075 {offsets = [1, 0], sizes = [1, 256], strides = [1, 1]} : vector<4x256xf32> to vector<1x256xf32>
    %1084 = vector.broadcast %1082 : vector<4x1xf32> to vector<4x256xf32>
    %1085 = vector.broadcast %1083 : vector<1x256xf32> to vector<4x256xf32>
    %1086 = arith.mulf %1084, %1085 : vector<4x256xf32>
    %1087 = arith.addf %1081, %1086 : vector<4x256xf32>
    %1088 = vector.extract_strided_slice %1076 {offsets = [0, 2], sizes = [4, 1], strides = [1, 1]} : vector<4x4xf32> to vector<4x1xf32>
    %1089 = vector.extract_strided_slice %1075 {offsets = [2, 0], sizes = [1, 256], strides = [1, 1]} : vector<4x256xf32> to vector<1x256xf32>
    %1090 = vector.broadcast %1088 : vector<4x1xf32> to vector<4x256xf32>
    %1091 = vector.broadcast %1089 : vector<1x256xf32> to vector<4x256xf32>
    %1092 = arith.mulf %1090, %1091 : vector<4x256xf32>
    %1093 = arith.addf %1087, %1092 : vector<4x256xf32>
    %1094 = vector.extract_strided_slice %1076 {offsets = [0, 3], sizes = [4, 1], strides = [1, 1]} : vector<4x4xf32> to vector<4x1xf32>
    %1095 = vector.extract_strided_slice %1075 {offsets = [3, 0], sizes = [1, 256], strides = [1, 1]} : vector<4x256xf32> to vector<1x256xf32>
    %1096 = vector.broadcast %1094 : vector<4x1xf32> to vector<4x256xf32>
    %1097 = vector.broadcast %1095 : vector<1x256xf32> to vector<4x256xf32>
    %1098 = arith.mulf %1096, %1097 : vector<4x256xf32>
    %1099 = arith.addf %1093, %1098 : vector<4x256xf32>
    %1100 = arith.addf %1072, %1099 : vector<4x256xf32>
    %c0_102 = arith.constant 0 : index
    %c0_103 = arith.constant 0 : index
    %1101 = vector.load %arg16[%c0_102, %c0_103] : memref<4x1xf32, #tpu.memory_space<vmem>>, vector<4x1xf32>
    %1102 = vector.broadcast %1101 : vector<4x1xf32> to vector<4x256xf32>
    %1103 = arith.addf %1100, %1102 : vector<4x256xf32>
    %cst_104 = arith.constant 2.000000e-01 : f32
    %1104 = vector.broadcast %cst_104 : f32 to vector<4x256xf32>
    %1105 = arith.mulf %1104, %1103 : vector<4x256xf32>
    %1106 = arith.maximumf %1103, %1105 : vector<4x256xf32>
    %c0_105 = arith.constant 0 : index
    %c0_106 = arith.constant 0 : index
    %1107 = vector.load %arg17[%c0_105, %c0_106] : memref<4x16xf32, #tpu.memory_space<vmem>>, vector<4x16xf32>
    %1108 = vector.extract_strided_slice %1107 {offsets = [0, 0], sizes = [4, 4], strides = [1, 1]} : vector<4x16xf32> to vector<4x4xf32>
    %1109 = vector.extract_strided_slice %1108 {offsets = [0, 0], sizes = [4, 1], strides = [1, 1]} : vector<4x4xf32> to vector<4x1xf32>
    %1110 = vector.extract_strided_slice %35 {offsets = [0, 0], sizes = [1, 256], strides = [1, 1]} : vector<4x256xf32> to vector<1x256xf32>
    %1111 = vector.broadcast %1109 : vector<4x1xf32> to vector<4x256xf32>
    %1112 = vector.broadcast %1110 : vector<1x256xf32> to vector<4x256xf32>
    %1113 = arith.mulf %1111, %1112 : vector<4x256xf32>
    %1114 = vector.extract_strided_slice %1108 {offsets = [0, 1], sizes = [4, 1], strides = [1, 1]} : vector<4x4xf32> to vector<4x1xf32>
    %1115 = vector.extract_strided_slice %35 {offsets = [1, 0], sizes = [1, 256], strides = [1, 1]} : vector<4x256xf32> to vector<1x256xf32>
    %1116 = vector.broadcast %1114 : vector<4x1xf32> to vector<4x256xf32>
    %1117 = vector.broadcast %1115 : vector<1x256xf32> to vector<4x256xf32>
    %1118 = arith.mulf %1116, %1117 : vector<4x256xf32>
    %1119 = arith.addf %1113, %1118 : vector<4x256xf32>
    %1120 = vector.extract_strided_slice %1108 {offsets = [0, 2], sizes = [4, 1], strides = [1, 1]} : vector<4x4xf32> to vector<4x1xf32>
    %1121 = vector.extract_strided_slice %35 {offsets = [2, 0], sizes = [1, 256], strides = [1, 1]} : vector<4x256xf32> to vector<1x256xf32>
    %1122 = vector.broadcast %1120 : vector<4x1xf32> to vector<4x256xf32>
    %1123 = vector.broadcast %1121 : vector<1x256xf32> to vector<4x256xf32>
    %1124 = arith.mulf %1122, %1123 : vector<4x256xf32>
    %1125 = arith.addf %1119, %1124 : vector<4x256xf32>
    %1126 = vector.extract_strided_slice %1108 {offsets = [0, 3], sizes = [4, 1], strides = [1, 1]} : vector<4x4xf32> to vector<4x1xf32>
    %1127 = vector.extract_strided_slice %35 {offsets = [3, 0], sizes = [1, 256], strides = [1, 1]} : vector<4x256xf32> to vector<1x256xf32>
    %1128 = vector.broadcast %1126 : vector<4x1xf32> to vector<4x256xf32>
    %1129 = vector.broadcast %1127 : vector<1x256xf32> to vector<4x256xf32>
    %1130 = arith.mulf %1128, %1129 : vector<4x256xf32>
    %1131 = arith.addf %1125, %1130 : vector<4x256xf32>
    %1132 = vector.extract_strided_slice %1107 {offsets = [0, 4], sizes = [4, 4], strides = [1, 1]} : vector<4x16xf32> to vector<4x4xf32>
    %1133 = vector.extract_strided_slice %1132 {offsets = [0, 0], sizes = [4, 1], strides = [1, 1]} : vector<4x4xf32> to vector<4x1xf32>
    %1134 = vector.extract_strided_slice %318 {offsets = [0, 0], sizes = [1, 256], strides = [1, 1]} : vector<4x256xf32> to vector<1x256xf32>
    %1135 = vector.broadcast %1133 : vector<4x1xf32> to vector<4x256xf32>
    %1136 = vector.broadcast %1134 : vector<1x256xf32> to vector<4x256xf32>
    %1137 = arith.mulf %1135, %1136 : vector<4x256xf32>
    %1138 = vector.extract_strided_slice %1132 {offsets = [0, 1], sizes = [4, 1], strides = [1, 1]} : vector<4x4xf32> to vector<4x1xf32>
    %1139 = vector.extract_strided_slice %318 {offsets = [1, 0], sizes = [1, 256], strides = [1, 1]} : vector<4x256xf32> to vector<1x256xf32>
    %1140 = vector.broadcast %1138 : vector<4x1xf32> to vector<4x256xf32>
    %1141 = vector.broadcast %1139 : vector<1x256xf32> to vector<4x256xf32>
    %1142 = arith.mulf %1140, %1141 : vector<4x256xf32>
    %1143 = arith.addf %1137, %1142 : vector<4x256xf32>
    %1144 = vector.extract_strided_slice %1132 {offsets = [0, 2], sizes = [4, 1], strides = [1, 1]} : vector<4x4xf32> to vector<4x1xf32>
    %1145 = vector.extract_strided_slice %318 {offsets = [2, 0], sizes = [1, 256], strides = [1, 1]} : vector<4x256xf32> to vector<1x256xf32>
    %1146 = vector.broadcast %1144 : vector<4x1xf32> to vector<4x256xf32>
    %1147 = vector.broadcast %1145 : vector<1x256xf32> to vector<4x256xf32>
    %1148 = arith.mulf %1146, %1147 : vector<4x256xf32>
    %1149 = arith.addf %1143, %1148 : vector<4x256xf32>
    %1150 = vector.extract_strided_slice %1132 {offsets = [0, 3], sizes = [4, 1], strides = [1, 1]} : vector<4x4xf32> to vector<4x1xf32>
    %1151 = vector.extract_strided_slice %318 {offsets = [3, 0], sizes = [1, 256], strides = [1, 1]} : vector<4x256xf32> to vector<1x256xf32>
    %1152 = vector.broadcast %1150 : vector<4x1xf32> to vector<4x256xf32>
    %1153 = vector.broadcast %1151 : vector<1x256xf32> to vector<4x256xf32>
    %1154 = arith.mulf %1152, %1153 : vector<4x256xf32>
    %1155 = arith.addf %1149, %1154 : vector<4x256xf32>
    %1156 = arith.addf %1131, %1155 : vector<4x256xf32>
    %1157 = vector.extract_strided_slice %1107 {offsets = [0, 8], sizes = [4, 4], strides = [1, 1]} : vector<4x16xf32> to vector<4x4xf32>
    %1158 = vector.extract_strided_slice %1157 {offsets = [0, 0], sizes = [4, 1], strides = [1, 1]} : vector<4x4xf32> to vector<4x1xf32>
    %1159 = vector.extract_strided_slice %601 {offsets = [0, 0], sizes = [1, 256], strides = [1, 1]} : vector<4x256xf32> to vector<1x256xf32>
    %1160 = vector.broadcast %1158 : vector<4x1xf32> to vector<4x256xf32>
    %1161 = vector.broadcast %1159 : vector<1x256xf32> to vector<4x256xf32>
    %1162 = arith.mulf %1160, %1161 : vector<4x256xf32>
    %1163 = vector.extract_strided_slice %1157 {offsets = [0, 1], sizes = [4, 1], strides = [1, 1]} : vector<4x4xf32> to vector<4x1xf32>
    %1164 = vector.extract_strided_slice %601 {offsets = [1, 0], sizes = [1, 256], strides = [1, 1]} : vector<4x256xf32> to vector<1x256xf32>
    %1165 = vector.broadcast %1163 : vector<4x1xf32> to vector<4x256xf32>
    %1166 = vector.broadcast %1164 : vector<1x256xf32> to vector<4x256xf32>
    %1167 = arith.mulf %1165, %1166 : vector<4x256xf32>
    %1168 = arith.addf %1162, %1167 : vector<4x256xf32>
    %1169 = vector.extract_strided_slice %1157 {offsets = [0, 2], sizes = [4, 1], strides = [1, 1]} : vector<4x4xf32> to vector<4x1xf32>
    %1170 = vector.extract_strided_slice %601 {offsets = [2, 0], sizes = [1, 256], strides = [1, 1]} : vector<4x256xf32> to vector<1x256xf32>
    %1171 = vector.broadcast %1169 : vector<4x1xf32> to vector<4x256xf32>
    %1172 = vector.broadcast %1170 : vector<1x256xf32> to vector<4x256xf32>
    %1173 = arith.mulf %1171, %1172 : vector<4x256xf32>
    %1174 = arith.addf %1168, %1173 : vector<4x256xf32>
    %1175 = vector.extract_strided_slice %1157 {offsets = [0, 3], sizes = [4, 1], strides = [1, 1]} : vector<4x4xf32> to vector<4x1xf32>
    %1176 = vector.extract_strided_slice %601 {offsets = [3, 0], sizes = [1, 256], strides = [1, 1]} : vector<4x256xf32> to vector<1x256xf32>
    %1177 = vector.broadcast %1175 : vector<4x1xf32> to vector<4x256xf32>
    %1178 = vector.broadcast %1176 : vector<1x256xf32> to vector<4x256xf32>
    %1179 = arith.mulf %1177, %1178 : vector<4x256xf32>
    %1180 = arith.addf %1174, %1179 : vector<4x256xf32>
    %1181 = arith.addf %1156, %1180 : vector<4x256xf32>
    %1182 = vector.extract_strided_slice %1107 {offsets = [0, 12], sizes = [4, 4], strides = [1, 1]} : vector<4x16xf32> to vector<4x4xf32>
    %1183 = vector.extract_strided_slice %1182 {offsets = [0, 0], sizes = [4, 1], strides = [1, 1]} : vector<4x4xf32> to vector<4x1xf32>
    %1184 = vector.extract_strided_slice %1106 {offsets = [0, 0], sizes = [1, 256], strides = [1, 1]} : vector<4x256xf32> to vector<1x256xf32>
    %1185 = vector.broadcast %1183 : vector<4x1xf32> to vector<4x256xf32>
    %1186 = vector.broadcast %1184 : vector<1x256xf32> to vector<4x256xf32>
    %1187 = arith.mulf %1185, %1186 : vector<4x256xf32>
    %1188 = vector.extract_strided_slice %1182 {offsets = [0, 1], sizes = [4, 1], strides = [1, 1]} : vector<4x4xf32> to vector<4x1xf32>
    %1189 = vector.extract_strided_slice %1106 {offsets = [1, 0], sizes = [1, 256], strides = [1, 1]} : vector<4x256xf32> to vector<1x256xf32>
    %1190 = vector.broadcast %1188 : vector<4x1xf32> to vector<4x256xf32>
    %1191 = vector.broadcast %1189 : vector<1x256xf32> to vector<4x256xf32>
    %1192 = arith.mulf %1190, %1191 : vector<4x256xf32>
    %1193 = arith.addf %1187, %1192 : vector<4x256xf32>
    %1194 = vector.extract_strided_slice %1182 {offsets = [0, 2], sizes = [4, 1], strides = [1, 1]} : vector<4x4xf32> to vector<4x1xf32>
    %1195 = vector.extract_strided_slice %1106 {offsets = [2, 0], sizes = [1, 256], strides = [1, 1]} : vector<4x256xf32> to vector<1x256xf32>
    %1196 = vector.broadcast %1194 : vector<4x1xf32> to vector<4x256xf32>
    %1197 = vector.broadcast %1195 : vector<1x256xf32> to vector<4x256xf32>
    %1198 = arith.mulf %1196, %1197 : vector<4x256xf32>
    %1199 = arith.addf %1193, %1198 : vector<4x256xf32>
    %1200 = vector.extract_strided_slice %1182 {offsets = [0, 3], sizes = [4, 1], strides = [1, 1]} : vector<4x4xf32> to vector<4x1xf32>
    %1201 = vector.extract_strided_slice %1106 {offsets = [3, 0], sizes = [1, 256], strides = [1, 1]} : vector<4x256xf32> to vector<1x256xf32>
    %1202 = vector.broadcast %1200 : vector<4x1xf32> to vector<4x256xf32>
    %1203 = vector.broadcast %1201 : vector<1x256xf32> to vector<4x256xf32>
    %1204 = arith.mulf %1202, %1203 : vector<4x256xf32>
    %1205 = arith.addf %1199, %1204 : vector<4x256xf32>
    %1206 = arith.addf %1181, %1205 : vector<4x256xf32>
    %c0_107 = arith.constant 0 : index
    %c0_108 = arith.constant 0 : index
    %1207 = vector.load %arg18[%c0_107, %c0_108] : memref<4x1xf32, #tpu.memory_space<vmem>>, vector<4x1xf32>
    %1208 = vector.broadcast %1207 : vector<4x1xf32> to vector<4x256xf32>
    %1209 = arith.addf %1206, %1208 : vector<4x256xf32>
    %c0_109 = arith.constant 0 : index
    %c0_110 = arith.constant 0 : index
    %1210 = vector.load %arg19[%c0_109, %c0_110] : memref<4x4xf32, #tpu.memory_space<vmem>>, vector<4x4xf32>
    %1211 = vector.extract_strided_slice %1210 {offsets = [0, 0], sizes = [4, 1], strides = [1, 1]} : vector<4x4xf32> to vector<4x1xf32>
    %1212 = vector.extract_strided_slice %1209 {offsets = [0, 0], sizes = [1, 256], strides = [1, 1]} : vector<4x256xf32> to vector<1x256xf32>
    %1213 = vector.broadcast %1211 : vector<4x1xf32> to vector<4x256xf32>
    %1214 = vector.broadcast %1212 : vector<1x256xf32> to vector<4x256xf32>
    %1215 = arith.mulf %1213, %1214 : vector<4x256xf32>
    %1216 = vector.extract_strided_slice %1210 {offsets = [0, 1], sizes = [4, 1], strides = [1, 1]} : vector<4x4xf32> to vector<4x1xf32>
    %1217 = vector.extract_strided_slice %1209 {offsets = [1, 0], sizes = [1, 256], strides = [1, 1]} : vector<4x256xf32> to vector<1x256xf32>
    %1218 = vector.broadcast %1216 : vector<4x1xf32> to vector<4x256xf32>
    %1219 = vector.broadcast %1217 : vector<1x256xf32> to vector<4x256xf32>
    %1220 = arith.mulf %1218, %1219 : vector<4x256xf32>
    %1221 = arith.addf %1215, %1220 : vector<4x256xf32>
    %1222 = vector.extract_strided_slice %1210 {offsets = [0, 2], sizes = [4, 1], strides = [1, 1]} : vector<4x4xf32> to vector<4x1xf32>
    %1223 = vector.extract_strided_slice %1209 {offsets = [2, 0], sizes = [1, 256], strides = [1, 1]} : vector<4x256xf32> to vector<1x256xf32>
    %1224 = vector.broadcast %1222 : vector<4x1xf32> to vector<4x256xf32>
    %1225 = vector.broadcast %1223 : vector<1x256xf32> to vector<4x256xf32>
    %1226 = arith.mulf %1224, %1225 : vector<4x256xf32>
    %1227 = arith.addf %1221, %1226 : vector<4x256xf32>
    %1228 = vector.extract_strided_slice %1210 {offsets = [0, 3], sizes = [4, 1], strides = [1, 1]} : vector<4x4xf32> to vector<4x1xf32>
    %1229 = vector.extract_strided_slice %1209 {offsets = [3, 0], sizes = [1, 256], strides = [1, 1]} : vector<4x256xf32> to vector<1x256xf32>
    %1230 = vector.broadcast %1228 : vector<4x1xf32> to vector<4x256xf32>
    %1231 = vector.broadcast %1229 : vector<1x256xf32> to vector<4x256xf32>
    %1232 = arith.mulf %1230, %1231 : vector<4x256xf32>
    %1233 = arith.addf %1227, %1232 : vector<4x256xf32>
    %c0_111 = arith.constant 0 : index
    %c0_112 = arith.constant 0 : index
    %1234 = vector.load %arg20[%c0_111, %c0_112] : memref<4x1xf32, #tpu.memory_space<vmem>>, vector<4x1xf32>
    %1235 = vector.broadcast %1234 : vector<4x1xf32> to vector<4x256xf32>
    %1236 = arith.addf %1233, %1235 : vector<4x256xf32>
    %cst_113 = arith.constant 0.000000e+00 : f32
    %1237 = vector.broadcast %cst_113 : f32 to vector<4x256xf32>
    %1238 = arith.subf %1237, %1236 : vector<4x256xf32>
    %1239 = math.exp %1238 : vector<4x256xf32>
    %cst_114 = arith.constant 1.000000e+00 : f32
    %1240 = vector.broadcast %cst_114 : f32 to vector<4x256xf32>
    %1241 = arith.addf %1240, %1239 : vector<4x256xf32>
    %1242 = tpu.reciprocal %1241 {approx = true} : vector<4x256xf32> -> vector<4x256xf32>
    %1243 = arith.mulf %1209, %1242 : vector<4x256xf32>
    %c0_115 = arith.constant 0 : index
    %c0_116 = arith.constant 0 : index
    %c0_117 = arith.constant 0 : index
    %1244 = vector.load %arg21[%c0_115, %c0_116, %c0_117] : memref<1x4x256xf32, #tpu.memory_space<vmem>>, vector<1x4x256xf32>
    %1245 = vector.shape_cast %1244 : vector<1x4x256xf32> to vector<4x256xf32>
    %1246 = vector.shape_cast %1243 : vector<4x256xf32> to vector<1x4x256xf32>
    tpu.vector_store %arg21[%c0_115, %c0_116, %c0_117], %1246 {strides = array<i32>} : memref<1x4x256xf32, #tpu.memory_space<vmem>>, vector<1x4x256xf32>,
    return
  }
  func.func @transform_0(%arg0: i32) -> (i32, i32, i32) {
    %c0_i32 = arith.constant 0 : i32
    %c0_i32_0 = arith.constant 0 : i32
    %c0_i32_1 = arith.constant 0 : i32
    return %arg0, %c0_i32, %c0_i32_0 : i32, i32, i32
  }
  func.func @transform_1(%arg0: i32) -> (i32, i32) {
    %c0_i32 = arith.constant 0 : i32
    %c0_i32_0 = arith.constant 0 : i32
    %c0_i32_1 = arith.constant 0 : i32
    return %c0_i32, %c0_i32_0 : i32, i32
  }
  func.func @transform_2(%arg0: i32) -> (i32, i32) {
    %c0_i32 = arith.constant 0 : i32
    %c0_i32_0 = arith.constant 0 : i32
    %c0_i32_1 = arith.constant 0 : i32
    return %c0_i32, %c0_i32_0 : i32, i32
  }
  func.func @transform_3(%arg0: i32) -> (i32, i32) {
    %c0_i32 = arith.constant 0 : i32
    %c0_i32_0 = arith.constant 0 : i32
    %c0_i32_1 = arith.constant 0 : i32
    return %c0_i32, %c0_i32_0 : i32, i32
  }
  func.func @transform_4(%arg0: i32) -> (i32, i32) {
    %c0_i32 = arith.constant 0 : i32
    %c0_i32_0 = arith.constant 0 : i32
    %c0_i32_1 = arith.constant 0 : i32
    return %c0_i32, %c0_i32_0 : i32, i32
  }
  func.func @transform_5(%arg0: i32) -> (i32, i32) {
    %c0_i32 = arith.constant 0 : i32
    %c0_i32_0 = arith.constant 0 : i32
    %c0_i32_1 = arith.constant 0 : i32
    return %c0_i32, %c0_i32_0 : i32, i32
  }
  func.func @transform_6(%arg0: i32) -> (i32, i32) {
    %c0_i32 = arith.constant 0 : i32
    %c0_i32_0 = arith.constant 0 : i32
    %c0_i32_1 = arith.constant 0 : i32
    return %c0_i32, %c0_i32_0 : i32, i32
  }
  func.func @transform_7(%arg0: i32) -> (i32, i32) {
    %c0_i32 = arith.constant 0 : i32
    %c0_i32_0 = arith.constant 0 : i32
    %c0_i32_1 = arith.constant 0 : i32
    return %c0_i32, %c0_i32_0 : i32, i32
  }
  func.func @transform_8(%arg0: i32) -> (i32, i32) {
    %c0_i32 = arith.constant 0 : i32
    %c0_i32_0 = arith.constant 0 : i32
    %c0_i32_1 = arith.constant 0 : i32
    return %c0_i32, %c0_i32_0 : i32, i32
  }
  func.func @transform_9(%arg0: i32) -> (i32, i32) {
    %c0_i32 = arith.constant 0 : i32
    %c0_i32_0 = arith.constant 0 : i32
    %c0_i32_1 = arith.constant 0 : i32
    return %c0_i32, %c0_i32_0 : i32, i32
  }
  func.func @transform_10(%arg0: i32) -> (i32, i32) {
    %c0_i32 = arith.constant 0 : i32
    %c0_i32_0 = arith.constant 0 : i32
    %c0_i32_1 = arith.constant 0 : i32
    return %c0_i32, %c0_i32_0 : i32, i32
  }
  func.func @transform_11(%arg0: i32) -> (i32, i32) {
    %c0_i32 = arith.constant 0 : i32
    %c0_i32_0 = arith.constant 0 : i32
    %c0_i32_1 = arith.constant 0 : i32
    return %c0_i32, %c0_i32_0 : i32, i32
  }
  func.func @transform_12(%arg0: i32) -> (i32, i32) {
    %c0_i32 = arith.constant 0 : i32
    %c0_i32_0 = arith.constant 0 : i32
    %c0_i32_1 = arith.constant 0 : i32
    return %c0_i32, %c0_i32_0 : i32, i32
  }
  func.func @transform_13(%arg0: i32) -> (i32, i32) {
    %c0_i32 = arith.constant 0 : i32
    %c0_i32_0 = arith.constant 0 : i32
    %c0_i32_1 = arith.constant 0 : i32
    return %c0_i32, %c0_i32_0 : i32, i32
  }
  func.func @transform_14(%arg0: i32) -> (i32, i32) {
    %c0_i32 = arith.constant 0 : i32
    %c0_i32_0 = arith.constant 0 : i32
    %c0_i32_1 = arith.constant 0 : i32
    return %c0_i32, %c0_i32_0 : i32, i32
  }
  func.func @transform_15(%arg0: i32) -> (i32, i32) {
    %c0_i32 = arith.constant 0 : i32
    %c0_i32_0 = arith.constant 0 : i32
    %c0_i32_1 = arith.constant 0 : i32
    return %c0_i32, %c0_i32_0 : i32, i32
  }
  func.func @transform_16(%arg0: i32) -> (i32, i32) {
    %c0_i32 = arith.constant 0 : i32
    %c0_i32_0 = arith.constant 0 : i32
    %c0_i32_1 = arith.constant 0 : i32
    return %c0_i32, %c0_i32_0 : i32, i32
  }
  func.func @transform_17(%arg0: i32) -> (i32, i32) {
    %c0_i32 = arith.constant 0 : i32
    %c0_i32_0 = arith.constant 0 : i32
    %c0_i32_1 = arith.constant 0 : i32
    return %c0_i32, %c0_i32_0 : i32, i32
  }
  func.func @transform_18(%arg0: i32) -> (i32, i32) {
    %c0_i32 = arith.constant 0 : i32
    %c0_i32_0 = arith.constant 0 : i32
    %c0_i32_1 = arith.constant 0 : i32
    return %c0_i32, %c0_i32_0 : i32, i32
  }
  func.func @transform_19(%arg0: i32) -> (i32, i32) {
    %c0_i32 = arith.constant 0 : i32
    %c0_i32_0 = arith.constant 0 : i32
    %c0_i32_1 = arith.constant 0 : i32
    return %c0_i32, %c0_i32_0 : i32, i32
  }
  func.func @transform_20(%arg0: i32) -> (i32, i32, i32) {
    %c0_i32 = arith.constant 0 : i32
    %c0_i32_0 = arith.constant 0 : i32
    %c0_i32_1 = arith.constant 0 : i32
    return %arg0, %c0_i32, %c0_i32_0 : i32, i32, i32
  }
}

</mosaic_0001>

<llo_original>
// kernel: padb_forward.1
$region0: #{padb_forward.1}
  #allocation0 [shape = 'u32[]', space=smem, size = 0x4, offset = 0x4, fixed_abs, tag = 'smem constant byte address 0x4 - core index']
  #allocation1 [shape = 'u32[72,128]{1,0:T(1,128)}', space=vmem, size = 0x9000, scoped, tag = 'internal scratch']
  #allocation2 [shape = 'f32[4,512]{1,0:T(4,128)}', space=vmem, size = 0x2000, scoped, tag = 'scratch operand']
  %s0 = inlined_call_operand.vmem [shape: f32[2,4,256], index: 0, kind: input, shape index: {}]
  %s1 = inlined_call_operand.vmem [shape: f32[2,256], index: 1, kind: input, shape index: {}]
  %s2 = inlined_call_operand.vmem [shape: f32[4,4], index: 2, kind: input, shape index: {}]
  %s3 = inlined_call_operand.vmem [shape: f32[4,1], index: 3, kind: input, shape index: {}]
  %s4 = inlined_call_operand.vmem [shape: f32[4,36], index: 4, kind: input, shape index: {}]
  %s5 = inlined_call_operand.vmem [shape: f32[4,1], index: 5, kind: input, shape index: {}]
  %s6 = inlined_call_operand.vmem [shape: f32[4,4], index: 6, kind: input, shape index: {}]
  %s7 = inlined_call_operand.vmem [shape: f32[4,1], index: 7, kind: input, shape index: {}]
  %s8 = inlined_call_operand.vmem [shape: f32[4,36], index: 8, kind: input, shape index: {}]
  %s9 = inlined_call_operand.vmem [shape: f32[4,1], index: 9, kind: input, shape index: {}]
  %s10 = inlined_call_operand.vmem [shape: f32[4,4], index: 10, kind: input, shape index: {}]
  %s11 = inlined_call_operand.vmem [shape: f32[4,1], index: 11, kind: input, shape index: {}]
  %s12 = inlined_call_operand.vmem [shape: f32[4,36], index: 12, kind: input, shape index: {}]
  %s13 = inlined_call_operand.vmem [shape: f32[4,1], index: 13, kind: input, shape index: {}]
  %s14 = inlined_call_operand.vmem [shape: f32[4,36], index: 14, kind: input, shape index: {}]
  %s15 = inlined_call_operand.vmem [shape: f32[4,1], index: 15, kind: input, shape index: {}]
  %s16 = inlined_call_operand.vmem [shape: f32[4,16], index: 16, kind: input, shape index: {}]
  %s17 = inlined_call_operand.vmem [shape: f32[4,1], index: 17, kind: input, shape index: {}]
  %s18 = inlined_call_operand.vmem [shape: f32[4,4], index: 18, kind: input, shape index: {}]
  %s19 = inlined_call_operand.vmem [shape: f32[4,1], index: 19, kind: input, shape index: {}]
  %s20 = inlined_call_operand.vmem [shape: f32[2,4,256], index: 20, kind: output, shape index: {}]
  %s21 = sld [smem:[#allocation0]]
  $region113: #{padb_forward.1} parent=0
    _
  %s23 = ssub.s32 1, %s21
  %s24 = scalar_select 0, %s23, %s21
  loop: start=0, step=1, limit=4
  $region2: #{padb_forward.1} parent=0 // loop_pre_header
    _
  $region3: #{padb_forward.1} parent=0 // loop_header
    %s26 = sphi 0, %s30
    %p27 = scmp.ge.s32.totalorder %s26, 4
    %s36 = sphi 0, %s38
    %s39 = sphi 0, %s36
    %s40 = sphi 0, %s39
    %s56 = sphi 0, %s40
    %s60 = sphi 0, %s60
    %s62 = sphi 0, %s60
    %s63 = sphi 0, %s62
    %s77 = sphi 0, %s63
    %s81 = sphi 0, %s81
    %s83 = sphi 0, %s81
    %s84 = sphi 0, %s83
    %s98 = sphi 0, %s84
    %s102 = sphi 0, %s102
    %s104 = sphi 0, %s102
    %s105 = sphi 0, %s104
    %s119 = sphi 0, %s105
    %s123 = sphi 0, %s123
    %s125 = sphi 0, %s123
    %s126 = sphi 0, %s125
    %s140 = sphi 0, %s126
    %s144 = sphi 0, %s144
    %s146 = sphi 0, %s144
    %s147 = sphi 0, %s146
    %s161 = sphi 0, %s147
    %s165 = sphi 0, %s165
    %s167 = sphi 0, %s165
    %s168 = sphi 0, %s167
    %s182 = sphi 0, %s168
    %s186 = sphi 0, %s186
    %s188 = sphi 0, %s186
    %s189 = sphi 0, %s188
    %s203 = sphi 0, %s189
    %s207 = sphi 0, %s207
    %s209 = sphi 0, %s207
    %s210 = sphi 0, %s209
    %s224 = sphi 0, %s210
    %s228 = sphi 0, %s228
    %s230 = sphi 0, %s228
    %s231 = sphi 0, %s230
    %s245 = sphi 0, %s231
    %s249 = sphi 0, %s249
    %s251 = sphi 0, %s249
    %s252 = sphi 0, %s251
    %s266 = sphi 0, %s252
    %s270 = sphi 0, %s270
    %s272 = sphi 0, %s270
    %s273 = sphi 0, %s272
    %s287 = sphi 0, %s273
    %s291 = sphi 0, %s291
    %s293 = sphi 0, %s291
    %s294 = sphi 0, %s293
    %s308 = sphi 0, %s294
    %s312 = sphi 0, %s312
    %s314 = sphi 0, %s312
    %s315 = sphi 0, %s314
    %s329 = sphi 0, %s315
    %s333 = sphi 0, %s333
    %s335 = sphi 0, %s333
    %s336 = sphi 0, %s335
    %s350 = sphi 0, %s336
    %s354 = sphi 0, %s354
    %s356 = sphi 0, %s354
    %s357 = sphi 0, %s356
    %s371 = sphi 0, %s357
    %s375 = sphi 0, %s375
    %s377 = sphi 0, %s375
    %s378 = sphi 0, %s377
    %s392 = sphi 0, %s378
    %s396 = sphi 0, %s396
    %s398 = sphi 0, %s396
    %s399 = sphi 0, %s398
    %s413 = sphi 0, %s399
    %s417 = sphi 0, %s417
    %s419 = sphi 0, %s417
    %s420 = sphi 0, %s419
    %s434 = sphi 0, %s420
    %s438 = sphi 0, %s438
    %s440 = sphi 0, %s438
    %s441 = sphi 0, %s440
    %s455 = sphi 0, %s441
    %s461 = sphi 0, %s463
    %s464 = sphi 0, %s461
    %s465 = sphi 0, %s464
    %s481 = sphi 0, %s465
  $region4: #{padb_forward.1} parent=0 // loop_header_branch
    %29 = sbr.rel (%p27) target = $region8
  $region5: #{padb_forward.1} parent=0 // loop_body
    %s31 = ssub.s32 %s26, 1
    %s32 = ssub.s32 %s26, 2
    %s33 = sadd.s32 %s26, 1
    %s34 = ssub.s32 %s26, %s33
    %p35 = scmp.eq.s32.totalorder %s34, 0
    %s37 = sadd.s32 %s36, 1
    %s38 = scalar_select %p35, %s36, %s37
    %p41 = pneg %p35
    %p42 = scmp.eq.s32.totalorder %s26, 1
    %p43 = por %p41, %p42
    %p44 = scmp.ne.s32.totalorder %s36, %s39
    %p45 = scmp.eq.s32.totalorder %s26, 0
    %p46 = por %p44, %p45
    %p47 = scmp.ne.s32.totalorder %s36, %s39
    %p48 = scmp.eq.s32.totalorder %s31, 1
    %p49 = por %p47, %p48
    %p50 = scmp.ne.s32.totalorder %s39, %s40
    %p51 = scmp.eq.s32.totalorder %s31, 0
    %p52 = por %p50, %p51
    %p53 = scmp.ne.s32.totalorder %s39, %s40
    %p54 = scmp.eq.s32.totalorder %s32, 1
    %p55 = por %p53, %p54
    %p57 = scmp.ne.s32.totalorder %s40, %s56
    %p58 = scmp.eq.s32.totalorder %s32, 0
    %p59 = por %p57, %p58
    %s61 = sadd.s32 %s60, 1
    %p64 = scmp.eq.s32.totalorder %s26, 1
    %p65 = scmp.ne.s32.totalorder %s60, %s62
    %p66 = scmp.eq.s32.totalorder %s26, 0
    %p67 = por %p65, %p66
    %p68 = scmp.ne.s32.totalorder %s60, %s62
    %p69 = scmp.eq.s32.totalorder %s31, 1
    %p70 = por %p68, %p69
    %p71 = scmp.ne.s32.totalorder %s62, %s63
    %p72 = scmp.eq.s32.totalorder %s31, 0
    %p73 = por %p71, %p72
    %p74 = scmp.ne.s32.totalorder %s62, %s63
    %p75 = scmp.eq.s32.totalorder %s32, 1
    %p76 = por %p74, %p75
    %p78 = scmp.ne.s32.totalorder %s63, %s77
    %p79 = scmp.eq.s32.totalorder %s32, 0
    %p80 = por %p78, %p79
    %s82 = sadd.s32 %s81, 1
    %p85 = scmp.eq.s32.totalorder %s26, 1
    %p86 = scmp.ne.s32.totalorder %s81, %s83
    %p87 = scmp.eq.s32.totalorder %s26, 0
    %p88 = por %p86, %p87
    %p89 = scmp.ne.s32.totalorder %s81, %s83
    %p90 = scmp.eq.s32.totalorder %s31, 1
    %p91 = por %p89, %p90
    %p92 = scmp.ne.s32.totalorder %s83, %s84
    %p93 = scmp.eq.s32.totalorder %s31, 0
    %p94 = por %p92, %p93
    %p95 = scmp.ne.s32.totalorder %s83, %s84
    %p96 = scmp.eq.s32.totalorder %s32, 1
    %p97 = por %p95, %p96
    %p99 = scmp.ne.s32.totalorder %s84, %s98
    %p100 = scmp.eq.s32.totalorder %s32, 0
    %p101 = por %p99, %p100
    %s103 = sadd.s32 %s102, 1
    %p106 = scmp.eq.s32.totalorder %s26, 1
    %p107 = scmp.ne.s32.totalorder %s102, %s104
    %p108 = scmp.eq.s32.totalorder %s26, 0
    %p109 = por %p107, %p108
    %p110 = scmp.ne.s32.totalorder %s102, %s104
    %p111 = scmp.eq.s32.totalorder %s31, 1
    %p112 = por %p110, %p111
    %p113 = scmp.ne.s32.totalorder %s104, %s105
    %p114 = scmp.eq.s32.totalorder %s31, 0
    %p115 = por %p113, %p114
    %p116 = scmp.ne.s32.totalorder %s104, %s105
    %p117 = scmp.eq.s32.totalorder %s32, 1
    %p118 = por %p116, %p117
    %p120 = scmp.ne.s32.totalorder %s105, %s119
    %p121 = scmp.eq.s32.totalorder %s32, 0
    %p122 = por %p120, %p121
    %s124 = sadd.s32 %s123, 1
    %p127 = scmp.eq.s32.totalorder %s26, 1
    %p128 = scmp.ne.s32.totalorder %s123, %s125
    %p129 = scmp.eq.s32.totalorder %s26, 0
    %p130 = por %p128, %p129
    %p131 = scmp.ne.s32.totalorder %s123, %s125
    %p132 = scmp.eq.s32.totalorder %s31, 1
    %p133 = por %p131, %p132
    %p134 = scmp.ne.s32.totalorder %s125, %s126
    %p135 = scmp.eq.s32.totalorder %s31, 0
    %p136 = por %p134, %p135
    %p137 = scmp.ne.s32.totalorder %s125, %s126
    %p138 = scmp.eq.s32.totalorder %s32, 1
    %p139 = por %p137, %p138
    %p141 = scmp.ne.s32.totalorder %s126, %s140
    %p142 = scmp.eq.s32.totalorder %s32, 0
    %p143 = por %p141, %p142
    %s145 = sadd.s32 %s144, 1
    %p148 = scmp.eq.s32.totalorder %s26, 1
    %p149 = scmp.ne.s32.totalorder %s144, %s146
    %p150 = scmp.eq.s32.totalorder %s26, 0
    %p151 = por %p149, %p150
    %p152 = scmp.ne.s32.totalorder %s144, %s146
    %p153 = scmp.eq.s32.totalorder %s31, 1
    %p154 = por %p152, %p153
    %p155 = scmp.ne.s32.totalorder %s146, %s147
    %p156 = scmp.eq.s32.totalorder %s31, 0
    %p157 = por %p155, %p156
    %p158 = scmp.ne.s32.totalorder %s146, %s147
    %p159 = scmp.eq.s32.totalorder %s32, 1
    %p160 = por %p158, %p159
    %p162 = scmp.ne.s32.totalorder %s147, %s161
    %p163 = scmp.eq.s32.totalorder %s32, 0
    %p164 = por %p162, %p163
    %s166 = sadd.s32 %s165, 1
    %p169 = scmp.eq.s32.totalorder %s26, 1
    %p170 = scmp.ne.s32.totalorder %s165, %s167
    %p171 = scmp.eq.s32.totalorder %s26, 0
    %p172 = por %p170, %p171
    %p173 = scmp.ne.s32.totalorder %s165, %s167
    %p174 = scmp.eq.s32.totalorder %s31, 1
    %p175 = por %p173, %p174
    %p176 = scmp.ne.s32.totalorder %s167, %s168
    %p177 = scmp.eq.s32.totalorder %s31, 0
    %p178 = por %p176, %p177
    %p179 = scmp.ne.s32.totalorder %s167, %s168
    %p180 = scmp.eq.s32.totalorder %s32, 1
    %p181 = por %p179, %p180
    %p183 = scmp.ne.s32.totalorder %s168, %s182
    %p184 = scmp.eq.s32.totalorder %s32, 0
    %p185 = por %p183, %p184
    %s187 = sadd.s32 %s186, 1
    %p190 = scmp.eq.s32.totalorder %s26, 1
    %p191 = scmp.ne.s32.totalorder %s186, %s188
    %p192 = scmp.eq.s32.totalorder %s26, 0
    %p193 = por %p191, %p192
    %p194 = scmp.ne.s32.totalorder %s186, %s188
    %p195 = scmp.eq.s32.totalorder %s31, 1
    %p196 = por %p194, %p195
    %p197 = scmp.ne.s32.totalorder %s188, %s189
    %p198 = scmp.eq.s32.totalorder %s31, 0
    %p199 = por %p197, %p198
    %p200 = scmp.ne.s32.totalorder %s188, %s189
    %p201 = scmp.eq.s32.totalorder %s32, 1
    %p202 = por %p200, %p201
    %p204 = scmp.ne.s32.totalorder %s189, %s203
    %p205 = scmp.eq.s32.totalorder %s32, 0
    %p206 = por %p204, %p205
    %s208 = sadd.s32 %s207, 1
    %p211 = scmp.eq.s32.totalorder %s26, 1
    %p212 = scmp.ne.s32.totalorder %s207, %s209
    %p213 = scmp.eq.s32.totalorder %s26, 0
    %p214 = por %p212, %p213
    %p215 = scmp.ne.s32.totalorder %s207, %s209
    %p216 = scmp.eq.s32.totalorder %s31, 1
    %p217 = por %p215, %p216
    %p218 = scmp.ne.s32.totalorder %s209, %s210
    %p219 = scmp.eq.s32.totalorder %s31, 0
    %p220 = por %p218, %p219
    %p221 = scmp.ne.s32.totalorder %s209, %s210
    %p222 = scmp.eq.s32.totalorder %s32, 1
    %p223 = por %p221, %p222
    %p225 = scmp.ne.s32.totalorder %s210, %s224
    %p226 = scmp.eq.s32.totalorder %s32, 0
    %p227 = por %p225, %p226
    %s229 = sadd.s32 %s228, 1
    %p232 = scmp.eq.s32.totalorder %s26, 1
    %p233 = scmp.ne.s32.totalorder %s228, %s230
    %p234 = scmp.eq.s32.totalorder %s26, 0
    %p235 = por %p233, %p234
    %p236 = scmp.ne.s32.totalorder %s228, %s230
    %p237 = scmp.eq.s32.totalorder %s31, 1
    %p238 = por %p236, %p237
    %p239 = scmp.ne.s32.totalorder %s230, %s231
    %p240 = scmp.eq.s32.totalorder %s31, 0
    %p241 = por %p239, %p240
    %p242 = scmp.ne.s32.totalorder %s230, %s231
    %p243 = scmp.eq.s32.totalorder %s32, 1
    %p244 = por %p242, %p243
    %p246 = scmp.ne.s32.totalorder %s231, %s245
    %p247 = scmp.eq.s32.totalorder %s32, 0
    %p248 = por %p246, %p247
    %s250 = sadd.s32 %s249, 1
    %p253 = scmp.eq.s32.totalorder %s26, 1
    %p254 = scmp.ne.s32.totalorder %s249, %s251
    %p255 = scmp.eq.s32.totalorder %s26, 0
    %p256 = por %p254, %p255
    %p257 = scmp.ne.s32.totalorder %s249, %s251
    %p258 = scmp.eq.s32.totalorder %s31, 1
    %p259 = por %p257, %p258
    %p260 = scmp.ne.s32.totalorder %s251, %s252
    %p261 = scmp.eq.s32.totalorder %s31, 0
    %p262 = por %p260, %p261
    %p263 = scmp.ne.s32.totalorder %s251, %s252
    %p264 = scmp.eq.s32.totalorder %s32, 1
    %p265 = por %p263, %p264
    %p267 = scmp.ne.s32.totalorder %s252, %s266
    %p268 = scmp.eq.s32.totalorder %s32, 0
    %p269 = por %p267, %p268
    %s271 = sadd.s32 %s270, 1
    %p274 = scmp.eq.s32.totalorder %s26, 1
    %p275 = scmp.ne.s32.totalorder %s270, %s272
    %p276 = scmp.eq.s32.totalorder %s26, 0
    %p277 = por %p275, %p276
    %p278 = scmp.ne.s32.totalorder %s270, %s272
    %p279 = scmp.eq.s32.totalorder %s31, 1
    %p280 = por %p278, %p279
    %p281 = scmp.ne.s32.totalorder %s272, %s273
    %p282 = scmp.eq.s32.totalorder %s31, 0
    %p283 = por %p281, %p282
    %p284 = scmp.ne.s32.totalorder %s272, %s273
    %p285 = scmp.eq.s32.totalorder %s32, 1
    %p286 = por %p284, %p285
    %p288 = scmp.ne.s32.totalorder %s273, %s287
    %p289 = scmp.eq.s32.totalorder %s32, 0
    %p290 = por %p288, %p289
    %s292 = sadd.s32 %s291, 1
    %p295 = scmp.eq.s32.totalorder %s26, 1
    %p296 = scmp.ne.s32.totalorder %s291, %s293
    %p297 = scmp.eq.s32.totalorder %s26, 0
    %p298 = por %p296, %p297
    %p299 = scmp.ne.s32.totalorder %s291, %s293
    %p300 = scmp.eq.s32.totalorder %s31, 1
    %p301 = por %p299, %p300
    %p302 = scmp.ne.s32.totalorder %s293, %s294
    %p303 = scmp.eq.s32.totalorder %s31, 0
    %p304 = por %p302, %p303
    %p305 = scmp.ne.s32.totalorder %s293, %s294
    %p306 = scmp.eq.s32.totalorder %s32, 1
    %p307 = por %p305, %p306
    %p309 = scmp.ne.s32.totalorder %s294, %s308
    %p310 = scmp.eq.s32.totalorder %s32, 0
    %p311 = por %p309, %p310
    %s313 = sadd.s32 %s312, 1
    %p316 = scmp.eq.s32.totalorder %s26, 1
    %p317 = scmp.ne.s32.totalorder %s312, %s314
    %p318 = scmp.eq.s32.totalorder %s26, 0
    %p319 = por %p317, %p318
    %p320 = scmp.ne.s32.totalorder %s312, %s314
    %p321 = scmp.eq.s32.totalorder %s31, 1
    %p322 = por %p320, %p321
    %p323 = scmp.ne.s32.totalorder %s314, %s315
    %p324 = scmp.eq.s32.totalorder %s31, 0
    %p325 = por %p323, %p324
    %p326 = scmp.ne.s32.totalorder %s314, %s315
    %p327 = scmp.eq.s32.totalorder %s32, 1
    %p328 = por %p326, %p327
    %p330 = scmp.ne.s32.totalorder %s315, %s329
    %p331 = scmp.eq.s32.totalorder %s32, 0
    %p332 = por %p330, %p331
    %s334 = sadd.s32 %s333, 1
    %p337 = scmp.eq.s32.totalorder %s26, 1
    %p338 = scmp.ne.s32.totalorder %s333, %s335
    %p339 = scmp.eq.s32.totalorder %s26, 0
    %p340 = por %p338, %p339
    %p341 = scmp.ne.s32.totalorder %s333, %s335
    %p342 = scmp.eq.s32.totalorder %s31, 1
    %p343 = por %p341, %p342
    %p344 = scmp.ne.s32.totalorder %s335, %s336
    %p345 = scmp.eq.s32.totalorder %s31, 0
    %p346 = por %p344, %p345
    %p347 = scmp.ne.s32.totalorder %s335, %s336
    %p348 = scmp.eq.s32.totalorder %s32, 1
    %p349 = por %p347, %p348
    %p351 = scmp.ne.s32.totalorder %s336, %s350
    %p352 = scmp.eq.s32.totalorder %s32, 0
    %p353 = por %p351, %p352
    %s355 = sadd.s32 %s354, 1
    %p358 = scmp.eq.s32.totalorder %s26, 1
    %p359 = scmp.ne.s32.totalorder %s354, %s356
    %p360 = scmp.eq.s32.totalorder %s26, 0
    %p361 = por %p359, %p360
    %p362 = scmp.ne.s32.totalorder %s354, %s356
    %p363 = scmp.eq.s32.totalorder %s31, 1
    %p364 = por %p362, %p363
    %p365 = scmp.ne.s32.totalorder %s356, %s357
    %p366 = scmp.eq.s32.totalorder %s31, 0
    %p367 = por %p365, %p366
    %p368 = scmp.ne.s32.totalorder %s356, %s357
    %p369 = scmp.eq.s32.totalorder %s32, 1
    %p370 = por %p368, %p369
    %p372 = scmp.ne.s32.totalorder %s357, %s371
    %p373 = scmp.eq.s32.totalorder %s32, 0
    %p374 = por %p372, %p373
    %s376 = sadd.s32 %s375, 1
    %p379 = scmp.eq.s32.totalorder %s26, 1
    %p380 = scmp.ne.s32.totalorder %s375, %s377
    %p381 = scmp.eq.s32.totalorder %s26, 0
    %p382 = por %p380, %p381
    %p383 = scmp.ne.s32.totalorder %s375, %s377
    %p384 = scmp.eq.s32.totalorder %s31, 1
    %p385 = por %p383, %p384
    %p386 = scmp.ne.s32.totalorder %s377, %s378
    %p387 = scmp.eq.s32.totalorder %s31, 0
    %p388 = por %p386, %p387
    %p389 = scmp.ne.s32.totalorder %s377, %s378
    %p390 = scmp.eq.s32.totalorder %s32, 1
    %p391 = por %p389, %p390
    %p393 = scmp.ne.s32.totalorder %s378, %s392
    %p394 = scmp.eq.s32.totalorder %s32, 0
    %p395 = por %p393, %p394
    %s397 = sadd.s32 %s396, 1
    %p400 = scmp.eq.s32.totalorder %s26, 1
    %p401 = scmp.ne.s32.totalorder %s396, %s398
    %p402 = scmp.eq.s32.totalorder %s26, 0
    %p403 = por %p401, %p402
    %p404 = scmp.ne.s32.totalorder %s396, %s398
    %p405 = scmp.eq.s32.totalorder %s31, 1
    %p406 = por %p404, %p405
    %p407 = scmp.ne.s32.totalorder %s398, %s399
    %p408 = scmp.eq.s32.totalorder %s31, 0
    %p409 = por %p407, %p408
    %p410 = scmp.ne.s32.totalorder %s398, %s399
    %p411 = scmp.eq.s32.totalorder %s32, 1
    %p412 = por %p410, %p411
    %p414 = scmp.ne.s32.totalorder %s399, %s413
    %p415 = scmp.eq.s32.totalorder %s32, 0
    %p416 = por %p414, %p415
    %s418 = sadd.s32 %s417, 1
    %p421 = scmp.eq.s32.totalorder %s26, 1
    %p422 = scmp.ne.s32.totalorder %s417, %s419
    %p423 = scmp.eq.s32.totalorder %s26, 0
    %p424 = por %p422, %p423
    %p425 = scmp.ne.s32.totalorder %s417, %s419
    %p426 = scmp.eq.s32.totalorder %s31, 1
    %p427 = por %p425, %p426
    %p428 = scmp.ne.s32.totalorder %s419, %s420
    %p429 = scmp.eq.s32.totalorder %s31, 0
    %p430 = por %p428, %p429
    %p431 = scmp.ne.s32.totalorder %s419, %s420
    %p432 = scmp.eq.s32.totalorder %s32, 1
    %p433 = por %p431, %p432
    %p435 = scmp.ne.s32.totalorder %s420, %s434
    %p436 = scmp.eq.s32.totalorder %s32, 0
    %p437 = por %p435, %p436
    %s439 = sadd.s32 %s438, 1
    %p442 = scmp.eq.s32.totalorder %s26, 1
    %p443 = scmp.ne.s32.totalorder %s438, %s440
    %p444 = scmp.eq.s32.totalorder %s26, 0
    %p445 = por %p443, %p444
    %p446 = scmp.ne.s32.totalorder %s438, %s440
    %p447 = scmp.eq.s32.totalorder %s31, 1
    %p448 = por %p446, %p447
    %p449 = scmp.ne.s32.totalorder %s440, %s441
    %p450 = scmp.eq.s32.totalorder %s31, 0
    %p451 = por %p449, %p450
    %p452 = scmp.ne.s32.totalorder %s440, %s441
    %p453 = scmp.eq.s32.totalorder %s32, 1
    %p454 = por %p452, %p453
    %p456 = scmp.ne.s32.totalorder %s441, %s455
    %p457 = scmp.eq.s32.totalorder %s32, 0
    %p458 = por %p456, %p457
    %s459 = ssub.s32 %s26, %s33
    %p460 = scmp.eq.s32.totalorder %s459, 0
    %s462 = sadd.s32 %s461, 1
    %s463 = scalar_select %p460, %s461, %s462
    %p466 = pneg %p460
    %p467 = scmp.eq.s32.totalorder %s26, 1
    %p468 = por %p466, %p467
    %p469 = scmp.ne.s32.totalorder %s461, %s464
    %p470 = scmp.eq.s32.totalorder %s26, 0
    %p471 = por %p469, %p470
    %p472 = scmp.ne.s32.totalorder %s461, %s464
    %p473 = scmp.eq.s32.totalorder %s31, 1
    %p474 = por %p472, %p473
    %p475 = scmp.ne.s32.totalorder %s464, %s465
    %p476 = scmp.eq.s32.totalorder %s31, 0
    %p477 = por %p475, %p476
    %p478 = scmp.ne.s32.totalorder %s464, %s465
    %p479 = scmp.eq.s32.totalorder %s32, 1
    %p480 = por %p478, %p479
    %p482 = scmp.ne.s32.totalorder %s465, %s481
    %p483 = scmp.eq.s32.totalorder %s32, 0
    %p484 = por %p482, %p483
    %p485 = scmp.le.s32.totalorder 1, %s26
    %p486 = scmp.lt.s32.totalorder %s26, 3
    %p487 = pnand %p485, %p486
    %p488 = pneg %p487
    // Predicated region
    $region9: #{padb_forward.1} parent=5 // pred_check
      _
    $region10: #{padb_forward.1} parent=5 // pred_check_branch
      %490 = sbr.rel (%p487) target = $region12
    $region11: #{padb_forward.1} parent=5 // pred_region
      %s491 = ssub.s32 %s26, 1
      // Predicated region
      $region13: #{padb_forward.1} parent=11 // pred_check
        %p492 = pneg %p73
      $region14: #{padb_forward.1} parent=11 // pred_check_branch
        %494 = sbr.rel (%p492) target = $region16
      $region15: #{padb_forward.1} parent=11 // pred_region
        _
      $region16: #{padb_forward.1} parent=11 // pred_fallthru
        _
      // Predicated region
      $region17: #{padb_forward.1} parent=11 // pred_check
        %p495 = pneg %p94
      $region18: #{padb_forward.1} parent=11 // pred_check_branch
        %497 = sbr.rel (%p495) target = $region20
      $region19: #{padb_forward.1} parent=11 // pred_region
        _
      $region20: #{padb_forward.1} parent=11 // pred_fallthru
        _
      // Predicated region
      $region21: #{padb_forward.1} parent=11 // pred_check
        %p498 = pneg %p115
      $region22: #{padb_forward.1} parent=11 // pred_check_branch
        %500 = sbr.rel (%p498) target = $region24
      $region23: #{padb_forward.1} parent=11 // pred_region
        _
      $region24: #{padb_forward.1} parent=11 // pred_fallthru
        _
      // Predicated region
      $region25: #{padb_forward.1} parent=11 // pred_check
        %p501 = pneg %p136
      $region26: #{padb_forward.1} parent=11 // pred_check_branch
        %503 = sbr.rel (%p501) target = $region28
      $region27: #{padb_forward.1} parent=11 // pred_region
        _
      $region28: #{padb_forward.1} parent=11 // pred_fallthru
        _
      // Predicated region
      $region29: #{padb_forward.1} parent=11 // pred_check
        %p504 = pneg %p157
      $region30: #{padb_forward.1} parent=11 // pred_check_branch
        %506 = sbr.rel (%p504) target = $region32
      $region31: #{padb_forward.1} parent=11 // pred_region
        _
      $region32: #{padb_forward.1} parent=11 // pred_fallthru
        _
      // Predicated region
      $region33: #{padb_forward.1} parent=11 // pred_check
        %p507 = pneg %p178
      $region34: #{padb_forward.1} parent=11 // pred_check_branch
        %509 = sbr.rel (%p507) target = $region36
      $region35: #{padb_forward.1} parent=11 // pred_region
        _
      $region36: #{padb_forward.1} parent=11 // pred_fallthru
        _
      // Predicated region
      $region37: #{padb_forward.1} parent=11 // pred_check
        %p510 = pneg %p199
      $region38: #{padb_forward.1} parent=11 // pred_check_branch
        %512 = sbr.rel (%p510) target = $region40
      $region39: #{padb_forward.1} parent=11 // pred_region
        _
      $region40: #{padb_forward.1} parent=11 // pred_fallthru
        _
      // Predicated region
      $region41: #{padb_forward.1} parent=11 // pred_check
        %p513 = pneg %p220
      $region42: #{padb_forward.1} parent=11 // pred_check_branch
        %515 = sbr.rel (%p513) target = $region44
      $region43: #{padb_forward.1} parent=11 // pred_region
        _
      $region44: #{padb_forward.1} parent=11 // pred_fallthru
        _
      // Predicated region
      $region45: #{padb_forward.1} parent=11 // pred_check
        %p516 = pneg %p241
      $region46: #{padb_forward.1} parent=11 // pred_check_branch
        %518 = sbr.rel (%p516) target = $region48
      $region47: #{padb_forward.1} parent=11 // pred_region
        _
      $region48: #{padb_forward.1} parent=11 // pred_fallthru
        _
      // Predicated region
      $region49: #{padb_forward.1} parent=11 // pred_check
        %p519 = pneg %p262
      $region50: #{padb_forward.1} parent=11 // pred_check_branch
        %521 = sbr.rel (%p519) target = $region52
      $region51: #{padb_forward.1} parent=11 // pred_region
        _
      $region52: #{padb_forward.1} parent=11 // pred_fallthru
        _
      // Predicated region
      $region53: #{padb_forward.1} parent=11 // pred_check
        %p522 = pneg %p283
      $region54: #{padb_forward.1} parent=11 // pred_check_branch
        %524 = sbr.rel (%p522) target = $region56
      $region55: #{padb_forward.1} parent=11 // pred_region
        _
      $region56: #{padb_forward.1} parent=11 // pred_fallthru
        _
      // Predicated region
      $region57: #{padb_forward.1} parent=11 // pred_check
        %p525 = pneg %p304
      $region58: #{padb_forward.1} parent=11 // pred_check_branch
        %527 = sbr.rel (%p525) target = $region60
      $region59: #{padb_forward.1} parent=11 // pred_region
        _
      $region60: #{padb_forward.1} parent=11 // pred_fallthru
        _
      // Predicated region
      $region61: #{padb_forward.1} parent=11 // pred_check
        %p528 = pneg %p325
      $region62: #{padb_forward.1} parent=11 // pred_check_branch
        %530 = sbr.rel (%p528) target = $region64
      $region63: #{padb_forward.1} parent=11 // pred_region
        _
      $region64: #{padb_forward.1} parent=11 // pred_fallthru
        _
      // Predicated region
      $region65: #{padb_forward.1} parent=11 // pred_check
        %p531 = pneg %p346
      $region66: #{padb_forward.1} parent=11 // pred_check_branch
        %533 = sbr.rel (%p531) target = $region68
      $region67: #{padb_forward.1} parent=11 // pred_region
        _
      $region68: #{padb_forward.1} parent=11 // pred_fallthru
        _
      // Predicated region
      $region69: #{padb_forward.1} parent=11 // pred_check
        %p534 = pneg %p367
      $region70: #{padb_forward.1} parent=11 // pred_check_branch
        %536 = sbr.rel (%p534) target = $region72
      $region71: #{padb_forward.1} parent=11 // pred_region
        _
      $region72: #{padb_forward.1} parent=11 // pred_fallthru
        _
      // Predicated region
      $region73: #{padb_forward.1} parent=11 // pred_check
        %p537 = pneg %p388
      $region74: #{padb_forward.1} parent=11 // pred_check_branch
        %539 = sbr.rel (%p537) target = $region76
      $region75: #{padb_forward.1} parent=11 // pred_region
        _
      $region76: #{padb_forward.1} parent=11 // pred_fallthru
        _
      // Predicated region
      $region77: #{padb_forward.1} parent=11 // pred_check
        %p540 = pneg %p409
      $region78: #{padb_forward.1} parent=11 // pred_check_branch
        %542 = sbr.rel (%p540) target = $region80
      $region79: #{padb_forward.1} parent=11 // pred_region
        _
      $region80: #{padb_forward.1} parent=11 // pred_fallthru
        _
      // Predicated region
      $region81: #{padb_forward.1} parent=11 // pred_check
        %p543 = pneg %p430
      $region82: #{padb_forward.1} parent=11 // pred_check_branch
        %545 = sbr.rel (%p543) target = $region84
      $region83: #{padb_forward.1} parent=11 // pred_region
        _
      $region84: #{padb_forward.1} parent=11 // pred_fallthru
        _
      // Predicated region
      $region85: #{padb_forward.1} parent=11 // pred_check
        %p546 = pneg %p451
      $region86: #{padb_forward.1} parent=11 // pred_check_branch
        %548 = sbr.rel (%p546) target = $region88
      $region87: #{padb_forward.1} parent=11 // pred_region
        _
      $region88: #{padb_forward.1} parent=11 // pred_fallthru
        _
    $region12: #{padb_forward.1} parent=5 // pred_fallthru
      _
    %p549 = scmp.lt.s32.totalorder %s26, 2
    // Predicated region
    $region89: #{padb_forward.1} parent=5 // pred_check
      %p550 = pneg %p549
    $region90: #{padb_forward.1} parent=5 // pred_check_branch
      %552 = sbr.rel (%p550) target = $region92
    $region91: #{padb_forward.1} parent=5 // pred_region
      // Predicated region
      $region93: #{padb_forward.1} parent=91 // pred_check
        %p553 = pneg %p46
      $region94: #{padb_forward.1} parent=91 // pred_check_branch
        %555 = sbr.rel (%p553) target = $region96
      $region95: #{padb_forward.1} parent=91 // pred_region
        %p556 = scmp.lt.s32.totalorder %s26, 1
        %s557 = scalar_select %p556, %s26, 1
        %s558 = smul.addr %s557, 2
        %s559 = smul.addr %s558, 4
        %s560 = scalar_lea.vmem %s0, %s559
      $region96: #{padb_forward.1} parent=91 // pred_fallthru
        _
    $region92: #{padb_forward.1} parent=5 // pred_fallthru
      _
    %p561 = scmp.le.s32.totalorder 1, %s26
    %p562 = scmp.lt.s32.totalorder %s26, 3
    %p563 = pnand %p561, %p562
    %p564 = pneg %p563
    // Predicated region
    $region97: #{padb_forward.1} parent=5 // pred_check
      _
    $region98: #{padb_forward.1} parent=5 // pred_check_branch
      %566 = sbr.rel (%p563) target = $region100
    $region99: #{padb_forward.1} parent=5 // pred_region
      %s567 = ssub.s32 %s26, 1
      %p568 = scmp.lt.s32.totalorder %s31, 1
      %s569 = scalar_select %p568, %s31, 1
      %s570 = smul.addr %s569, 2
      %s571 = smul.addr %s570, 4
      %s572 = scalar_lea.vmem %s0, %s571
      %p573 = pneg %p52
      %p574 = pneg %p49
      %p575 = pneg %p73
      %p576 = pneg %p70
      %p577 = pneg %p94
      %p578 = pneg %p91
      %p579 = pneg %p115
      %p580 = pneg %p112
      %p581 = pneg %p136
      %p582 = pneg %p133
      %p583 = pneg %p157
      %p584 = pneg %p154
      %p585 = pneg %p178
      %p586 = pneg %p175
      %p587 = pneg %p199
      %p588 = pneg %p196
      %p589 = pneg %p220
      %p590 = pneg %p217
      %p591 = pneg %p241
      %p592 = pneg %p238
      %p593 = pneg %p262
      %p594 = pneg %p259
      %p595 = pneg %p283
      %p596 = pneg %p280
      %p597 = pneg %p304
      %p598 = pneg %p301
      %p599 = pneg %p325
      %p600 = pneg %p322
      %p601 = pneg %p346
      %p602 = pneg %p343
      %p603 = pneg %p367
      %p604 = pneg %p364
      %p605 = pneg %p388
      %p606 = pneg %p385
      %p607 = pneg %p409
      %p608 = pneg %p406
      %p609 = pneg %p430
      %p610 = pneg %p427
      %p611 = pneg %p451
      %p612 = pneg %p448
      %p613 = pneg %p477
      %p614 = pneg %p474
      %p615 = scmp.lt.s32.totalorder %s31, 1
      %s616 = scalar_select %p615, %s31, 1
      %s617 = smul.addr %s616, 2
      %s618 = smul.addr %s617, 4
      %s619 = scalar_lea.vmem %s20, %s618
      %p620 = scmp.lt.s32.totalorder %s31, 1
      %s621 = scalar_select %p620, %s31, 1
      %s622 = smul.addr %s621, 2
      %s623 = smul.addr %s622, 4
      %s624 = scalar_lea.vmem %s0, %s623
      %p625 = scmp.lt.s32.totalorder %s31, 1
      %s626 = scalar_select %p625, %s31, 1
      %s627 = smul.addr %s626, 2
      %s628 = smul.addr %s627, 4
      %s629 = scalar_lea.vmem %s20, %s628
      %v630 = vld [vmem:[%s624] sm:$0xff]
      %v631 = vld [vmem:[%s1] ss:$2 sm:$0x3]
      %s632 = scalar_lea.vmem %s1, 1
      %v633 = vld [vmem:[%s632] ss:$2 sm:$0x3]
      %634 = vst [vmem:[#allocation2] sm:$0xff] 0.0
      %635 = vst [vmem:[#allocation2 + $0x8] sm:$0xff] 0.0
      %v636 = vld [vmem:[%s2] sm:$0xf]
      %638 = vset.pattern.permute.xlu0 0
      %639 = vperm.xlu0 %638, %v636
      %v640 = vpop.permute.xlu0 %639
      %v643 = vperm.slane %v630, 0
      %v644 = vperm.slane %v630, 4
      %v647 = vperm.slane %v643, 0
      %v648 = vperm.slane %v644, 0
      %v649 = vmul.f32 %v640, %v647
      %v650 = vmul.f32 %v640, %v648
      %651 = vset.pattern.permute.xlu0 1
      %652 = vperm.xlu0 %651, %v636
      %v653 = vpop.permute.xlu0 %652
      %v655 = vperm.slane %v630, 1
      %v656 = vperm.slane %v630, 5
      %v659 = vperm.slane %v655, 1
      %v660 = vperm.slane %v656, 1
      %v661 = vmul.f32 %v653, %v659
      %v662 = vmul.f32 %v653, %v660
      %v663 = vadd.f32 %v649, %v661
      %v664 = vadd.f32 %v650, %v662
      %665 = vset.pattern.permute.xlu0 2
      %666 = vperm.xlu0 %665, %v636
      %v667 = vpop.permute.xlu0 %666
      %v669 = vperm.slane %v630, 2
      %v670 = vperm.slane %v630, 6
      %v673 = vperm.slane %v669, 2
      %v674 = vperm.slane %v670, 2
      %v675 = vmul.f32 %v667, %v673
      %v676 = vmul.f32 %v667, %v674
      %v677 = vadd.f32 %v663, %v675
      %v678 = vadd.f32 %v664, %v676
      %679 = vset.pattern.permute.xlu0 3
      %680 = vperm.xlu0 %679, %v636
      %v681 = vpop.permute.xlu0 %680
      %v683 = vperm.slane %v630, 3
      %v684 = vperm.slane %v630, 7
      %v687 = vperm.slane %v683, 3
      %v688 = vperm.slane %v684, 3
      %v689 = vmul.f32 %v681, %v687
      %v690 = vmul.f32 %v681, %v688
      %v691 = vadd.f32 %v677, %v689
      %v692 = vadd.f32 %v678, %v690
      %v693 = vld [vmem:[%s3] sm:$0xf]
      %695 = vset.pattern.permute.xlu0 0
      %696 = vperm.xlu0 %695, %v693
      %v697 = vpop.permute.xlu0 %696
      %v699 = vadd.f32 %v691, %v697
      %v700 = vadd.f32 %v692, %v697
      %v701 = vmul.f32 %v699, 0.2
      %v702 = vmul.f32 %v700, 0.2
      %v703 = vmax.f32 %v699, %v701
      %v704 = vmax.f32 %v700, %v702
      %v705 = vld [vmem:[%s4] sm:$0xf]
      %706 = vst [vmem:[#allocation2 + $0x4] sm:$0xff] %v630
      %v707 = vld [vmem:[#allocation2] sm:$0xff]
      %v708 = vld [vmem:[#allocation2 + $0x8] sm:$0xf]
      %v710 = vperm.slane %v631, 0
      %v711 = vperm.slane %v631, 1
      %v712 = vrot.slane %v711, 4
      %vm713 = vcmask 1043456
      %v714 = vsel %vm713, %v710, %v712
      %715 = vrot.lane.b32.xlu0 %v714, 111
      %v716 = vpop.permute.xlu0 %715
      %v717 = vrot.slane %v716, 4
      %vm718 = vcmask 908288
      %v719 = vsel %vm718, %v717, %v716
      %v722 = vmul.f32 %v707, %v719
      %v723 = vmul.f32 %v708, %v717
      %725 = vset.pattern.permute.xlu0 0
      %726 = vperm.xlu0 %725, %v705
      %v727 = vpop.permute.xlu0 %726
      %v731 = vperm.slane %v722, 0
      %v732 = vperm.slane %v722, 4
      %v733 = vperm.slane %v723, 0
      %v737 = vperm.slane %v731, 0
      %v738 = vperm.slane %v732, 0
      %v739 = vperm.slane %v733, 0
      %v740 = vmul.f32 %v727, %v737
      %v741 = vmul.f32 %v727, %v738
      %v742 = vmul.f32 %v727, %v739
      %743 = vset.pattern.permute.xlu0 1
      %744 = vperm.xlu0 %743, %v705
      %v745 = vpop.permute.xlu0 %744
      %v747 = vperm.slane %v722, 1
      %v748 = vperm.slane %v722, 5
      %v749 = vperm.slane %v723, 1
      %v753 = vperm.slane %v747, 1
      %v754 = vperm.slane %v748, 1
      %v755 = vperm.slane %v749, 1
      %v756 = vmul.f32 %v745, %v753
      %v757 = vmul.f32 %v745, %v754
      %v758 = vmul.f32 %v745, %v755
      %v759 = vadd.f32 %v740, %v756
      %v760 = vadd.f32 %v741, %v757
      %v761 = vadd.f32 %v742, %v758
      %762 = vset.pattern.permute.xlu0 2
      %763 = vperm.xlu0 %762, %v705
      %v764 = vpop.permute.xlu0 %763
      %v766 = vperm.slane %v722, 2
      %v767 = vperm.slane %v722, 6
      %v768 = vperm.slane %v723, 2
      %v772 = vperm.slane %v766, 2
      %v773 = vperm.slane %v767, 2
      %v774 = vperm.slane %v768, 2
      %v775 = vmul.f32 %v764, %v772
      %v776 = vmul.f32 %v764, %v773
      %v777 = vmul.f32 %v764, %v774
      %v778 = vadd.f32 %v759, %v775
      %v779 = vadd.f32 %v760, %v776
      %v780 = vadd.f32 %v761, %v777
      %781 = vset.pattern.permute.xlu0 3
      %782 = vperm.xlu0 %781, %v705
      %v783 = vpop.permute.xlu0 %782
      %v785 = vperm.slane %v722, 3
      %v786 = vperm.slane %v722, 7
      %v787 = vperm.slane %v723, 3
      %v791 = vperm.slane %v785, 3
      %v792 = vperm.slane %v786, 3
      %v793 = vperm.slane %v787, 3
      %v794 = vmul.f32 %v783, %v791
      %v795 = vmul.f32 %v783, %v792
      %v796 = vmul.f32 %v783, %v793
      %v797 = vadd.f32 %v778, %v794
      %v798 = vadd.f32 %v779, %v795
      %v799 = vadd.f32 %v780, %v796
      %800 = vset.pattern.permute.xlu0 4
      %801 = vperm.xlu0 %800, %v705
      %v802 = vpop.permute.xlu0 %801
      %v806 = vperm.slane %v707, 0
      %v807 = vperm.slane %v707, 4
      %v808 = vperm.slane %v708, 0
      %v812 = vperm.slane %v806, 0
      %v813 = vperm.slane %v807, 0
      %v814 = vperm.slane %v808, 0
      %v815 = vmul.f32 %v802, %v812
      %v816 = vmul.f32 %v802, %v813
      %v817 = vmul.f32 %v802, %v814
      %818 = vset.pattern.permute.xlu0 5
      %819 = vperm.xlu0 %818, %v705
      %v820 = vpop.permute.xlu0 %819
      %v822 = vperm.slane %v707, 1
      %v823 = vperm.slane %v707, 5
      %v824 = vperm.slane %v708, 1
      %v828 = vperm.slane %v822, 1
      %v829 = vperm.slane %v823, 1
      %v830 = vperm.slane %v824, 1
      %v831 = vmul.f32 %v820, %v828
      %v832 = vmul.f32 %v820, %v829
      %v833 = vmul.f32 %v820, %v830
      %v834 = vadd.f32 %v815, %v831
      %v835 = vadd.f32 %v816, %v832
      %v836 = vadd.f32 %v817, %v833
      %837 = vset.pattern.permute.xlu0 6
      %838 = vperm.xlu0 %837, %v705
      %v839 = vpop.permute.xlu0 %838
      %v841 = vperm.slane %v707, 2
      %v842 = vperm.slane %v707, 6
      %v843 = vperm.slane %v708, 2
      %v847 = vperm.slane %v841, 2
      %v848 = vperm.slane %v842, 2
      %v849 = vperm.slane %v843, 2
      %v850 = vmul.f32 %v839, %v847
      %v851 = vmul.f32 %v839, %v848
      %v852 = vmul.f32 %v839, %v849
      %v853 = vadd.f32 %v834, %v850
      %v854 = vadd.f32 %v835, %v851
      %v855 = vadd.f32 %v836, %v852
      %856 = vset.pattern.permute.xlu0 7
      %857 = vperm.xlu0 %856, %v705
      %v858 = vpop.permute.xlu0 %857
      %v860 = vperm.slane %v707, 3
      %v861 = vperm.slane %v707, 7
      %v862 = vperm.slane %v708, 3
      %v866 = vperm.slane %v860, 3
      %v867 = vperm.slane %v861, 3
      %v868 = vperm.slane %v862, 3
      %v869 = vmul.f32 %v858, %v866
      %v870 = vmul.f32 %v858, %v867
      %v871 = vmul.f32 %v858, %v868
      %v872 = vadd.f32 %v853, %v869
      %v873 = vadd.f32 %v854, %v870
      %v874 = vadd.f32 %v855, %v871
      %878 = vrot.lane.b32.xlu0 %v872, 127
      %v879 = vpop.permute.xlu0 %878
      %880 = vrot.lane.b32.xlu0 %v873, 127
      %v881 = vpop.permute.xlu0 %880
      %882 = vrot.lane.b32.xlu0 %v874, 127
      %v883 = vpop.permute.xlu0 %882
      %vm884 = vcmask 1039360
      %v885 = vsel %vm884, %v879, %v881
      %v886 = vsel %vm884, %v881, %v883
      %v890 = vadd.f32 %v797, %v885
      %v891 = vadd.f32 %v798, %v886
      %v892 = vadd.f32 %v799, %v883
      %v894 = vperm.slane %v633, 0
      %v895 = vperm.slane %v633, 1
      %v896 = vrot.slane %v895, 4
      %v897 = vsel %vm713, %v894, %v896
      %898 = vrot.lane.b32.xlu0 %v897, 113
      %v899 = vpop.permute.xlu0 %898
      %v900 = vrot.slane %v899, 4
      %vm901 = vcmask 924672
      %v902 = vsel %vm901, %v900, %v899
      %v905 = vmul.f32 %v707, %v902
      %v906 = vmul.f32 %v708, %v900
      %907 = vset.pattern.permute.xlu0 8
      %908 = vperm.xlu0 %907, %v705
      %v909 = vpop.permute.xlu0 %908
      %v913 = vperm.slane %v905, 0
      %v914 = vperm.slane %v905, 4
      %v915 = vperm.slane %v906, 0
      %v919 = vperm.slane %v913, 0
      %v920 = vperm.slane %v914, 0
      %v921 = vperm.slane %v915, 0
      %v922 = vmul.f32 %v909, %v919
      %v923 = vmul.f32 %v909, %v920
      %v924 = vmul.f32 %v909, %v921
      %925 = vset.pattern.permute.xlu0 9
      %926 = vperm.xlu0 %925, %v705
      %v927 = vpop.permute.xlu0 %926
      %v929 = vperm.slane %v905, 1
      %v930 = vperm.slane %v905, 5
      %v931 = vperm.slane %v906, 1
      %v935 = vperm.slane %v929, 1
      %v936 = vperm.slane %v930, 1
      %v937 = vperm.slane %v931, 1
      %v938 = vmul.f32 %v927, %v935
      %v939 = vmul.f32 %v927, %v936
      %v940 = vmul.f32 %v927, %v937
      %v941 = vadd.f32 %v922, %v938
      %v942 = vadd.f32 %v923, %v939
      %v943 = vadd.f32 %v924, %v940
      %944 = vset.pattern.permute.xlu0 10
      %945 = vperm.xlu0 %944, %v705
      %v946 = vpop.permute.xlu0 %945
      %v948 = vperm.slane %v905, 2
      %v949 = vperm.slane %v905, 6
      %v950 = vperm.slane %v906, 2
      %v954 = vperm.slane %v948, 2
      %v955 = vperm.slane %v949, 2
      %v956 = vperm.slane %v950, 2
      %v957 = vmul.f32 %v946, %v954
      %v958 = vmul.f32 %v946, %v955
      %v959 = vmul.f32 %v946, %v956
      %v960 = vadd.f32 %v941, %v957
      %v961 = vadd.f32 %v942, %v958
      %v962 = vadd.f32 %v943, %v959
      %963 = vset.pattern.permute.xlu0 11
      %964 = vperm.xlu0 %963, %v705
      %v965 = vpop.permute.xlu0 %964
      %v967 = vperm.slane %v905, 3
      %v968 = vperm.slane %v905, 7
      %v969 = vperm.slane %v906, 3
      %v973 = vperm.slane %v967, 3
      %v974 = vperm.slane %v968, 3
      %v975 = vperm.slane %v969, 3
      %v976 = vmul.f32 %v965, %v973
      %v977 = vmul.f32 %v965, %v974
      %v978 = vmul.f32 %v965, %v975
      %v979 = vadd.f32 %v960, %v976
      %v980 = vadd.f32 %v961, %v977
      %v981 = vadd.f32 %v962, %v978
      %985 = vrot.lane.b32.xlu0 %v979, 126
      %v986 = vpop.permute.xlu0 %985
      %987 = vrot.lane.b32.xlu0 %v980, 126
      %v988 = vpop.permute.xlu0 %987
      %989 = vrot.lane.b32.xlu0 %v981, 126
      %v990 = vpop.permute.xlu0 %989
      %vm991 = vcmask 1031168
      %v992 = vsel %vm991, %v986, %v988
      %v993 = vsel %vm991, %v988, %v990
      %v997 = vadd.f32 %v890, %v992
      %v998 = vadd.f32 %v891, %v993
      %v999 = vadd.f32 %v892, %v990
      %1000 = vrot.lane.b32.xlu0 %v714, 127
      %v1001 = vpop.permute.xlu0 %1000
      %v1002 = vrot.slane %v1001, 4
      %v1003 = vsel %vm884, %v1002, %v1001
      %v1006 = vmul.f32 %v707, %v1003
      %v1007 = vmul.f32 %v708, %v1002
      %1008 = vset.pattern.permute.xlu0 12
      %1009 = vperm.xlu0 %1008, %v705
      %v1010 = vpop.permute.xlu0 %1009
      %v1014 = vperm.slane %v1006, 0
      %v1015 = vperm.slane %v1006, 4
      %v1016 = vperm.slane %v1007, 0
      %v1020 = vperm.slane %v1014, 0
      %v1021 = vperm.slane %v1015, 0
      %v1022 = vperm.slane %v1016, 0
      %v1023 = vmul.f32 %v1010, %v1020
      %v1024 = vmul.f32 %v1010, %v1021
      %v1025 = vmul.f32 %v1010, %v1022
      %1026 = vset.pattern.permute.xlu0 13
      %1027 = vperm.xlu0 %1026, %v705
      %v1028 = vpop.permute.xlu0 %1027
      %v1030 = vperm.slane %v1006, 1
      %v1031 = vperm.slane %v1006, 5
      %v1032 = vperm.slane %v1007, 1
      %v1036 = vperm.slane %v1030, 1
      %v1037 = vperm.slane %v1031, 1
      %v1038 = vperm.slane %v1032, 1
      %v1039 = vmul.f32 %v1028, %v1036
      %v1040 = vmul.f32 %v1028, %v1037
      %v1041 = vmul.f32 %v1028, %v1038
      %v1042 = vadd.f32 %v1023, %v1039
      %v1043 = vadd.f32 %v1024, %v1040
      %v1044 = vadd.f32 %v1025, %v1041
      %1045 = vset.pattern.permute.xlu0 14
      %1046 = vperm.xlu0 %1045, %v705
      %v1047 = vpop.permute.xlu0 %1046
      %v1049 = vperm.slane %v1006, 2
      %v1050 = vperm.slane %v1006, 6
      %v1051 = vperm.slane %v1007, 2
      %v1055 = vperm.slane %v1049, 2
      %v1056 = vperm.slane %v1050, 2
      %v1057 = vperm.slane %v1051, 2
      %v1058 = vmul.f32 %v1047, %v1055
      %v1059 = vmul.f32 %v1047, %v1056
      %v1060 = vmul.f32 %v1047, %v1057
      %v1061 = vadd.f32 %v1042, %v1058
      %v1062 = vadd.f32 %v1043, %v1059
      %v1063 = vadd.f32 %v1044, %v1060
      %1064 = vset.pattern.permute.xlu0 15
      %1065 = vperm.xlu0 %1064, %v705
      %v1066 = vpop.permute.xlu0 %1065
      %v1068 = vperm.slane %v1006, 3
      %v1069 = vperm.slane %v1006, 7
      %v1070 = vperm.slane %v1007, 3
      %v1074 = vperm.slane %v1068, 3
      %v1075 = vperm.slane %v1069, 3
      %v1076 = vperm.slane %v1070, 3
      %v1077 = vmul.f32 %v1066, %v1074
      %v1078 = vmul.f32 %v1066, %v1075
      %v1079 = vmul.f32 %v1066, %v1076
      %v1080 = vadd.f32 %v1061, %v1077
      %v1081 = vadd.f32 %v1062, %v1078
      %v1082 = vadd.f32 %v1063, %v1079
      %1086 = vrot.lane.b32.xlu0 %v1080, 112
      %v1087 = vpop.permute.xlu0 %1086
      %1088 = vrot.lane.b32.xlu0 %v1081, 112
      %v1089 = vpop.permute.xlu0 %1088
      %1090 = vrot.lane.b32.xlu0 %v1082, 112
      %v1091 = vpop.permute.xlu0 %1090
      %vm1092 = vcmask 916480
      %v1093 = vsel %vm1092, %v1087, %v1089
      %v1094 = vsel %vm1092, %v1089, %v1091
      %v1098 = vadd.f32 %v997, %v1093
      %v1099 = vadd.f32 %v998, %v1094
      %v1100 = vadd.f32 %v999, %v1091
      %1101 = vset.pattern.permute.xlu0 16
      %1102 = vperm.xlu0 %1101, %v705
      %v1103 = vpop.permute.xlu0 %1102
      %v1105 = vmul.f32 %v1103, %v647
      %v1106 = vmul.f32 %v1103, %v648
      %1107 = vset.pattern.permute.xlu0 17
      %1108 = vperm.xlu0 %1107, %v705
      %v1109 = vpop.permute.xlu0 %1108
      %v1111 = vmul.f32 %v1109, %v659
      %v1112 = vmul.f32 %v1109, %v660
      %v1113 = vadd.f32 %v1105, %v1111
      %v1114 = vadd.f32 %v1106, %v1112
      %1115 = vset.pattern.permute.xlu0 18
      %1116 = vperm.xlu0 %1115, %v705
      %v1117 = vpop.permute.xlu0 %1116
      %v1119 = vmul.f32 %v1117, %v673
      %v1120 = vmul.f32 %v1117, %v674
      %v1121 = vadd.f32 %v1113, %v1119
      %v1122 = vadd.f32 %v1114, %v1120
      %1123 = vset.pattern.permute.xlu0 19
      %1124 = vperm.xlu0 %1123, %v705
      %v1125 = vpop.permute.xlu0 %1124
      %v1127 = vmul.f32 %v1125, %v687
      %v1128 = vmul.f32 %v1125, %v688
      %v1129 = vadd.f32 %v1121, %v1127
      %v1130 = vadd.f32 %v1122, %v1128
      %1133 = vrot.lane.b32.xlu0 %v1129, 111
      %v1134 = vpop.permute.xlu0 %1133
      %1135 = vrot.lane.b32.xlu0 %v1130, 111
      %v1136 = vpop.permute.xlu0 %1135
      %v1137 = vsel %vm718, %v1134, %v1136
      %v1141 = vadd.f32 %v1098, %v1134
      %v1142 = vadd.f32 %v1099, %v1137
      %v1143 = vadd.f32 %v1100, %v1136
      %v1144 = vld [vmem:[#allocation2 + $0x4] sm:$0xff]
      %v1145 = vld [vmem:[#allocation2 + $0xc] sm:$0xf]
      %1146 = vrot.lane.b32.xlu0 %v897, 1
      %v1147 = vpop.permute.xlu0 %1146
      %v1148 = vrot.slane %v1147, 4
      %vm1149 = vcmask 7168
      %v1150 = vsel %vm1149, %v1148, %v1147
      %v1153 = vmul.f32 %v1144, %v1150
      %v1154 = vmul.f32 %v1145, %v1148
      %1155 = vset.pattern.permute.xlu0 20
      %1156 = vperm.xlu0 %1155, %v705
      %v1157 = vpop.permute.xlu0 %1156
      %v1161 = vperm.slane %v1153, 0
      %v1162 = vperm.slane %v1153, 4
      %v1163 = vperm.slane %v1154, 0
      %v1167 = vperm.slane %v1161, 0
      %v1168 = vperm.slane %v1162, 0
      %v1169 = vperm.slane %v1163, 0
      %v1170 = vmul.f32 %v1157, %v1167
      %v1171 = vmul.f32 %v1157, %v1168
      %v1172 = vmul.f32 %v1157, %v1169
      %1173 = vset.pattern.permute.xlu0 21
      %1174 = vperm.xlu0 %1173, %v705
      %v1175 = vpop.permute.xlu0 %1174
      %v1177 = vperm.slane %v1153, 1
      %v1178 = vperm.slane %v1153, 5
      %v1179 = vperm.slane %v1154, 1
      %v1183 = vperm.slane %v1177, 1
      %v1184 = vperm.slane %v1178, 1
      %v1185 = vperm.slane %v1179, 1
      %v1186 = vmul.f32 %v1175, %v1183
      %v1187 = vmul.f32 %v1175, %v1184
      %v1188 = vmul.f32 %v1175, %v1185
      %v1189 = vadd.f32 %v1170, %v1186
      %v1190 = vadd.f32 %v1171, %v1187
      %v1191 = vadd.f32 %v1172, %v1188
      %1192 = vset.pattern.permute.xlu0 22
      %1193 = vperm.xlu0 %1192, %v705
      %v1194 = vpop.permute.xlu0 %1193
      %v1196 = vperm.slane %v1153, 2
      %v1197 = vperm.slane %v1153, 6
      %v1198 = vperm.slane %v1154, 2
      %v1202 = vperm.slane %v1196, 2
      %v1203 = vperm.slane %v1197, 2
      %v1204 = vperm.slane %v1198, 2
      %v1205 = vmul.f32 %v1194, %v1202
      %v1206 = vmul.f32 %v1194, %v1203
      %v1207 = vmul.f32 %v1194, %v1204
      %v1208 = vadd.f32 %v1189, %v1205
      %v1209 = vadd.f32 %v1190, %v1206
      %v1210 = vadd.f32 %v1191, %v1207
      %1211 = vset.pattern.permute.xlu0 23
      %1212 = vperm.xlu0 %1211, %v705
      %v1213 = vpop.permute.xlu0 %1212
      %v1215 = vperm.slane %v1153, 3
      %v1216 = vperm.slane %v1153, 7
      %v1217 = vperm.slane %v1154, 3
      %v1221 = vperm.slane %v1215, 3
      %v1222 = vperm.slane %v1216, 3
      %v1223 = vperm.slane %v1217, 3
      %v1224 = vmul.f32 %v1213, %v1221
      %v1225 = vmul.f32 %v1213, %v1222
      %v1226 = vmul.f32 %v1213, %v1223
      %v1227 = vadd.f32 %v1208, %v1224
      %v1228 = vadd.f32 %v1209, %v1225
      %v1229 = vadd.f32 %v1210, %v1226
      %1233 = vrot.lane.b32.xlu0 %v1227, 110
      %v1234 = vpop.permute.xlu0 %1233
      %1235 = vrot.lane.b32.xlu0 %v1228, 110
      %v1236 = vpop.permute.xlu0 %1235
      %1237 = vrot.lane.b32.xlu0 %v1229, 110
      %v1238 = vpop.permute.xlu0 %1237
      %vm1239 = vcmask 900096
      %v1240 = vsel %vm1239, %v1234, %v1236
      %v1241 = vsel %vm1239, %v1236, %v1238
      %v1245 = vadd.f32 %v1141, %v1234
      %v1246 = vadd.f32 %v1142, %v1240
      %v1247 = vadd.f32 %v1143, %v1241
      %1248 = vrot.lane.b32.xlu0 %v714, 15
      %v1249 = vpop.permute.xlu0 %1248
      %v1250 = vrot.slane %v1249, 4
      %vm1251 = vcmask 121856
      %v1252 = vsel %vm1251, %v1250, %v1249
      %v1255 = vmul.f32 %v1144, %v1252
      %v1256 = vmul.f32 %v1145, %v1250
      %1257 = vset.pattern.permute.xlu0 24
      %1258 = vperm.xlu0 %1257, %v705
      %v1259 = vpop.permute.xlu0 %1258
      %v1263 = vperm.slane %v1255, 0
      %v1264 = vperm.slane %v1255, 4
      %v1265 = vperm.slane %v1256, 0
      %v1269 = vperm.slane %v1263, 0
      %v1270 = vperm.slane %v1264, 0
      %v1271 = vperm.slane %v1265, 0
      %v1272 = vmul.f32 %v1259, %v1269
      %v1273 = vmul.f32 %v1259, %v1270
      %v1274 = vmul.f32 %v1259, %v1271
      %1275 = vset.pattern.permute.xlu0 25
      %1276 = vperm.xlu0 %1275, %v705
      %v1277 = vpop.permute.xlu0 %1276
      %v1279 = vperm.slane %v1255, 1
      %v1280 = vperm.slane %v1255, 5
      %v1281 = vperm.slane %v1256, 1
      %v1285 = vperm.slane %v1279, 1
      %v1286 = vperm.slane %v1280, 1
      %v1287 = vperm.slane %v1281, 1
      %v1288 = vmul.f32 %v1277, %v1285
      %v1289 = vmul.f32 %v1277, %v1286
      %v1290 = vmul.f32 %v1277, %v1287
      %v1291 = vadd.f32 %v1272, %v1288
      %v1292 = vadd.f32 %v1273, %v1289
      %v1293 = vadd.f32 %v1274, %v1290
      %1294 = vset.pattern.permute.xlu0 26
      %1295 = vperm.xlu0 %1294, %v705
      %v1296 = vpop.permute.xlu0 %1295
      %v1298 = vperm.slane %v1255, 2
      %v1299 = vperm.slane %v1255, 6
      %v1300 = vperm.slane %v1256, 2
      %v1304 = vperm.slane %v1298, 2
      %v1305 = vperm.slane %v1299, 2
      %v1306 = vperm.slane %v1300, 2
      %v1307 = vmul.f32 %v1296, %v1304
      %v1308 = vmul.f32 %v1296, %v1305
      %v1309 = vmul.f32 %v1296, %v1306
      %v1310 = vadd.f32 %v1291, %v1307
      %v1311 = vadd.f32 %v1292, %v1308
      %v1312 = vadd.f32 %v1293, %v1309
      %1313 = vset.pattern.permute.xlu0 27
      %1314 = vperm.xlu0 %1313, %v705
      %v1315 = vpop.permute.xlu0 %1314
      %v1317 = vperm.slane %v1255, 3
      %v1318 = vperm.slane %v1255, 7
      %v1319 = vperm.slane %v1256, 3
      %v1323 = vperm.slane %v1317, 3
      %v1324 = vperm.slane %v1318, 3
      %v1325 = vperm.slane %v1319, 3
      %v1326 = vmul.f32 %v1315, %v1323
      %v1327 = vmul.f32 %v1315, %v1324
      %v1328 = vmul.f32 %v1315, %v1325
      %v1329 = vadd.f32 %v1310, %v1326
      %v1330 = vadd.f32 %v1311, %v1327
      %v1331 = vadd.f32 %v1312, %v1328
      %1335 = vrot.lane.b32.xlu0 %v1329, 96
      %v1336 = vpop.permute.xlu0 %1335
      %1337 = vrot.lane.b32.xlu0 %v1330, 96
      %v1338 = vpop.permute.xlu0 %1337
      %1339 = vrot.lane.b32.xlu0 %v1331, 96
      %v1340 = vpop.permute.xlu0 %1339
      %vm1341 = vcmask 785408
      %v1342 = vsel %vm1341, %v1336, %v1338
      %v1343 = vsel %vm1341, %v1338, %v1340
      %v1347 = vadd.f32 %v1245, %v1336
      %v1348 = vadd.f32 %v1246, %v1342
      %v1349 = vadd.f32 %v1247, %v1343
      %1350 = vset.pattern.permute.xlu0 28
      %1351 = vperm.xlu0 %1350, %v705
      %v1352 = vpop.permute.xlu0 %1351
      %v1356 = vperm.slane %v1144, 0
      %v1357 = vperm.slane %v1144, 4
      %v1358 = vperm.slane %v1145, 0
      %v1362 = vperm.slane %v1356, 0
      %v1363 = vperm.slane %v1357, 0
      %v1364 = vperm.slane %v1358, 0
      %v1365 = vmul.f32 %v1352, %v1362
      %v1366 = vmul.f32 %v1352, %v1363
      %v1367 = vmul.f32 %v1352, %v1364
      %1368 = vset.pattern.permute.xlu0 29
      %1369 = vperm.xlu0 %1368, %v705
      %v1370 = vpop.permute.xlu0 %1369
      %v1372 = vperm.slane %v1144, 1
      %v1373 = vperm.slane %v1144, 5
      %v1374 = vperm.slane %v1145, 1
      %v1378 = vperm.slane %v1372, 1
      %v1379 = vperm.slane %v1373, 1
      %v1380 = vperm.slane %v1374, 1
      %v1381 = vmul.f32 %v1370, %v1378
      %v1382 = vmul.f32 %v1370, %v1379
      %v1383 = vmul.f32 %v1370, %v1380
      %v1384 = vadd.f32 %v1365, %v1381
      %v1385 = vadd.f32 %v1366, %v1382
      %v1386 = vadd.f32 %v1367, %v1383
      %1387 = vset.pattern.permute.xlu0 30
      %1388 = vperm.xlu0 %1387, %v705
      %v1389 = vpop.permute.xlu0 %1388
      %v1391 = vperm.slane %v1144, 2
      %v1392 = vperm.slane %v1144, 6
      %v1393 = vperm.slane %v1145, 2
      %v1397 = vperm.slane %v1391, 2
      %v1398 = vperm.slane %v1392, 2
      %v1399 = vperm.slane %v1393, 2
      %v1400 = vmul.f32 %v1389, %v1397
      %v1401 = vmul.f32 %v1389, %v1398
      %v1402 = vmul.f32 %v1389, %v1399
      %v1403 = vadd.f32 %v1384, %v1400
      %v1404 = vadd.f32 %v1385, %v1401
      %v1405 = vadd.f32 %v1386, %v1402
      %1406 = vset.pattern.permute.xlu0 31
      %1407 = vperm.xlu0 %1406, %v705
      %v1408 = vpop.permute.xlu0 %1407
      %v1410 = vperm.slane %v1144, 3
      %v1411 = vperm.slane %v1144, 7
      %v1412 = vperm.slane %v1145, 3
      %v1416 = vperm.slane %v1410, 3
      %v1417 = vperm.slane %v1411, 3
      %v1418 = vperm.slane %v1412, 3
      %v1419 = vmul.f32 %v1408, %v1416
      %v1420 = vmul.f32 %v1408, %v1417
      %v1421 = vmul.f32 %v1408, %v1418
      %v1422 = vadd.f32 %v1403, %v1419
      %v1423 = vadd.f32 %v1404, %v1420
      %v1424 = vadd.f32 %v1405, %v1421
      %1428 = vrot.lane.b32.xlu0 %v1422, 95
      %v1429 = vpop.permute.xlu0 %1428
      %1430 = vrot.lane.b32.xlu0 %v1423, 95
      %v1431 = vpop.permute.xlu0 %1430
      %1432 = vrot.lane.b32.xlu0 %v1424, 95
      %v1433 = vpop.permute.xlu0 %1432
      %vm1434 = vcmask 777216
      %v1435 = vsel %vm1434, %v1429, %v1431
      %v1436 = vsel %vm1434, %v1431, %v1433
      %v1440 = vadd.f32 %v1347, %v1429
      %v1441 = vadd.f32 %v1348, %v1435
      %v1442 = vadd.f32 %v1349, %v1436
      %1443 = vrot.lane.b32.xlu0 %v897, 17
      %v1444 = vpop.permute.xlu0 %1443
      %v1445 = vrot.slane %v1444, 4
      %vm1446 = vcmask 138240
      %v1447 = vsel %vm1446, %v1445, %v1444
      %v1450 = vmul.f32 %v1144, %v1447
      %v1451 = vmul.f32 %v1145, %v1445
      %1452 = vset.pattern.permute.xlu0 32
      %1453 = vperm.xlu0 %1452, %v705
      %v1454 = vpop.permute.xlu0 %1453
      %v1458 = vperm.slane %v1450, 0
      %v1459 = vperm.slane %v1450, 4
      %v1460 = vperm.slane %v1451, 0
      %v1464 = vperm.slane %v1458, 0
      %v1465 = vperm.slane %v1459, 0
      %v1466 = vperm.slane %v1460, 0
      %v1467 = vmul.f32 %v1454, %v1464
      %v1468 = vmul.f32 %v1454, %v1465
      %v1469 = vmul.f32 %v1454, %v1466
      %1470 = vset.pattern.permute.xlu0 33
      %1471 = vperm.xlu0 %1470, %v705
      %v1472 = vpop.permute.xlu0 %1471
      %v1474 = vperm.slane %v1450, 1
      %v1475 = vperm.slane %v1450, 5
      %v1476 = vperm.slane %v1451, 1
      %v1480 = vperm.slane %v1474, 1
      %v1481 = vperm.slane %v1475, 1
      %v1482 = vperm.slane %v1476, 1
      %v1483 = vmul.f32 %v1472, %v1480
      %v1484 = vmul.f32 %v1472, %v1481
      %v1485 = vmul.f32 %v1472, %v1482
      %v1486 = vadd.f32 %v1467, %v1483
      %v1487 = vadd.f32 %v1468, %v1484
      %v1488 = vadd.f32 %v1469, %v1485
      %1489 = vset.pattern.permute.xlu0 34
      %1490 = vperm.xlu0 %1489, %v705
      %v1491 = vpop.permute.xlu0 %1490
      %v1493 = vperm.slane %v1450, 2
      %v1494 = vperm.slane %v1450, 6
      %v1495 = vperm.slane %v1451, 2
      %v1499 = vperm.slane %v1493, 2
      %v1500 = vperm.slane %v1494, 2
      %v1501 = vperm.slane %v1495, 2
      %v1502 = vmul.f32 %v1491, %v1499
      %v1503 = vmul.f32 %v1491, %v1500
      %v1504 = vmul.f32 %v1491, %v1501
      %v1505 = vadd.f32 %v1486, %v1502
      %v1506 = vadd.f32 %v1487, %v1503
      %v1507 = vadd.f32 %v1488, %v1504
      %1508 = vset.pattern.permute.xlu0 35
      %1509 = vperm.xlu0 %1508, %v705
      %v1510 = vpop.permute.xlu0 %1509
      %v1512 = vperm.slane %v1450, 3
      %v1513 = vperm.slane %v1450, 7
      %v1514 = vperm.slane %v1451, 3
      %v1518 = vperm.slane %v1512, 3
      %v1519 = vperm.slane %v1513, 3
      %v1520 = vperm.slane %v1514, 3
      %v1521 = vmul.f32 %v1510, %v1518
      %v1522 = vmul.f32 %v1510, %v1519
      %v1523 = vmul.f32 %v1510, %v1520
      %v1524 = vadd.f32 %v1505, %v1521
      %v1525 = vadd.f32 %v1506, %v1522
      %v1526 = vadd.f32 %v1507, %v1523
      %1530 = vrot.lane.b32.xlu0 %v1524, 94
      %v1531 = vpop.permute.xlu0 %1530
      %1532 = vrot.lane.b32.xlu0 %v1525, 94
      %v1533 = vpop.permute.xlu0 %1532
      %1534 = vrot.lane.b32.xlu0 %v1526, 94
      %v1535 = vpop.permute.xlu0 %1534
      %vm1536 = vcmask 769024
      %v1537 = vsel %vm1536, %v1531, %v1533
      %v1538 = vsel %vm1536, %v1533, %v1535
      %v1542 = vadd.f32 %v1440, %v1531
      %v1543 = vadd.f32 %v1441, %v1537
      %v1544 = vadd.f32 %v1442, %v1538
      %v1545 = vld [vmem:[%s5] sm:$0xf]
      %1547 = vset.pattern.permute.xlu0 0
      %1548 = vperm.xlu0 %1547, %v1545
      %v1549 = vpop.permute.xlu0 %1548
      %v1551 = vadd.f32 %v1542, %v1549
      %v1552 = vadd.f32 %v1543, %v1549
      %v1553 = vadd.f32 %v1544, %v1549
      %1554 = vst [vmem:[#allocation1] ss:$2 sm:$0xff] %v630
      %v1555 = vld.sshfl [vmem:[#allocation1] sm:$0xff pattern:$0x75316420]
      %v1556 = vld.sshfl [vmem:[#allocation1 + $0x8] sm:$0xff pattern:$0x75316420]
      %1557 = vrot.lane.b32.xlu0 %v1555, 111
      %v1558 = vpop.permute.xlu0 %1557
      %1559 = vrot.lane.b32.xlu0 %v1556, 111
      %v1560 = vpop.permute.xlu0 %1559
      %v1561 = vsel %vm718, %v1558, %v1560
      %v1565 = vadd.f32 %v1551, %v1558
      %v1566 = vadd.f32 %v1552, %v1561
      %v1567 = vadd.f32 %v1553, %v1560
      %v1568 = vmul.f32 %v1565, 0.2
      %v1569 = vmul.f32 %v1566, 0.2
      %v1570 = vmul.f32 %v1567, 0.2
      %v1571 = vmax.f32 %v1565, %v1568
      %v1572 = vmax.f32 %v1566, %v1569
      %v1573 = vmax.f32 %v1567, %v1570
      %v1574 = vld [vmem:[%s6] sm:$0xf]
      %1576 = vset.pattern.permute.xlu0 0
      %1577 = vperm.xlu0 %1576, %v1574
      %v1578 = vpop.permute.xlu0 %1577
      %v1580 = vperm.slane %v1571, 0
      %v1581 = vperm.slane %v1572, 0
      %v1582 = vperm.slane %v1573, 0
      %v1583 = vmul.f32 %v1578, %v1580
      %v1584 = vmul.f32 %v1578, %v1581
      %v1585 = vmul.f32 %v1578, %v1582
      %1586 = vset.pattern.permute.xlu0 1
      %1587 = vperm.xlu0 %1586, %v1574
      %v1588 = vpop.permute.xlu0 %1587
      %v1590 = vperm.slane %v1571, 1
      %v1591 = vperm.slane %v1572, 1
      %v1592 = vperm.slane %v1573, 1
      %v1593 = vmul.f32 %v1588, %v1590
      %v1594 = vmul.f32 %v1588, %v1591
      %v1595 = vmul.f32 %v1588, %v1592
      %v1596 = vadd.f32 %v1583, %v1593
      %v1597 = vadd.f32 %v1584, %v1594
      %v1598 = vadd.f32 %v1585, %v1595
      %1599 = vset.pattern.permute.xlu0 2
      %1600 = vperm.xlu0 %1599, %v1574
      %v1601 = vpop.permute.xlu0 %1600
      %v1603 = vperm.slane %v1571, 2
      %v1604 = vperm.slane %v1572, 2
      %v1605 = vperm.slane %v1573, 2
      %v1606 = vmul.f32 %v1601, %v1603
      %v1607 = vmul.f32 %v1601, %v1604
      %v1608 = vmul.f32 %v1601, %v1605
      %v1609 = vadd.f32 %v1596, %v1606
      %v1610 = vadd.f32 %v1597, %v1607
      %v1611 = vadd.f32 %v1598, %v1608
      %1612 = vset.pattern.permute.xlu0 3
      %1613 = vperm.xlu0 %1612, %v1574
      %v1614 = vpop.permute.xlu0 %1613
      %v1616 = vperm.slane %v1571, 3
      %v1617 = vperm.slane %v1572, 3
      %v1618 = vperm.slane %v1573, 3
      %v1619 = vmul.f32 %v1614, %v1616
      %v1620 = vmul.f32 %v1614, %v1617
      %v1621 = vmul.f32 %v1614, %v1618
      %v1622 = vadd.f32 %v1609, %v1619
      %v1623 = vadd.f32 %v1610, %v1620
      %v1624 = vadd.f32 %v1611, %v1621
      %v1625 = vld [vmem:[%s7] sm:$0xf]
      %1627 = vset.pattern.permute.xlu0 0
      %1628 = vperm.xlu0 %1627, %v1625
      %v1629 = vpop.permute.xlu0 %1628
      %v1631 = vadd.f32 %v1622, %v1629
      %v1632 = vadd.f32 %v1623, %v1629
      %v1633 = vadd.f32 %v1624, %v1629
      %v1634 = vmul.f32 %v1631, 0.2
      %v1635 = vmul.f32 %v1632, 0.2
      %v1636 = vmul.f32 %v1633, 0.2
      %v1637 = vmax.f32 %v1631, %v1634
      %v1638 = vmax.f32 %v1632, %v1635
      %v1639 = vmax.f32 %v1633, %v1636
      %v1640 = vld [vmem:[%s8] sm:$0xf]
      %v1644 = vrot.slane %v1572, 4
      %v1645 = vsel %vm713, %v1571, %v1644
      %1646 = vrot.lane.b32.xlu0 %v1645, 17
      %v1647 = vpop.permute.xlu0 %1646
      %1648 = vrot.lane.b32.xlu0 %v1573, 17
      %v1649 = vpop.permute.xlu0 %1648
      %v1650 = vrot.slane %v1647, 4
      %v1651 = vrot.slane %v1649, 4
      %v1652 = vsel %vm713, %v1650, %v1651
      %v1653 = vsel %vm1446, %v1647, %v1652
      %1655 = vst [vmem:[#allocation2 + $0x4] sm:$0xff] %v1653
      %v1656 = vld [vmem:[#allocation2] sm:$0xff]
      %v1657 = vld [vmem:[#allocation2 + $0x8] sm:$0xf]
      %v1658 = vmul.f32 %v1656, %v719
      %v1659 = vmul.f32 %v1657, %v717
      %1661 = vset.pattern.permute.xlu0 0
      %1662 = vperm.xlu0 %1661, %v1640
      %v1663 = vpop.permute.xlu0 %1662
      %v1667 = vperm.slane %v1658, 0
      %v1668 = vperm.slane %v1658, 4
      %v1669 = vperm.slane %v1659, 0
      %v1673 = vperm.slane %v1667, 0
      %v1674 = vperm.slane %v1668, 0
      %v1675 = vperm.slane %v1669, 0
      %v1676 = vmul.f32 %v1663, %v1673
      %v1677 = vmul.f32 %v1663, %v1674
      %v1678 = vmul.f32 %v1663, %v1675
      %1679 = vset.pattern.permute.xlu0 1
      %1680 = vperm.xlu0 %1679, %v1640
      %v1681 = vpop.permute.xlu0 %1680
      %v1683 = vperm.slane %v1658, 1
      %v1684 = vperm.slane %v1658, 5
      %v1685 = vperm.slane %v1659, 1
      %v1689 = vperm.slane %v1683, 1
      %v1690 = vperm.slane %v1684, 1
      %v1691 = vperm.slane %v1685, 1
      %v1692 = vmul.f32 %v1681, %v1689
      %v1693 = vmul.f32 %v1681, %v1690
      %v1694 = vmul.f32 %v1681, %v1691
      %v1695 = vadd.f32 %v1676, %v1692
      %v1696 = vadd.f32 %v1677, %v1693
      %v1697 = vadd.f32 %v1678, %v1694
      %1698 = vset.pattern.permute.xlu0 2
      %1699 = vperm.xlu0 %1698, %v1640
      %v1700 = vpop.permute.xlu0 %1699
      %v1702 = vperm.slane %v1658, 2
      %v1703 = vperm.slane %v1658, 6
      %v1704 = vperm.slane %v1659, 2
      %v1708 = vperm.slane %v1702, 2
      %v1709 = vperm.slane %v1703, 2
      %v1710 = vperm.slane %v1704, 2
      %v1711 = vmul.f32 %v1700, %v1708
      %v1712 = vmul.f32 %v1700, %v1709
      %v1713 = vmul.f32 %v1700, %v1710
      %v1714 = vadd.f32 %v1695, %v1711
      %v1715 = vadd.f32 %v1696, %v1712
      %v1716 = vadd.f32 %v1697, %v1713
      %1717 = vset.pattern.permute.xlu0 3
      %1718 = vperm.xlu0 %1717, %v1640
      %v1719 = vpop.permute.xlu0 %1718
      %v1721 = vperm.slane %v1658, 3
      %v1722 = vperm.slane %v1658, 7
      %v1723 = vperm.slane %v1659, 3
      %v1727 = vperm.slane %v1721, 3
      %v1728 = vperm.slane %v1722, 3
      %v1729 = vperm.slane %v1723, 3
      %v1730 = vmul.f32 %v1719, %v1727
      %v1731 = vmul.f32 %v1719, %v1728
      %v1732 = vmul.f32 %v1719, %v1729
      %v1733 = vadd.f32 %v1714, %v1730
      %v1734 = vadd.f32 %v1715, %v1731
      %v1735 = vadd.f32 %v1716, %v1732
      %1736 = vset.pattern.permute.xlu0 4
      %1737 = vperm.xlu0 %1736, %v1640
      %v1738 = vpop.permute.xlu0 %1737
      %v1742 = vperm.slane %v1656, 0
      %v1743 = vperm.slane %v1656, 4
      %v1744 = vperm.slane %v1657, 0
      %v1748 = vperm.slane %v1742, 0
      %v1749 = vperm.slane %v1743, 0
      %v1750 = vperm.slane %v1744, 0
      %v1751 = vmul.f32 %v1738, %v1748
      %v1752 = vmul.f32 %v1738, %v1749
      %v1753 = vmul.f32 %v1738, %v1750
      %1754 = vset.pattern.permute.xlu0 5
      %1755 = vperm.xlu0 %1754, %v1640
      %v1756 = vpop.permute.xlu0 %1755
      %v1758 = vperm.slane %v1656, 1
      %v1759 = vperm.slane %v1656, 5
      %v1760 = vperm.slane %v1657, 1
      %v1764 = vperm.slane %v1758, 1
      %v1765 = vperm.slane %v1759, 1
      %v1766 = vperm.slane %v1760, 1
      %v1767 = vmul.f32 %v1756, %v1764
      %v1768 = vmul.f32 %v1756, %v1765
      %v1769 = vmul.f32 %v1756, %v1766
      %v1770 = vadd.f32 %v1751, %v1767
      %v1771 = vadd.f32 %v1752, %v1768
      %v1772 = vadd.f32 %v1753, %v1769
      %1773 = vset.pattern.permute.xlu0 6
      %1774 = vperm.xlu0 %1773, %v1640
      %v1775 = vpop.permute.xlu0 %1774
      %v1777 = vperm.slane %v1656, 2
      %v1778 = vperm.slane %v1656, 6
      %v1779 = vperm.slane %v1657, 2
      %v1783 = vperm.slane %v1777, 2
      %v1784 = vperm.slane %v1778, 2
      %v1785 = vperm.slane %v1779, 2
      %v1786 = vmul.f32 %v1775, %v1783
      %v1787 = vmul.f32 %v1775, %v1784
      %v1788 = vmul.f32 %v1775, %v1785
      %v1789 = vadd.f32 %v1770, %v1786
      %v1790 = vadd.f32 %v1771, %v1787
      %v1791 = vadd.f32 %v1772, %v1788
      %1792 = vset.pattern.permute.xlu0 7
      %1793 = vperm.xlu0 %1792, %v1640
      %v1794 = vpop.permute.xlu0 %1793
      %v1796 = vperm.slane %v1656, 3
      %v1797 = vperm.slane %v1656, 7
      %v1798 = vperm.slane %v1657, 3
      %v1802 = vperm.slane %v1796, 3
      %v1803 = vperm.slane %v1797, 3
      %v1804 = vperm.slane %v1798, 3
      %v1805 = vmul.f32 %v1794, %v1802
      %v1806 = vmul.f32 %v1794, %v1803
      %v1807 = vmul.f32 %v1794, %v1804
      %v1808 = vadd.f32 %v1789, %v1805
      %v1809 = vadd.f32 %v1790, %v1806
      %v1810 = vadd.f32 %v1791, %v1807
      %1814 = vrot.lane.b32.xlu0 %v1808, 127
      %v1815 = vpop.permute.xlu0 %1814
      %1816 = vrot.lane.b32.xlu0 %v1809, 127
      %v1817 = vpop.permute.xlu0 %1816
      %1818 = vrot.lane.b32.xlu0 %v1810, 127
      %v1819 = vpop.permute.xlu0 %1818
      %v1820 = vsel %vm884, %v1815, %v1817
      %v1821 = vsel %vm884, %v1817, %v1819
      %v1825 = vadd.f32 %v1733, %v1820
      %v1826 = vadd.f32 %v1734, %v1821
      %v1827 = vadd.f32 %v1735, %v1819
      %v1828 = vmul.f32 %v1656, %v902
      %v1829 = vmul.f32 %v1657, %v900
      %1830 = vset.pattern.permute.xlu0 8
      %1831 = vperm.xlu0 %1830, %v1640
      %v1832 = vpop.permute.xlu0 %1831
      %v1836 = vperm.slane %v1828, 0
      %v1837 = vperm.slane %v1828, 4
      %v1838 = vperm.slane %v1829, 0
      %v1842 = vperm.slane %v1836, 0
      %v1843 = vperm.slane %v1837, 0
      %v1844 = vperm.slane %v1838, 0
      %v1845 = vmul.f32 %v1832, %v1842
      %v1846 = vmul.f32 %v1832, %v1843
      %v1847 = vmul.f32 %v1832, %v1844
      %1848 = vset.pattern.permute.xlu0 9
      %1849 = vperm.xlu0 %1848, %v1640
      %v1850 = vpop.permute.xlu0 %1849
      %v1852 = vperm.slane %v1828, 1
      %v1853 = vperm.slane %v1828, 5
      %v1854 = vperm.slane %v1829, 1
      %v1858 = vperm.slane %v1852, 1
      %v1859 = vperm.slane %v1853, 1
      %v1860 = vperm.slane %v1854, 1
      %v1861 = vmul.f32 %v1850, %v1858
      %v1862 = vmul.f32 %v1850, %v1859
      %v1863 = vmul.f32 %v1850, %v1860
      %v1864 = vadd.f32 %v1845, %v1861
      %v1865 = vadd.f32 %v1846, %v1862
      %v1866 = vadd.f32 %v1847, %v1863
      %1867 = vset.pattern.permute.xlu0 10
      %1868 = vperm.xlu0 %1867, %v1640
      %v1869 = vpop.permute.xlu0 %1868
      %v1871 = vperm.slane %v1828, 2
      %v1872 = vperm.slane %v1828, 6
      %v1873 = vperm.slane %v1829, 2
      %v1877 = vperm.slane %v1871, 2
      %v1878 = vperm.slane %v1872, 2
      %v1879 = vperm.slane %v1873, 2
      %v1880 = vmul.f32 %v1869, %v1877
      %v1881 = vmul.f32 %v1869, %v1878
      %v1882 = vmul.f32 %v1869, %v1879
      %v1883 = vadd.f32 %v1864, %v1880
      %v1884 = vadd.f32 %v1865, %v1881
      %v1885 = vadd.f32 %v1866, %v1882
      %1886 = vset.pattern.permute.xlu0 11
      %1887 = vperm.xlu0 %1886, %v1640
      %v1888 = vpop.permute.xlu0 %1887
      %v1890 = vperm.slane %v1828, 3
      %v1891 = vperm.slane %v1828, 7
      %v1892 = vperm.slane %v1829, 3
      %v1896 = vperm.slane %v1890, 3
      %v1897 = vperm.slane %v1891, 3
      %v1898 = vperm.slane %v1892, 3
      %v1899 = vmul.f32 %v1888, %v1896
      %v1900 = vmul.f32 %v1888, %v1897
      %v1901 = vmul.f32 %v1888, %v1898
      %v1902 = vadd.f32 %v1883, %v1899
      %v1903 = vadd.f32 %v1884, %v1900
      %v1904 = vadd.f32 %v1885, %v1901
      %1908 = vrot.lane.b32.xlu0 %v1902, 126
      %v1909 = vpop.permute.xlu0 %1908
      %1910 = vrot.lane.b32.xlu0 %v1903, 126
      %v1911 = vpop.permute.xlu0 %1910
      %1912 = vrot.lane.b32.xlu0 %v1904, 126
      %v1913 = vpop.permute.xlu0 %1912
      %v1914 = vsel %vm991, %v1909, %v1911
      %v1915 = vsel %vm991, %v1911, %v1913
      %v1919 = vadd.f32 %v1825, %v1914
      %v1920 = vadd.f32 %v1826, %v1915
      %v1921 = vadd.f32 %v1827, %v1913
      %v1922 = vmul.f32 %v1656, %v1003
      %v1923 = vmul.f32 %v1657, %v1002
      %1924 = vset.pattern.permute.xlu0 12
      %1925 = vperm.xlu0 %1924, %v1640
      %v1926 = vpop.permute.xlu0 %1925
      %v1930 = vperm.slane %v1922, 0
      %v1931 = vperm.slane %v1922, 4
      %v1932 = vperm.slane %v1923, 0
      %v1936 = vperm.slane %v1930, 0
      %v1937 = vperm.slane %v1931, 0
      %v1938 = vperm.slane %v1932, 0
      %v1939 = vmul.f32 %v1926, %v1936
      %v1940 = vmul.f32 %v1926, %v1937
      %v1941 = vmul.f32 %v1926, %v1938
      %1942 = vset.pattern.permute.xlu0 13
      %1943 = vperm.xlu0 %1942, %v1640
      %v1944 = vpop.permute.xlu0 %1943
      %v1946 = vperm.slane %v1922, 1
      %v1947 = vperm.slane %v1922, 5
      %v1948 = vperm.slane %v1923, 1
      %v1952 = vperm.slane %v1946, 1
      %v1953 = vperm.slane %v1947, 1
      %v1954 = vperm.slane %v1948, 1
      %v1955 = vmul.f32 %v1944, %v1952
      %v1956 = vmul.f32 %v1944, %v1953
      %v1957 = vmul.f32 %v1944, %v1954
      %v1958 = vadd.f32 %v1939, %v1955
      %v1959 = vadd.f32 %v1940, %v1956
      %v1960 = vadd.f32 %v1941, %v1957
      %1961 = vset.pattern.permute.xlu0 14
      %1962 = vperm.xlu0 %1961, %v1640
      %v1963 = vpop.permute.xlu0 %1962
      %v1965 = vperm.slane %v1922, 2
      %v1966 = vperm.slane %v1922, 6
      %v1967 = vperm.slane %v1923, 2
      %v1971 = vperm.slane %v1965, 2
      %v1972 = vperm.slane %v1966, 2
      %v1973 = vperm.slane %v1967, 2
      %v1974 = vmul.f32 %v1963, %v1971
      %v1975 = vmul.f32 %v1963, %v1972
      %v1976 = vmul.f32 %v1963, %v1973
      %v1977 = vadd.f32 %v1958, %v1974
      %v1978 = vadd.f32 %v1959, %v1975
      %v1979 = vadd.f32 %v1960, %v1976
      %1980 = vset.pattern.permute.xlu0 15
      %1981 = vperm.xlu0 %1980, %v1640
      %v1982 = vpop.permute.xlu0 %1981
      %v1984 = vperm.slane %v1922, 3
      %v1985 = vperm.slane %v1922, 7
      %v1986 = vperm.slane %v1923, 3
      %v1990 = vperm.slane %v1984, 3
      %v1991 = vperm.slane %v1985, 3
      %v1992 = vperm.slane %v1986, 3
      %v1993 = vmul.f32 %v1982, %v1990
      %v1994 = vmul.f32 %v1982, %v1991
      %v1995 = vmul.f32 %v1982, %v1992
      %v1996 = vadd.f32 %v1977, %v1993
      %v1997 = vadd.f32 %v1978, %v1994
      %v1998 = vadd.f32 %v1979, %v1995
      %2002 = vrot.lane.b32.xlu0 %v1996, 112
      %v2003 = vpop.permute.xlu0 %2002
      %2004 = vrot.lane.b32.xlu0 %v1997, 112
      %v2005 = vpop.permute.xlu0 %2004
      %2006 = vrot.lane.b32.xlu0 %v1998, 112
      %v2007 = vpop.permute.xlu0 %2006
      %v2008 = vsel %vm1092, %v2003, %v2005
      %v2009 = vsel %vm1092, %v2005, %v2007
      %v2013 = vadd.f32 %v1919, %v2008
      %v2014 = vadd.f32 %v1920, %v2009
      %v2015 = vadd.f32 %v1921, %v2007
      %2016 = vset.pattern.permute.xlu0 16
      %2017 = vperm.xlu0 %2016, %v1640
      %v2018 = vpop.permute.xlu0 %2017
      %v2020 = vmul.f32 %v2018, %v1580
      %v2021 = vmul.f32 %v2018, %v1581
      %v2022 = vmul.f32 %v2018, %v1582
      %2023 = vset.pattern.permute.xlu0 17
      %2024 = vperm.xlu0 %2023, %v1640
      %v2025 = vpop.permute.xlu0 %2024
      %v2027 = vmul.f32 %v2025, %v1590
      %v2028 = vmul.f32 %v2025, %v1591
      %v2029 = vmul.f32 %v2025, %v1592
      %v2030 = vadd.f32 %v2020, %v2027
      %v2031 = vadd.f32 %v2021, %v2028
      %v2032 = vadd.f32 %v2022, %v2029
      %2033 = vset.pattern.permute.xlu0 18
      %2034 = vperm.xlu0 %2033, %v1640
      %v2035 = vpop.permute.xlu0 %2034
      %v2037 = vmul.f32 %v2035, %v1603
      %v2038 = vmul.f32 %v2035, %v1604
      %v2039 = vmul.f32 %v2035, %v1605
      %v2040 = vadd.f32 %v2030, %v2037
      %v2041 = vadd.f32 %v2031, %v2038
      %v2042 = vadd.f32 %v2032, %v2039
      %2043 = vset.pattern.permute.xlu0 19
      %2044 = vperm.xlu0 %2043, %v1640
      %v2045 = vpop.permute.xlu0 %2044
      %v2047 = vmul.f32 %v2045, %v1616
      %v2048 = vmul.f32 %v2045, %v1617
      %v2049 = vmul.f32 %v2045, %v1618
      %v2050 = vadd.f32 %v2040, %v2047
      %v2051 = vadd.f32 %v2041, %v2048
      %v2052 = vadd.f32 %v2042, %v2049
      %v2053 = vadd.f32 %v2013, %v2050
      %v2054 = vadd.f32 %v2014, %v2051
      %v2055 = vadd.f32 %v2015, %v2052
      %v2056 = vld [vmem:[#allocation2 + $0x4] sm:$0xff]
      %v2057 = vld [vmem:[#allocation2 + $0xc] sm:$0xf]
      %v2058 = vmul.f32 %v2056, %v1150
      %v2059 = vmul.f32 %v2057, %v1148
      %2060 = vset.pattern.permute.xlu0 20
      %2061 = vperm.xlu0 %2060, %v1640
      %v2062 = vpop.permute.xlu0 %2061
      %v2066 = vperm.slane %v2058, 0
      %v2067 = vperm.slane %v2058, 4
      %v2068 = vperm.slane %v2059, 0
      %v2072 = vperm.slane %v2066, 0
      %v2073 = vperm.slane %v2067, 0
      %v2074 = vperm.slane %v2068, 0
      %v2075 = vmul.f32 %v2062, %v2072
      %v2076 = vmul.f32 %v2062, %v2073
      %v2077 = vmul.f32 %v2062, %v2074
      %2078 = vset.pattern.permute.xlu0 21
      %2079 = vperm.xlu0 %2078, %v1640
      %v2080 = vpop.permute.xlu0 %2079
      %v2082 = vperm.slane %v2058, 1
      %v2083 = vperm.slane %v2058, 5
      %v2084 = vperm.slane %v2059, 1
      %v2088 = vperm.slane %v2082, 1
      %v2089 = vperm.slane %v2083, 1
      %v2090 = vperm.slane %v2084, 1
      %v2091 = vmul.f32 %v2080, %v2088
      %v2092 = vmul.f32 %v2080, %v2089
      %v2093 = vmul.f32 %v2080, %v2090
      %v2094 = vadd.f32 %v2075, %v2091
      %v2095 = vadd.f32 %v2076, %v2092
      %v2096 = vadd.f32 %v2077, %v2093
      %2097 = vset.pattern.permute.xlu0 22
      %2098 = vperm.xlu0 %2097, %v1640
      %v2099 = vpop.permute.xlu0 %2098
      %v2101 = vperm.slane %v2058, 2
      %v2102 = vperm.slane %v2058, 6
      %v2103 = vperm.slane %v2059, 2
      %v2107 = vperm.slane %v2101, 2
      %v2108 = vperm.slane %v2102, 2
      %v2109 = vperm.slane %v2103, 2
      %v2110 = vmul.f32 %v2099, %v2107
      %v2111 = vmul.f32 %v2099, %v2108
      %v2112 = vmul.f32 %v2099, %v2109
      %v2113 = vadd.f32 %v2094, %v2110
      %v2114 = vadd.f32 %v2095, %v2111
      %v2115 = vadd.f32 %v2096, %v2112
      %2116 = vset.pattern.permute.xlu0 23
      %2117 = vperm.xlu0 %2116, %v1640
      %v2118 = vpop.permute.xlu0 %2117
      %v2120 = vperm.slane %v2058, 3
      %v2121 = vperm.slane %v2058, 7
      %v2122 = vperm.slane %v2059, 3
      %v2126 = vperm.slane %v2120, 3
      %v2127 = vperm.slane %v2121, 3
      %v2128 = vperm.slane %v2122, 3
      %v2129 = vmul.f32 %v2118, %v2126
      %v2130 = vmul.f32 %v2118, %v2127
      %v2131 = vmul.f32 %v2118, %v2128
      %v2132 = vadd.f32 %v2113, %v2129
      %v2133 = vadd.f32 %v2114, %v2130
      %v2134 = vadd.f32 %v2115, %v2131
      %2138 = vrot.lane.b32.xlu0 %v2132, 110
      %v2139 = vpop.permute.xlu0 %2138
      %2140 = vrot.lane.b32.xlu0 %v2133, 110
      %v2141 = vpop.permute.xlu0 %2140
      %2142 = vrot.lane.b32.xlu0 %v2134, 110
      %v2143 = vpop.permute.xlu0 %2142
      %v2144 = vsel %vm1239, %v2139, %v2141
      %v2145 = vsel %vm1239, %v2141, %v2143
      %v2149 = vadd.f32 %v2053, %v2139
      %v2150 = vadd.f32 %v2054, %v2144
      %v2151 = vadd.f32 %v2055, %v2145
      %v2152 = vmul.f32 %v2056, %v1252
      %v2153 = vmul.f32 %v2057, %v1250
      %2154 = vset.pattern.permute.xlu0 24
      %2155 = vperm.xlu0 %2154, %v1640
      %v2156 = vpop.permute.xlu0 %2155
      %v2160 = vperm.slane %v2152, 0
      %v2161 = vperm.slane %v2152, 4
      %v2162 = vperm.slane %v2153, 0
      %v2166 = vperm.slane %v2160, 0
      %v2167 = vperm.slane %v2161, 0
      %v2168 = vperm.slane %v2162, 0
      %v2169 = vmul.f32 %v2156, %v2166
      %v2170 = vmul.f32 %v2156, %v2167
      %v2171 = vmul.f32 %v2156, %v2168
      %2172 = vset.pattern.permute.xlu0 25
      %2173 = vperm.xlu0 %2172, %v1640
      %v2174 = vpop.permute.xlu0 %2173
      %v2176 = vperm.slane %v2152, 1
      %v2177 = vperm.slane %v2152, 5
      %v2178 = vperm.slane %v2153, 1
      %v2182 = vperm.slane %v2176, 1
      %v2183 = vperm.slane %v2177, 1
      %v2184 = vperm.slane %v2178, 1
      %v2185 = vmul.f32 %v2174, %v2182
      %v2186 = vmul.f32 %v2174, %v2183
      %v2187 = vmul.f32 %v2174, %v2184
      %v2188 = vadd.f32 %v2169, %v2185
      %v2189 = vadd.f32 %v2170, %v2186
      %v2190 = vadd.f32 %v2171, %v2187
      %2191 = vset.pattern.permute.xlu0 26
      %2192 = vperm.xlu0 %2191, %v1640
      %v2193 = vpop.permute.xlu0 %2192
      %v2195 = vperm.slane %v2152, 2
      %v2196 = vperm.slane %v2152, 6
      %v2197 = vperm.slane %v2153, 2
      %v2201 = vperm.slane %v2195, 2
      %v2202 = vperm.slane %v2196, 2
      %v2203 = vperm.slane %v2197, 2
      %v2204 = vmul.f32 %v2193, %v2201
      %v2205 = vmul.f32 %v2193, %v2202
      %v2206 = vmul.f32 %v2193, %v2203
      %v2207 = vadd.f32 %v2188, %v2204
      %v2208 = vadd.f32 %v2189, %v2205
      %v2209 = vadd.f32 %v2190, %v2206
      %2210 = vset.pattern.permute.xlu0 27
      %2211 = vperm.xlu0 %2210, %v1640
      %v2212 = vpop.permute.xlu0 %2211
      %v2214 = vperm.slane %v2152, 3
      %v2215 = vperm.slane %v2152, 7
      %v2216 = vperm.slane %v2153, 3
      %v2220 = vperm.slane %v2214, 3
      %v2221 = vperm.slane %v2215, 3
      %v2222 = vperm.slane %v2216, 3
      %v2223 = vmul.f32 %v2212, %v2220
      %v2224 = vmul.f32 %v2212, %v2221
      %v2225 = vmul.f32 %v2212, %v2222
      %v2226 = vadd.f32 %v2207, %v2223
      %v2227 = vadd.f32 %v2208, %v2224
      %v2228 = vadd.f32 %v2209, %v2225
      %2232 = vrot.lane.b32.xlu0 %v2226, 96
      %v2233 = vpop.permute.xlu0 %2232
      %2234 = vrot.lane.b32.xlu0 %v2227, 96
      %v2235 = vpop.permute.xlu0 %2234
      %2236 = vrot.lane.b32.xlu0 %v2228, 96
      %v2237 = vpop.permute.xlu0 %2236
      %v2238 = vsel %vm1341, %v2233, %v2235
      %v2239 = vsel %vm1341, %v2235, %v2237
      %v2243 = vadd.f32 %v2149, %v2233
      %v2244 = vadd.f32 %v2150, %v2238
      %v2245 = vadd.f32 %v2151, %v2239
      %2246 = vset.pattern.permute.xlu0 28
      %2247 = vperm.xlu0 %2246, %v1640
      %v2248 = vpop.permute.xlu0 %2247
      %v2252 = vperm.slane %v2056, 0
      %v2253 = vperm.slane %v2056, 4
      %v2254 = vperm.slane %v2057, 0
      %v2258 = vperm.slane %v2252, 0
      %v2259 = vperm.slane %v2253, 0
      %v2260 = vperm.slane %v2254, 0
      %v2261 = vmul.f32 %v2248, %v2258
      %v2262 = vmul.f32 %v2248, %v2259
      %v2263 = vmul.f32 %v2248, %v2260
      %2264 = vset.pattern.permute.xlu0 29
      %2265 = vperm.xlu0 %2264, %v1640
      %v2266 = vpop.permute.xlu0 %2265
      %v2268 = vperm.slane %v2056, 1
      %v2269 = vperm.slane %v2056, 5
      %v2270 = vperm.slane %v2057, 1
      %v2274 = vperm.slane %v2268, 1
      %v2275 = vperm.slane %v2269, 1
      %v2276 = vperm.slane %v2270, 1
      %v2277 = vmul.f32 %v2266, %v2274
      %v2278 = vmul.f32 %v2266, %v2275
      %v2279 = vmul.f32 %v2266, %v2276
      %v2280 = vadd.f32 %v2261, %v2277
      %v2281 = vadd.f32 %v2262, %v2278
      %v2282 = vadd.f32 %v2263, %v2279
      %2283 = vset.pattern.permute.xlu0 30
      %2284 = vperm.xlu0 %2283, %v1640
      %v2285 = vpop.permute.xlu0 %2284
      %v2287 = vperm.slane %v2056, 2
      %v2288 = vperm.slane %v2056, 6
      %v2289 = vperm.slane %v2057, 2
      %v2293 = vperm.slane %v2287, 2
      %v2294 = vperm.slane %v2288, 2
      %v2295 = vperm.slane %v2289, 2
      %v2296 = vmul.f32 %v2285, %v2293
      %v2297 = vmul.f32 %v2285, %v2294
      %v2298 = vmul.f32 %v2285, %v2295
      %v2299 = vadd.f32 %v2280, %v2296
      %v2300 = vadd.f32 %v2281, %v2297
      %v2301 = vadd.f32 %v2282, %v2298
      %2302 = vset.pattern.permute.xlu0 31
      %2303 = vperm.xlu0 %2302, %v1640
      %v2304 = vpop.permute.xlu0 %2303
      %v2306 = vperm.slane %v2056, 3
      %v2307 = vperm.slane %v2056, 7
      %v2308 = vperm.slane %v2057, 3
      %v2312 = vperm.slane %v2306, 3
      %v2313 = vperm.slane %v2307, 3
      %v2314 = vperm.slane %v2308, 3
      %v2315 = vmul.f32 %v2304, %v2312
      %v2316 = vmul.f32 %v2304, %v2313
      %v2317 = vmul.f32 %v2304, %v2314
      %v2318 = vadd.f32 %v2299, %v2315
      %v2319 = vadd.f32 %v2300, %v2316
      %v2320 = vadd.f32 %v2301, %v2317
      %2324 = vrot.lane.b32.xlu0 %v2318, 95
      %v2325 = vpop.permute.xlu0 %2324
      %2326 = vrot.lane.b32.xlu0 %v2319, 95
      %v2327 = vpop.permute.xlu0 %2326
      %2328 = vrot.lane.b32.xlu0 %v2320, 95
      %v2329 = vpop.permute.xlu0 %2328
      %v2330 = vsel %vm1434, %v2325, %v2327
      %v2331 = vsel %vm1434, %v2327, %v2329
      %v2335 = vadd.f32 %v2243, %v2325
      %v2336 = vadd.f32 %v2244, %v2330
      %v2337 = vadd.f32 %v2245, %v2331
      %v2338 = vmul.f32 %v2056, %v1447
      %v2339 = vmul.f32 %v2057, %v1445
      %2340 = vset.pattern.permute.xlu0 32
      %2341 = vperm.xlu0 %2340, %v1640
      %v2342 = vpop.permute.xlu0 %2341
      %v2346 = vperm.slane %v2338, 0
      %v2347 = vperm.slane %v2338, 4
      %v2348 = vperm.slane %v2339, 0
      %v2352 = vperm.slane %v2346, 0
      %v2353 = vperm.slane %v2347, 0
      %v2354 = vperm.slane %v2348, 0
      %v2355 = vmul.f32 %v2342, %v2352
      %v2356 = vmul.f32 %v2342, %v2353
      %v2357 = vmul.f32 %v2342, %v2354
      %2358 = vset.pattern.permute.xlu0 33
      %2359 = vperm.xlu0 %2358, %v1640
      %v2360 = vpop.permute.xlu0 %2359
      %v2362 = vperm.slane %v2338, 1
      %v2363 = vperm.slane %v2338, 5
      %v2364 = vperm.slane %v2339, 1
      %v2368 = vperm.slane %v2362, 1
      %v2369 = vperm.slane %v2363, 1
      %v2370 = vperm.slane %v2364, 1
      %v2371 = vmul.f32 %v2360, %v2368
      %v2372 = vmul.f32 %v2360, %v2369
      %v2373 = vmul.f32 %v2360, %v2370
      %v2374 = vadd.f32 %v2355, %v2371
      %v2375 = vadd.f32 %v2356, %v2372
      %v2376 = vadd.f32 %v2357, %v2373
      %2377 = vset.pattern.permute.xlu0 34
      %2378 = vperm.xlu0 %2377, %v1640
      %v2379 = vpop.permute.xlu0 %2378
      %v2381 = vperm.slane %v2338, 2
      %v2382 = vperm.slane %v2338, 6
      %v2383 = vperm.slane %v2339, 2
      %v2387 = vperm.slane %v2381, 2
      %v2388 = vperm.slane %v2382, 2
      %v2389 = vperm.slane %v2383, 2
      %v2390 = vmul.f32 %v2379, %v2387
      %v2391 = vmul.f32 %v2379, %v2388
      %v2392 = vmul.f32 %v2379, %v2389
      %v2393 = vadd.f32 %v2374, %v2390
      %v2394 = vadd.f32 %v2375, %v2391
      %v2395 = vadd.f32 %v2376, %v2392
      %2396 = vset.pattern.permute.xlu0 35
      %2397 = vperm.xlu0 %2396, %v1640
      %v2398 = vpop.permute.xlu0 %2397
      %v2400 = vperm.slane %v2338, 3
      %v2401 = vperm.slane %v2338, 7
      %v2402 = vperm.slane %v2339, 3
      %v2406 = vperm.slane %v2400, 3
      %v2407 = vperm.slane %v2401, 3
      %v2408 = vperm.slane %v2402, 3
      %v2409 = vmul.f32 %v2398, %v2406
      %v2410 = vmul.f32 %v2398, %v2407
      %v2411 = vmul.f32 %v2398, %v2408
      %v2412 = vadd.f32 %v2393, %v2409
      %v2413 = vadd.f32 %v2394, %v2410
      %v2414 = vadd.f32 %v2395, %v2411
      %2418 = vrot.lane.b32.xlu0 %v2412, 94
      %v2419 = vpop.permute.xlu0 %2418
      %2420 = vrot.lane.b32.xlu0 %v2413, 94
      %v2421 = vpop.permute.xlu0 %2420
      %2422 = vrot.lane.b32.xlu0 %v2414, 94
      %v2423 = vpop.permute.xlu0 %2422
      %v2424 = vsel %vm1536, %v2419, %v2421
      %v2425 = vsel %vm1536, %v2421, %v2423
      %v2429 = vadd.f32 %v2335, %v2419
      %v2430 = vadd.f32 %v2336, %v2424
      %v2431 = vadd.f32 %v2337, %v2425
      %v2432 = vld [vmem:[%s9] sm:$0xf]
      %2434 = vset.pattern.permute.xlu0 0
      %2435 = vperm.xlu0 %2434, %v2432
      %v2436 = vpop.permute.xlu0 %2435
      %v2438 = vadd.f32 %v2429, %v2436
      %v2439 = vadd.f32 %v2430, %v2436
      %v2440 = vadd.f32 %v2431, %v2436
      %v2441 = vadd.f32 %v2438, %v1571
      %v2442 = vadd.f32 %v2439, %v1572
      %v2443 = vadd.f32 %v2440, %v1573
      %v2444 = vmul.f32 %v2441, 0.2
      %v2445 = vmul.f32 %v2442, 0.2
      %v2446 = vmul.f32 %v2443, 0.2
      %v2447 = vmax.f32 %v2441, %v2444
      %v2448 = vmax.f32 %v2442, %v2445
      %v2449 = vmax.f32 %v2443, %v2446
      %v2450 = vld [vmem:[%s10] sm:$0xf]
      %2452 = vset.pattern.permute.xlu0 0
      %2453 = vperm.xlu0 %2452, %v2450
      %v2454 = vpop.permute.xlu0 %2453
      %v2456 = vperm.slane %v2447, 0
      %v2457 = vperm.slane %v2448, 0
      %v2458 = vperm.slane %v2449, 0
      %v2459 = vmul.f32 %v2454, %v2456
      %v2460 = vmul.f32 %v2454, %v2457
      %v2461 = vmul.f32 %v2454, %v2458
      %2462 = vset.pattern.permute.xlu0 1
      %2463 = vperm.xlu0 %2462, %v2450
      %v2464 = vpop.permute.xlu0 %2463
      %v2466 = vperm.slane %v2447, 1
      %v2467 = vperm.slane %v2448, 1
      %v2468 = vperm.slane %v2449, 1
      %v2469 = vmul.f32 %v2464, %v2466
      %v2470 = vmul.f32 %v2464, %v2467
      %v2471 = vmul.f32 %v2464, %v2468
      %v2472 = vadd.f32 %v2459, %v2469
      %v2473 = vadd.f32 %v2460, %v2470
      %v2474 = vadd.f32 %v2461, %v2471
      %2475 = vset.pattern.permute.xlu0 2
      %2476 = vperm.xlu0 %2475, %v2450
      %v2477 = vpop.permute.xlu0 %2476
      %v2479 = vperm.slane %v2447, 2
      %v2480 = vperm.slane %v2448, 2
      %v2481 = vperm.slane %v2449, 2
      %v2482 = vmul.f32 %v2477, %v2479
      %v2483 = vmul.f32 %v2477, %v2480
      %v2484 = vmul.f32 %v2477, %v2481
      %v2485 = vadd.f32 %v2472, %v2482
      %v2486 = vadd.f32 %v2473, %v2483
      %v2487 = vadd.f32 %v2474, %v2484
      %2488 = vset.pattern.permute.xlu0 3
      %2489 = vperm.xlu0 %2488, %v2450
      %v2490 = vpop.permute.xlu0 %2489
      %v2492 = vperm.slane %v2447, 3
      %v2493 = vperm.slane %v2448, 3
      %v2494 = vperm.slane %v2449, 3
      %v2495 = vmul.f32 %v2490, %v2492
      %v2496 = vmul.f32 %v2490, %v2493
      %v2497 = vmul.f32 %v2490, %v2494
      %v2498 = vadd.f32 %v2485, %v2495
      %v2499 = vadd.f32 %v2486, %v2496
      %v2500 = vadd.f32 %v2487, %v2497
      %v2501 = vld [vmem:[%s11] sm:$0xf]
      %2503 = vset.pattern.permute.xlu0 0
      %2504 = vperm.xlu0 %2503, %v2501
      %v2505 = vpop.permute.xlu0 %2504
      %v2507 = vadd.f32 %v2498, %v2505
      %v2508 = vadd.f32 %v2499, %v2505
      %v2509 = vadd.f32 %v2500, %v2505
      %v2510 = vmul.f32 %v2507, 0.2
      %v2511 = vmul.f32 %v2508, 0.2
      %v2512 = vmul.f32 %v2509, 0.2
      %v2513 = vmax.f32 %v2507, %v2510
      %v2514 = vmax.f32 %v2508, %v2511
      %v2515 = vmax.f32 %v2509, %v2512
      %v2516 = vld [vmem:[%s12] sm:$0xf]
      %v2520 = vrot.slane %v2448, 4
      %v2521 = vsel %vm713, %v2447, %v2520
      %2522 = vrot.lane.b32.xlu0 %v2521, 17
      %v2523 = vpop.permute.xlu0 %2522
      %2524 = vrot.lane.b32.xlu0 %v2449, 17
      %v2525 = vpop.permute.xlu0 %2524
      %v2526 = vrot.slane %v2523, 4
      %v2527 = vrot.slane %v2525, 4
      %v2528 = vsel %vm713, %v2526, %v2527
      %v2529 = vsel %vm1446, %v2523, %v2528
      %2531 = vst [vmem:[#allocation2 + $0x4] sm:$0xff] %v2529
      %v2532 = vld [vmem:[#allocation2] sm:$0xff]
      %v2533 = vld [vmem:[#allocation2 + $0x8] sm:$0xf]
      %v2534 = vmul.f32 %v2532, %v719
      %v2535 = vmul.f32 %v2533, %v717
      %2537 = vset.pattern.permute.xlu0 0
      %2538 = vperm.xlu0 %2537, %v2516
      %v2539 = vpop.permute.xlu0 %2538
      %v2543 = vperm.slane %v2534, 0
      %v2544 = vperm.slane %v2534, 4
      %v2545 = vperm.slane %v2535, 0
      %v2549 = vperm.slane %v2543, 0
      %v2550 = vperm.slane %v2544, 0
      %v2551 = vperm.slane %v2545, 0
      %v2552 = vmul.f32 %v2539, %v2549
      %v2553 = vmul.f32 %v2539, %v2550
      %v2554 = vmul.f32 %v2539, %v2551
      %2555 = vset.pattern.permute.xlu0 1
      %2556 = vperm.xlu0 %2555, %v2516
      %v2557 = vpop.permute.xlu0 %2556
      %v2559 = vperm.slane %v2534, 1
      %v2560 = vperm.slane %v2534, 5
      %v2561 = vperm.slane %v2535, 1
      %v2565 = vperm.slane %v2559, 1
      %v2566 = vperm.slane %v2560, 1
      %v2567 = vperm.slane %v2561, 1
      %v2568 = vmul.f32 %v2557, %v2565
      %v2569 = vmul.f32 %v2557, %v2566
      %v2570 = vmul.f32 %v2557, %v2567
      %v2571 = vadd.f32 %v2552, %v2568
      %v2572 = vadd.f32 %v2553, %v2569
      %v2573 = vadd.f32 %v2554, %v2570
      %2574 = vset.pattern.permute.xlu0 2
      %2575 = vperm.xlu0 %2574, %v2516
      %v2576 = vpop.permute.xlu0 %2575
      %v2578 = vperm.slane %v2534, 2
      %v2579 = vperm.slane %v2534, 6
      %v2580 = vperm.slane %v2535, 2
      %v2584 = vperm.slane %v2578, 2
      %v2585 = vperm.slane %v2579, 2
      %v2586 = vperm.slane %v2580, 2
      %v2587 = vmul.f32 %v2576, %v2584
      %v2588 = vmul.f32 %v2576, %v2585
      %v2589 = vmul.f32 %v2576, %v2586
      %v2590 = vadd.f32 %v2571, %v2587
      %v2591 = vadd.f32 %v2572, %v2588
      %v2592 = vadd.f32 %v2573, %v2589
      %2593 = vset.pattern.permute.xlu0 3
      %2594 = vperm.xlu0 %2593, %v2516
      %v2595 = vpop.permute.xlu0 %2594
      %v2597 = vperm.slane %v2534, 3
      %v2598 = vperm.slane %v2534, 7
      %v2599 = vperm.slane %v2535, 3
      %v2603 = vperm.slane %v2597, 3
      %v2604 = vperm.slane %v2598, 3
      %v2605 = vperm.slane %v2599, 3
      %v2606 = vmul.f32 %v2595, %v2603
      %v2607 = vmul.f32 %v2595, %v2604
      %v2608 = vmul.f32 %v2595, %v2605
      %v2609 = vadd.f32 %v2590, %v2606
      %v2610 = vadd.f32 %v2591, %v2607
      %v2611 = vadd.f32 %v2592, %v2608
      %2612 = vset.pattern.permute.xlu0 4
      %2613 = vperm.xlu0 %2612, %v2516
      %v2614 = vpop.permute.xlu0 %2613
      %v2618 = vperm.slane %v2532, 0
      %v2619 = vperm.slane %v2532, 4
      %v2620 = vperm.slane %v2533, 0
      %v2624 = vperm.slane %v2618, 0
      %v2625 = vperm.slane %v2619, 0
      %v2626 = vperm.slane %v2620, 0
      %v2627 = vmul.f32 %v2614, %v2624
      %v2628 = vmul.f32 %v2614, %v2625
      %v2629 = vmul.f32 %v2614, %v2626
      %2630 = vset.pattern.permute.xlu0 5
      %2631 = vperm.xlu0 %2630, %v2516
      %v2632 = vpop.permute.xlu0 %2631
      %v2634 = vperm.slane %v2532, 1
      %v2635 = vperm.slane %v2532, 5
      %v2636 = vperm.slane %v2533, 1
      %v2640 = vperm.slane %v2634, 1
      %v2641 = vperm.slane %v2635, 1
      %v2642 = vperm.slane %v2636, 1
      %v2643 = vmul.f32 %v2632, %v2640
      %v2644 = vmul.f32 %v2632, %v2641
      %v2645 = vmul.f32 %v2632, %v2642
      %v2646 = vadd.f32 %v2627, %v2643
      %v2647 = vadd.f32 %v2628, %v2644
      %v2648 = vadd.f32 %v2629, %v2645
      %2649 = vset.pattern.permute.xlu0 6
      %2650 = vperm.xlu0 %2649, %v2516
      %v2651 = vpop.permute.xlu0 %2650
      %v2653 = vperm.slane %v2532, 2
      %v2654 = vperm.slane %v2532, 6
      %v2655 = vperm.slane %v2533, 2
      %v2659 = vperm.slane %v2653, 2
      %v2660 = vperm.slane %v2654, 2
      %v2661 = vperm.slane %v2655, 2
      %v2662 = vmul.f32 %v2651, %v2659
      %v2663 = vmul.f32 %v2651, %v2660
      %v2664 = vmul.f32 %v2651, %v2661
      %v2665 = vadd.f32 %v2646, %v2662
      %v2666 = vadd.f32 %v2647, %v2663
      %v2667 = vadd.f32 %v2648, %v2664
      %2668 = vset.pattern.permute.xlu0 7
      %2669 = vperm.xlu0 %2668, %v2516
      %v2670 = vpop.permute.xlu0 %2669
      %v2672 = vperm.slane %v2532, 3
      %v2673 = vperm.slane %v2532, 7
      %v2674 = vperm.slane %v2533, 3
      %v2678 = vperm.slane %v2672, 3
      %v2679 = vperm.slane %v2673, 3
      %v2680 = vperm.slane %v2674, 3
      %v2681 = vmul.f32 %v2670, %v2678
      %v2682 = vmul.f32 %v2670, %v2679
      %v2683 = vmul.f32 %v2670, %v2680
      %v2684 = vadd.f32 %v2665, %v2681
      %v2685 = vadd.f32 %v2666, %v2682
      %v2686 = vadd.f32 %v2667, %v2683
      %2690 = vrot.lane.b32.xlu0 %v2684, 127
      %v2691 = vpop.permute.xlu0 %2690
      %2692 = vrot.lane.b32.xlu0 %v2685, 127
      %v2693 = vpop.permute.xlu0 %2692
      %2694 = vrot.lane.b32.xlu0 %v2686, 127
      %v2695 = vpop.permute.xlu0 %2694
      %v2696 = vsel %vm884, %v2691, %v2693
      %v2697 = vsel %vm884, %v2693, %v2695
      %v2701 = vadd.f32 %v2609, %v2696
      %v2702 = vadd.f32 %v2610, %v2697
      %v2703 = vadd.f32 %v2611, %v2695
      %v2704 = vmul.f32 %v2532, %v902
      %v2705 = vmul.f32 %v2533, %v900
      %2706 = vset.pattern.permute.xlu0 8
      %2707 = vperm.xlu0 %2706, %v2516
      %v2708 = vpop.permute.xlu0 %2707
      %v2712 = vperm.slane %v2704, 0
      %v2713 = vperm.slane %v2704, 4
      %v2714 = vperm.slane %v2705, 0
      %v2718 = vperm.slane %v2712, 0
      %v2719 = vperm.slane %v2713, 0
      %v2720 = vperm.slane %v2714, 0
      %v2721 = vmul.f32 %v2708, %v2718
      %v2722 = vmul.f32 %v2708, %v2719
      %v2723 = vmul.f32 %v2708, %v2720
      %2724 = vset.pattern.permute.xlu0 9
      %2725 = vperm.xlu0 %2724, %v2516
      %v2726 = vpop.permute.xlu0 %2725
      %v2728 = vperm.slane %v2704, 1
      %v2729 = vperm.slane %v2704, 5
      %v2730 = vperm.slane %v2705, 1
      %v2734 = vperm.slane %v2728, 1
      %v2735 = vperm.slane %v2729, 1
      %v2736 = vperm.slane %v2730, 1
      %v2737 = vmul.f32 %v2726, %v2734
      %v2738 = vmul.f32 %v2726, %v2735
      %v2739 = vmul.f32 %v2726, %v2736
      %v2740 = vadd.f32 %v2721, %v2737
      %v2741 = vadd.f32 %v2722, %v2738
      %v2742 = vadd.f32 %v2723, %v2739
      %2743 = vset.pattern.permute.xlu0 10
      %2744 = vperm.xlu0 %2743, %v2516
      %v2745 = vpop.permute.xlu0 %2744
      %v2747 = vperm.slane %v2704, 2
      %v2748 = vperm.slane %v2704, 6
      %v2749 = vperm.slane %v2705, 2
      %v2753 = vperm.slane %v2747, 2
      %v2754 = vperm.slane %v2748, 2
      %v2755 = vperm.slane %v2749, 2
      %v2756 = vmul.f32 %v2745, %v2753
      %v2757 = vmul.f32 %v2745, %v2754
      %v2758 = vmul.f32 %v2745, %v2755
      %v2759 = vadd.f32 %v2740, %v2756
      %v2760 = vadd.f32 %v2741, %v2757
      %v2761 = vadd.f32 %v2742, %v2758
      %2762 = vset.pattern.permute.xlu0 11
      %2763 = vperm.xlu0 %2762, %v2516
      %v2764 = vpop.permute.xlu0 %2763
      %v2766 = vperm.slane %v2704, 3
      %v2767 = vperm.slane %v2704, 7
      %v2768 = vperm.slane %v2705, 3
      %v2772 = vperm.slane %v2766, 3
      %v2773 = vperm.slane %v2767, 3
      %v2774 = vperm.slane %v2768, 3
      %v2775 = vmul.f32 %v2764, %v2772
      %v2776 = vmul.f32 %v2764, %v2773
      %v2777 = vmul.f32 %v2764, %v2774
      %v2778 = vadd.f32 %v2759, %v2775
      %v2779 = vadd.f32 %v2760, %v2776
      %v2780 = vadd.f32 %v2761, %v2777
      %2784 = vrot.lane.b32.xlu0 %v2778, 126
      %v2785 = vpop.permute.xlu0 %2784
      %2786 = vrot.lane.b32.xlu0 %v2779, 126
      %v2787 = vpop.permute.xlu0 %2786
      %2788 = vrot.lane.b32.xlu0 %v2780, 126
      %v2789 = vpop.permute.xlu0 %2788
      %v2790 = vsel %vm991, %v2785, %v2787
      %v2791 = vsel %vm991, %v2787, %v2789
      %v2795 = vadd.f32 %v2701, %v2790
      %v2796 = vadd.f32 %v2702, %v2791
      %v2797 = vadd.f32 %v2703, %v2789
      %v2798 = vmul.f32 %v2532, %v1003
      %v2799 = vmul.f32 %v2533, %v1002
      %2800 = vset.pattern.permute.xlu0 12
      %2801 = vperm.xlu0 %2800, %v2516
      %v2802 = vpop.permute.xlu0 %2801
      %v2806 = vperm.slane %v2798, 0
      %v2807 = vperm.slane %v2798, 4
      %v2808 = vperm.slane %v2799, 0
      %v2812 = vperm.slane %v2806, 0
      %v2813 = vperm.slane %v2807, 0
      %v2814 = vperm.slane %v2808, 0
      %v2815 = vmul.f32 %v2802, %v2812
      %v2816 = vmul.f32 %v2802, %v2813
      %v2817 = vmul.f32 %v2802, %v2814
      %2818 = vset.pattern.permute.xlu0 13
      %2819 = vperm.xlu0 %2818, %v2516
      %v2820 = vpop.permute.xlu0 %2819
      %v2822 = vperm.slane %v2798, 1
      %v2823 = vperm.slane %v2798, 5
      %v2824 = vperm.slane %v2799, 1
      %v2828 = vperm.slane %v2822, 1
      %v2829 = vperm.slane %v2823, 1
      %v2830 = vperm.slane %v2824, 1
      %v2831 = vmul.f32 %v2820, %v2828
      %v2832 = vmul.f32 %v2820, %v2829
      %v2833 = vmul.f32 %v2820, %v2830
      %v2834 = vadd.f32 %v2815, %v2831
      %v2835 = vadd.f32 %v2816, %v2832
      %v2836 = vadd.f32 %v2817, %v2833
      %2837 = vset.pattern.permute.xlu0 14
      %2838 = vperm.xlu0 %2837, %v2516
      %v2839 = vpop.permute.xlu0 %2838
      %v2841 = vperm.slane %v2798, 2
      %v2842 = vperm.slane %v2798, 6
      %v2843 = vperm.slane %v2799, 2
      %v2847 = vperm.slane %v2841, 2
      %v2848 = vperm.slane %v2842, 2
      %v2849 = vperm.slane %v2843, 2
      %v2850 = vmul.f32 %v2839, %v2847
      %v2851 = vmul.f32 %v2839, %v2848
      %v2852 = vmul.f32 %v2839, %v2849
      %v2853 = vadd.f32 %v2834, %v2850
      %v2854 = vadd.f32 %v2835, %v2851
      %v2855 = vadd.f32 %v2836, %v2852
      %2856 = vset.pattern.permute.xlu0 15
      %2857 = vperm.xlu0 %2856, %v2516
      %v2858 = vpop.permute.xlu0 %2857
      %v2860 = vperm.slane %v2798, 3
      %v2861 = vperm.slane %v2798, 7
      %v2862 = vperm.slane %v2799, 3
      %v2866 = vperm.slane %v2860, 3
      %v2867 = vperm.slane %v2861, 3
      %v2868 = vperm.slane %v2862, 3
      %v2869 = vmul.f32 %v2858, %v2866
      %v2870 = vmul.f32 %v2858, %v2867
      %v2871 = vmul.f32 %v2858, %v2868
      %v2872 = vadd.f32 %v2853, %v2869
      %v2873 = vadd.f32 %v2854, %v2870
      %v2874 = vadd.f32 %v2855, %v2871
      %2878 = vrot.lane.b32.xlu0 %v2872, 112
      %v2879 = vpop.permute.xlu0 %2878
      %2880 = vrot.lane.b32.xlu0 %v2873, 112
      %v2881 = vpop.permute.xlu0 %2880
      %2882 = vrot.lane.b32.xlu0 %v2874, 112
      %v2883 = vpop.permute.xlu0 %2882
      %v2884 = vsel %vm1092, %v2879, %v2881
      %v2885 = vsel %vm1092, %v2881, %v2883
      %v2889 = vadd.f32 %v2795, %v2884
      %v2890 = vadd.f32 %v2796, %v2885
      %v2891 = vadd.f32 %v2797, %v2883
      %2892 = vset.pattern.permute.xlu0 16
      %2893 = vperm.xlu0 %2892, %v2516
      %v2894 = vpop.permute.xlu0 %2893
      %v2896 = vmul.f32 %v2894, %v2456
      %v2897 = vmul.f32 %v2894, %v2457
      %v2898 = vmul.f32 %v2894, %v2458
      %2899 = vset.pattern.permute.xlu0 17
      %2900 = vperm.xlu0 %2899, %v2516
      %v2901 = vpop.permute.xlu0 %2900
      %v2903 = vmul.f32 %v2901, %v2466
      %v2904 = vmul.f32 %v2901, %v2467
      %v2905 = vmul.f32 %v2901, %v2468
      %v2906 = vadd.f32 %v2896, %v2903
      %v2907 = vadd.f32 %v2897, %v2904
      %v2908 = vadd.f32 %v2898, %v2905
      %2909 = vset.pattern.permute.xlu0 18
      %2910 = vperm.xlu0 %2909, %v2516
      %v2911 = vpop.permute.xlu0 %2910
      %v2913 = vmul.f32 %v2911, %v2479
      %v2914 = vmul.f32 %v2911, %v2480
      %v2915 = vmul.f32 %v2911, %v2481
      %v2916 = vadd.f32 %v2906, %v2913
      %v2917 = vadd.f32 %v2907, %v2914
      %v2918 = vadd.f32 %v2908, %v2915
      %2919 = vset.pattern.permute.xlu0 19
      %2920 = vperm.xlu0 %2919, %v2516
      %v2921 = vpop.permute.xlu0 %2920
      %v2923 = vmul.f32 %v2921, %v2492
      %v2924 = vmul.f32 %v2921, %v2493
      %v2925 = vmul.f32 %v2921, %v2494
      %v2926 = vadd.f32 %v2916, %v2923
      %v2927 = vadd.f32 %v2917, %v2924
      %v2928 = vadd.f32 %v2918, %v2925
      %v2929 = vadd.f32 %v2889, %v2926
      %v2930 = vadd.f32 %v2890, %v2927
      %v2931 = vadd.f32 %v2891, %v2928
      %v2932 = vld [vmem:[#allocation2 + $0x4] sm:$0xff]
      %v2933 = vld [vmem:[#allocation2 + $0xc] sm:$0xf]
      %v2934 = vmul.f32 %v2932, %v1150
      %v2935 = vmul.f32 %v2933, %v1148
      %2936 = vset.pattern.permute.xlu0 20
      %2937 = vperm.xlu0 %2936, %v2516
      %v2938 = vpop.permute.xlu0 %2937
      %v2942 = vperm.slane %v2934, 0
      %v2943 = vperm.slane %v2934, 4
      %v2944 = vperm.slane %v2935, 0
      %v2948 = vperm.slane %v2942, 0
      %v2949 = vperm.slane %v2943, 0
      %v2950 = vperm.slane %v2944, 0
      %v2951 = vmul.f32 %v2938, %v2948
      %v2952 = vmul.f32 %v2938, %v2949
      %v2953 = vmul.f32 %v2938, %v2950
      %2954 = vset.pattern.permute.xlu0 21
      %2955 = vperm.xlu0 %2954, %v2516
      %v2956 = vpop.permute.xlu0 %2955
      %v2958 = vperm.slane %v2934, 1
      %v2959 = vperm.slane %v2934, 5
      %v2960 = vperm.slane %v2935, 1
      %v2964 = vperm.slane %v2958, 1
      %v2965 = vperm.slane %v2959, 1
      %v2966 = vperm.slane %v2960, 1
      %v2967 = vmul.f32 %v2956, %v2964
      %v2968 = vmul.f32 %v2956, %v2965
      %v2969 = vmul.f32 %v2956, %v2966
      %v2970 = vadd.f32 %v2951, %v2967
      %v2971 = vadd.f32 %v2952, %v2968
      %v2972 = vadd.f32 %v2953, %v2969
      %2973 = vset.pattern.permute.xlu0 22
      %2974 = vperm.xlu0 %2973, %v2516
      %v2975 = vpop.permute.xlu0 %2974
      %v2977 = vperm.slane %v2934, 2
      %v2978 = vperm.slane %v2934, 6
      %v2979 = vperm.slane %v2935, 2
      %v2983 = vperm.slane %v2977, 2
      %v2984 = vperm.slane %v2978, 2
      %v2985 = vperm.slane %v2979, 2
      %v2986 = vmul.f32 %v2975, %v2983
      %v2987 = vmul.f32 %v2975, %v2984
      %v2988 = vmul.f32 %v2975, %v2985
      %v2989 = vadd.f32 %v2970, %v2986
      %v2990 = vadd.f32 %v2971, %v2987
      %v2991 = vadd.f32 %v2972, %v2988
      %2992 = vset.pattern.permute.xlu0 23
      %2993 = vperm.xlu0 %2992, %v2516
      %v2994 = vpop.permute.xlu0 %2993
      %v2996 = vperm.slane %v2934, 3
      %v2997 = vperm.slane %v2934, 7
      %v2998 = vperm.slane %v2935, 3
      %v3002 = vperm.slane %v2996, 3
      %v3003 = vperm.slane %v2997, 3
      %v3004 = vperm.slane %v2998, 3
      %v3005 = vmul.f32 %v2994, %v3002
      %v3006 = vmul.f32 %v2994, %v3003
      %v3007 = vmul.f32 %v2994, %v3004
      %v3008 = vadd.f32 %v2989, %v3005
      %v3009 = vadd.f32 %v2990, %v3006
      %v3010 = vadd.f32 %v2991, %v3007
      %3014 = vrot.lane.b32.xlu0 %v3008, 110
      %v3015 = vpop.permute.xlu0 %3014
      %3016 = vrot.lane.b32.xlu0 %v3009, 110
      %v3017 = vpop.permute.xlu0 %3016
      %3018 = vrot.lane.b32.xlu0 %v3010, 110
      %v3019 = vpop.permute.xlu0 %3018
      %v3020 = vsel %vm1239, %v3015, %v3017
      %v3021 = vsel %vm1239, %v3017, %v3019
      %v3025 = vadd.f32 %v2929, %v3015
      %v3026 = vadd.f32 %v2930, %v3020
      %v3027 = vadd.f32 %v2931, %v3021
      %v3028 = vmul.f32 %v2932, %v1252
      %v3029 = vmul.f32 %v2933, %v1250
      %3030 = vset.pattern.permute.xlu0 24
      %3031 = vperm.xlu0 %3030, %v2516
      %v3032 = vpop.permute.xlu0 %3031
      %v3036 = vperm.slane %v3028, 0
      %v3037 = vperm.slane %v3028, 4
      %v3038 = vperm.slane %v3029, 0
      %v3042 = vperm.slane %v3036, 0
      %v3043 = vperm.slane %v3037, 0
      %v3044 = vperm.slane %v3038, 0
      %v3045 = vmul.f32 %v3032, %v3042
      %v3046 = vmul.f32 %v3032, %v3043
      %v3047 = vmul.f32 %v3032, %v3044
      %3048 = vset.pattern.permute.xlu0 25
      %3049 = vperm.xlu0 %3048, %v2516
      %v3050 = vpop.permute.xlu0 %3049
      %v3052 = vperm.slane %v3028, 1
      %v3053 = vperm.slane %v3028, 5
      %v3054 = vperm.slane %v3029, 1
      %v3058 = vperm.slane %v3052, 1
      %v3059 = vperm.slane %v3053, 1
      %v3060 = vperm.slane %v3054, 1
      %v3061 = vmul.f32 %v3050, %v3058
      %v3062 = vmul.f32 %v3050, %v3059
      %v3063 = vmul.f32 %v3050, %v3060
      %v3064 = vadd.f32 %v3045, %v3061
      %v3065 = vadd.f32 %v3046, %v3062
      %v3066 = vadd.f32 %v3047, %v3063
      %3067 = vset.pattern.permute.xlu0 26
      %3068 = vperm.xlu0 %3067, %v2516
      %v3069 = vpop.permute.xlu0 %3068
      %v3071 = vperm.slane %v3028, 2
      %v3072 = vperm.slane %v3028, 6
      %v3073 = vperm.slane %v3029, 2
      %v3077 = vperm.slane %v3071, 2
      %v3078 = vperm.slane %v3072, 2
      %v3079 = vperm.slane %v3073, 2
      %v3080 = vmul.f32 %v3069, %v3077
      %v3081 = vmul.f32 %v3069, %v3078
      %v3082 = vmul.f32 %v3069, %v3079
      %v3083 = vadd.f32 %v3064, %v3080
      %v3084 = vadd.f32 %v3065, %v3081
      %v3085 = vadd.f32 %v3066, %v3082
      %3086 = vset.pattern.permute.xlu0 27
      %3087 = vperm.xlu0 %3086, %v2516
      %v3088 = vpop.permute.xlu0 %3087
      %v3090 = vperm.slane %v3028, 3
      %v3091 = vperm.slane %v3028, 7
      %v3092 = vperm.slane %v3029, 3
      %v3096 = vperm.slane %v3090, 3
      %v3097 = vperm.slane %v3091, 3
      %v3098 = vperm.slane %v3092, 3
      %v3099 = vmul.f32 %v3088, %v3096
      %v3100 = vmul.f32 %v3088, %v3097
      %v3101 = vmul.f32 %v3088, %v3098
      %v3102 = vadd.f32 %v3083, %v3099
      %v3103 = vadd.f32 %v3084, %v3100
      %v3104 = vadd.f32 %v3085, %v3101
      %3108 = vrot.lane.b32.xlu0 %v3102, 96
      %v3109 = vpop.permute.xlu0 %3108
      %3110 = vrot.lane.b32.xlu0 %v3103, 96
      %v3111 = vpop.permute.xlu0 %3110
      %3112 = vrot.lane.b32.xlu0 %v3104, 96
      %v3113 = vpop.permute.xlu0 %3112
      %v3114 = vsel %vm1341, %v3109, %v3111
      %v3115 = vsel %vm1341, %v3111, %v3113
      %v3119 = vadd.f32 %v3025, %v3109
      %v3120 = vadd.f32 %v3026, %v3114
      %v3121 = vadd.f32 %v3027, %v3115
      %3122 = vset.pattern.permute.xlu0 28
      %3123 = vperm.xlu0 %3122, %v2516
      %v3124 = vpop.permute.xlu0 %3123
      %v3128 = vperm.slane %v2932, 0
      %v3129 = vperm.slane %v2932, 4
      %v3130 = vperm.slane %v2933, 0
      %v3134 = vperm.slane %v3128, 0
      %v3135 = vperm.slane %v3129, 0
      %v3136 = vperm.slane %v3130, 0
      %v3137 = vmul.f32 %v3124, %v3134
      %v3138 = vmul.f32 %v3124, %v3135
      %v3139 = vmul.f32 %v3124, %v3136
      %3140 = vset.pattern.permute.xlu0 29
      %3141 = vperm.xlu0 %3140, %v2516
      %v3142 = vpop.permute.xlu0 %3141
      %v3144 = vperm.slane %v2932, 1
      %v3145 = vperm.slane %v2932, 5
      %v3146 = vperm.slane %v2933, 1
      %v3150 = vperm.slane %v3144, 1
      %v3151 = vperm.slane %v3145, 1
      %v3152 = vperm.slane %v3146, 1
      %v3153 = vmul.f32 %v3142, %v3150
      %v3154 = vmul.f32 %v3142, %v3151
      %v3155 = vmul.f32 %v3142, %v3152
      %v3156 = vadd.f32 %v3137, %v3153
      %v3157 = vadd.f32 %v3138, %v3154
      %v3158 = vadd.f32 %v3139, %v3155
      %3159 = vset.pattern.permute.xlu0 30
      %3160 = vperm.xlu0 %3159, %v2516
      %v3161 = vpop.permute.xlu0 %3160
      %v3163 = vperm.slane %v2932, 2
      %v3164 = vperm.slane %v2932, 6
      %v3165 = vperm.slane %v2933, 2
      %v3169 = vperm.slane %v3163, 2
      %v3170 = vperm.slane %v3164, 2
      %v3171 = vperm.slane %v3165, 2
      %v3172 = vmul.f32 %v3161, %v3169
      %v3173 = vmul.f32 %v3161, %v3170
      %v3174 = vmul.f32 %v3161, %v3171
      %v3175 = vadd.f32 %v3156, %v3172
      %v3176 = vadd.f32 %v3157, %v3173
      %v3177 = vadd.f32 %v3158, %v3174
      %3178 = vset.pattern.permute.xlu0 31
      %3179 = vperm.xlu0 %3178, %v2516
      %v3180 = vpop.permute.xlu0 %3179
      %v3182 = vperm.slane %v2932, 3
      %v3183 = vperm.slane %v2932, 7
      %v3184 = vperm.slane %v2933, 3
      %v3188 = vperm.slane %v3182, 3
      %v3189 = vperm.slane %v3183, 3
      %v3190 = vperm.slane %v3184, 3
      %v3191 = vmul.f32 %v3180, %v3188
      %v3192 = vmul.f32 %v3180, %v3189
      %v3193 = vmul.f32 %v3180, %v3190
      %v3194 = vadd.f32 %v3175, %v3191
      %v3195 = vadd.f32 %v3176, %v3192
      %v3196 = vadd.f32 %v3177, %v3193
      %3200 = vrot.lane.b32.xlu0 %v3194, 95
      %v3201 = vpop.permute.xlu0 %3200
      %3202 = vrot.lane.b32.xlu0 %v3195, 95
      %v3203 = vpop.permute.xlu0 %3202
      %3204 = vrot.lane.b32.xlu0 %v3196, 95
      %v3205 = vpop.permute.xlu0 %3204
      %v3206 = vsel %vm1434, %v3201, %v3203
      %v3207 = vsel %vm1434, %v3203, %v3205
      %v3211 = vadd.f32 %v3119, %v3201
      %v3212 = vadd.f32 %v3120, %v3206
      %v3213 = vadd.f32 %v3121, %v3207
      %v3214 = vmul.f32 %v2932, %v1447
      %v3215 = vmul.f32 %v2933, %v1445
      %3216 = vset.pattern.permute.xlu0 32
      %3217 = vperm.xlu0 %3216, %v2516
      %v3218 = vpop.permute.xlu0 %3217
      %v3222 = vperm.slane %v3214, 0
      %v3223 = vperm.slane %v3214, 4
      %v3224 = vperm.slane %v3215, 0
      %v3228 = vperm.slane %v3222, 0
      %v3229 = vperm.slane %v3223, 0
      %v3230 = vperm.slane %v3224, 0
      %v3231 = vmul.f32 %v3218, %v3228
      %v3232 = vmul.f32 %v3218, %v3229
      %v3233 = vmul.f32 %v3218, %v3230
      %3234 = vset.pattern.permute.xlu0 33
      %3235 = vperm.xlu0 %3234, %v2516
      %v3236 = vpop.permute.xlu0 %3235
      %v3238 = vperm.slane %v3214, 1
      %v3239 = vperm.slane %v3214, 5
      %v3240 = vperm.slane %v3215, 1
      %v3244 = vperm.slane %v3238, 1
      %v3245 = vperm.slane %v3239, 1
      %v3246 = vperm.slane %v3240, 1
      %v3247 = vmul.f32 %v3236, %v3244
      %v3248 = vmul.f32 %v3236, %v3245
      %v3249 = vmul.f32 %v3236, %v3246
      %v3250 = vadd.f32 %v3231, %v3247
      %v3251 = vadd.f32 %v3232, %v3248
      %v3252 = vadd.f32 %v3233, %v3249
      %3253 = vset.pattern.permute.xlu0 34
      %3254 = vperm.xlu0 %3253, %v2516
      %v3255 = vpop.permute.xlu0 %3254
      %v3257 = vperm.slane %v3214, 2
      %v3258 = vperm.slane %v3214, 6
      %v3259 = vperm.slane %v3215, 2
      %v3263 = vperm.slane %v3257, 2
      %v3264 = vperm.slane %v3258, 2
      %v3265 = vperm.slane %v3259, 2
      %v3266 = vmul.f32 %v3255, %v3263
      %v3267 = vmul.f32 %v3255, %v3264
      %v3268 = vmul.f32 %v3255, %v3265
      %v3269 = vadd.f32 %v3250, %v3266
      %v3270 = vadd.f32 %v3251, %v3267
      %v3271 = vadd.f32 %v3252, %v3268
      %3272 = vset.pattern.permute.xlu0 35
      %3273 = vperm.xlu0 %3272, %v2516
      %v3274 = vpop.permute.xlu0 %3273
      %v3276 = vperm.slane %v3214, 3
      %v3277 = vperm.slane %v3214, 7
      %v3278 = vperm.slane %v3215, 3
      %v3282 = vperm.slane %v3276, 3
      %v3283 = vperm.slane %v3277, 3
      %v3284 = vperm.slane %v3278, 3
      %v3285 = vmul.f32 %v3274, %v3282
      %v3286 = vmul.f32 %v3274, %v3283
      %v3287 = vmul.f32 %v3274, %v3284
      %v3288 = vadd.f32 %v3269, %v3285
      %v3289 = vadd.f32 %v3270, %v3286
      %v3290 = vadd.f32 %v3271, %v3287
      %3294 = vrot.lane.b32.xlu0 %v3288, 94
      %v3295 = vpop.permute.xlu0 %3294
      %3296 = vrot.lane.b32.xlu0 %v3289, 94
      %v3297 = vpop.permute.xlu0 %3296
      %3298 = vrot.lane.b32.xlu0 %v3290, 94
      %v3299 = vpop.permute.xlu0 %3298
      %v3300 = vsel %vm1536, %v3295, %v3297
      %v3301 = vsel %vm1536, %v3297, %v3299
      %v3305 = vadd.f32 %v3211, %v3295
      %v3306 = vadd.f32 %v3212, %v3300
      %v3307 = vadd.f32 %v3213, %v3301
      %v3308 = vld [vmem:[%s13] sm:$0xf]
      %3310 = vset.pattern.permute.xlu0 0
      %3311 = vperm.xlu0 %3310, %v3308
      %v3312 = vpop.permute.xlu0 %3311
      %v3314 = vadd.f32 %v3305, %v3312
      %v3315 = vadd.f32 %v3306, %v3312
      %v3316 = vadd.f32 %v3307, %v3312
      %v3317 = vadd.f32 %v3314, %v2447
      %v3318 = vadd.f32 %v3315, %v2448
      %v3319 = vadd.f32 %v3316, %v2449
      %v3320 = vmul.f32 %v3317, 0.2
      %v3321 = vmul.f32 %v3318, 0.2
      %v3322 = vmul.f32 %v3319, 0.2
      %v3323 = vmax.f32 %v3317, %v3320
      %v3324 = vmax.f32 %v3318, %v3321
      %v3325 = vmax.f32 %v3319, %v3322
      %v3326 = vld [vmem:[%s14] sm:$0xf]
      %v3330 = vrot.slane %v3324, 4
      %v3331 = vsel %vm713, %v3323, %v3330
      %3332 = vrot.lane.b32.xlu0 %v3331, 17
      %v3333 = vpop.permute.xlu0 %3332
      %3334 = vrot.lane.b32.xlu0 %v3325, 17
      %v3335 = vpop.permute.xlu0 %3334
      %v3336 = vrot.slane %v3333, 4
      %v3337 = vrot.slane %v3335, 4
      %v3338 = vsel %vm713, %v3336, %v3337
      %v3339 = vsel %vm1446, %v3333, %v3338
      %3341 = vst [vmem:[#allocation2 + $0x4] sm:$0xff] %v3339
      %v3342 = vld [vmem:[#allocation2] sm:$0xff]
      %v3343 = vld [vmem:[#allocation2 + $0x8] sm:$0xf]
      %v3344 = vmul.f32 %v3342, %v719
      %v3345 = vmul.f32 %v3343, %v717
      %3347 = vset.pattern.permute.xlu0 0
      %3348 = vperm.xlu0 %3347, %v3326
      %v3349 = vpop.permute.xlu0 %3348
      %v3353 = vperm.slane %v3344, 0
      %v3354 = vperm.slane %v3344, 4
      %v3355 = vperm.slane %v3345, 0
      %v3359 = vperm.slane %v3353, 0
      %v3360 = vperm.slane %v3354, 0
      %v3361 = vperm.slane %v3355, 0
      %v3362 = vmul.f32 %v3349, %v3359
      %v3363 = vmul.f32 %v3349, %v3360
      %v3364 = vmul.f32 %v3349, %v3361
      %3365 = vset.pattern.permute.xlu0 1
      %3366 = vperm.xlu0 %3365, %v3326
      %v3367 = vpop.permute.xlu0 %3366
      %v3369 = vperm.slane %v3344, 1
      %v3370 = vperm.slane %v3344, 5
      %v3371 = vperm.slane %v3345, 1
      %v3375 = vperm.slane %v3369, 1
      %v3376 = vperm.slane %v3370, 1
      %v3377 = vperm.slane %v3371, 1
      %v3378 = vmul.f32 %v3367, %v3375
      %v3379 = vmul.f32 %v3367, %v3376
      %v3380 = vmul.f32 %v3367, %v3377
      %v3381 = vadd.f32 %v3362, %v3378
      %v3382 = vadd.f32 %v3363, %v3379
      %v3383 = vadd.f32 %v3364, %v3380
      %3384 = vset.pattern.permute.xlu0 2
      %3385 = vperm.xlu0 %3384, %v3326
      %v3386 = vpop.permute.xlu0 %3385
      %v3388 = vperm.slane %v3344, 2
      %v3389 = vperm.slane %v3344, 6
      %v3390 = vperm.slane %v3345, 2
      %v3394 = vperm.slane %v3388, 2
      %v3395 = vperm.slane %v3389, 2
      %v3396 = vperm.slane %v3390, 2
      %v3397 = vmul.f32 %v3386, %v3394
      %v3398 = vmul.f32 %v3386, %v3395
      %v3399 = vmul.f32 %v3386, %v3396
      %v3400 = vadd.f32 %v3381, %v3397
      %v3401 = vadd.f32 %v3382, %v3398
      %v3402 = vadd.f32 %v3383, %v3399
      %3403 = vset.pattern.permute.xlu0 3
      %3404 = vperm.xlu0 %3403, %v3326
      %v3405 = vpop.permute.xlu0 %3404
      %v3407 = vperm.slane %v3344, 3
      %v3408 = vperm.slane %v3344, 7
      %v3409 = vperm.slane %v3345, 3
      %v3413 = vperm.slane %v3407, 3
      %v3414 = vperm.slane %v3408, 3
      %v3415 = vperm.slane %v3409, 3
      %v3416 = vmul.f32 %v3405, %v3413
      %v3417 = vmul.f32 %v3405, %v3414
      %v3418 = vmul.f32 %v3405, %v3415
      %v3419 = vadd.f32 %v3400, %v3416
      %v3420 = vadd.f32 %v3401, %v3417
      %v3421 = vadd.f32 %v3402, %v3418
      %3422 = vset.pattern.permute.xlu0 4
      %3423 = vperm.xlu0 %3422, %v3326
      %v3424 = vpop.permute.xlu0 %3423
      %v3428 = vperm.slane %v3342, 0
      %v3429 = vperm.slane %v3342, 4
      %v3430 = vperm.slane %v3343, 0
      %v3434 = vperm.slane %v3428, 0
      %v3435 = vperm.slane %v3429, 0
      %v3436 = vperm.slane %v3430, 0
      %v3437 = vmul.f32 %v3424, %v3434
      %v3438 = vmul.f32 %v3424, %v3435
      %v3439 = vmul.f32 %v3424, %v3436
      %3440 = vset.pattern.permute.xlu0 5
      %3441 = vperm.xlu0 %3440, %v3326
      %v3442 = vpop.permute.xlu0 %3441
      %v3444 = vperm.slane %v3342, 1
      %v3445 = vperm.slane %v3342, 5
      %v3446 = vperm.slane %v3343, 1
      %v3450 = vperm.slane %v3444, 1
      %v3451 = vperm.slane %v3445, 1
      %v3452 = vperm.slane %v3446, 1
      %v3453 = vmul.f32 %v3442, %v3450
      %v3454 = vmul.f32 %v3442, %v3451
      %v3455 = vmul.f32 %v3442, %v3452
      %v3456 = vadd.f32 %v3437, %v3453
      %v3457 = vadd.f32 %v3438, %v3454
      %v3458 = vadd.f32 %v3439, %v3455
      %3459 = vset.pattern.permute.xlu0 6
      %3460 = vperm.xlu0 %3459, %v3326
      %v3461 = vpop.permute.xlu0 %3460
      %v3463 = vperm.slane %v3342, 2
      %v3464 = vperm.slane %v3342, 6
      %v3465 = vperm.slane %v3343, 2
      %v3469 = vperm.slane %v3463, 2
      %v3470 = vperm.slane %v3464, 2
      %v3471 = vperm.slane %v3465, 2
      %v3472 = vmul.f32 %v3461, %v3469
      %v3473 = vmul.f32 %v3461, %v3470
      %v3474 = vmul.f32 %v3461, %v3471
      %v3475 = vadd.f32 %v3456, %v3472
      %v3476 = vadd.f32 %v3457, %v3473
      %v3477 = vadd.f32 %v3458, %v3474
      %3478 = vset.pattern.permute.xlu0 7
      %3479 = vperm.xlu0 %3478, %v3326
      %v3480 = vpop.permute.xlu0 %3479
      %v3482 = vperm.slane %v3342, 3
      %v3483 = vperm.slane %v3342, 7
      %v3484 = vperm.slane %v3343, 3
      %v3488 = vperm.slane %v3482, 3
      %v3489 = vperm.slane %v3483, 3
      %v3490 = vperm.slane %v3484, 3
      %v3491 = vmul.f32 %v3480, %v3488
      %v3492 = vmul.f32 %v3480, %v3489
      %v3493 = vmul.f32 %v3480, %v3490
      %v3494 = vadd.f32 %v3475, %v3491
      %v3495 = vadd.f32 %v3476, %v3492
      %v3496 = vadd.f32 %v3477, %v3493
      %3500 = vrot.lane.b32.xlu0 %v3494, 127
      %v3501 = vpop.permute.xlu0 %3500
      %3502 = vrot.lane.b32.xlu0 %v3495, 127
      %v3503 = vpop.permute.xlu0 %3502
      %3504 = vrot.lane.b32.xlu0 %v3496, 127
      %v3505 = vpop.permute.xlu0 %3504
      %v3506 = vsel %vm884, %v3501, %v3503
      %v3507 = vsel %vm884, %v3503, %v3505
      %v3511 = vadd.f32 %v3419, %v3506
      %v3512 = vadd.f32 %v3420, %v3507
      %v3513 = vadd.f32 %v3421, %v3505
      %v3514 = vmul.f32 %v3342, %v902
      %v3515 = vmul.f32 %v3343, %v900
      %3516 = vset.pattern.permute.xlu0 8
      %3517 = vperm.xlu0 %3516, %v3326
      %v3518 = vpop.permute.xlu0 %3517
      %v3522 = vperm.slane %v3514, 0
      %v3523 = vperm.slane %v3514, 4
      %v3524 = vperm.slane %v3515, 0
      %v3528 = vperm.slane %v3522, 0
      %v3529 = vperm.slane %v3523, 0
      %v3530 = vperm.slane %v3524, 0
      %v3531 = vmul.f32 %v3518, %v3528
      %v3532 = vmul.f32 %v3518, %v3529
      %v3533 = vmul.f32 %v3518, %v3530
      %3534 = vset.pattern.permute.xlu0 9
      %3535 = vperm.xlu0 %3534, %v3326
      %v3536 = vpop.permute.xlu0 %3535
      %v3538 = vperm.slane %v3514, 1
      %v3539 = vperm.slane %v3514, 5
      %v3540 = vperm.slane %v3515, 1
      %v3544 = vperm.slane %v3538, 1
      %v3545 = vperm.slane %v3539, 1
      %v3546 = vperm.slane %v3540, 1
      %v3547 = vmul.f32 %v3536, %v3544
      %v3548 = vmul.f32 %v3536, %v3545
      %v3549 = vmul.f32 %v3536, %v3546
      %v3550 = vadd.f32 %v3531, %v3547
      %v3551 = vadd.f32 %v3532, %v3548
      %v3552 = vadd.f32 %v3533, %v3549
      %3553 = vset.pattern.permute.xlu0 10
      %3554 = vperm.xlu0 %3553, %v3326
      %v3555 = vpop.permute.xlu0 %3554
      %v3557 = vperm.slane %v3514, 2
      %v3558 = vperm.slane %v3514, 6
      %v3559 = vperm.slane %v3515, 2
      %v3563 = vperm.slane %v3557, 2
      %v3564 = vperm.slane %v3558, 2
      %v3565 = vperm.slane %v3559, 2
      %v3566 = vmul.f32 %v3555, %v3563
      %v3567 = vmul.f32 %v3555, %v3564
      %v3568 = vmul.f32 %v3555, %v3565
      %v3569 = vadd.f32 %v3550, %v3566
      %v3570 = vadd.f32 %v3551, %v3567
      %v3571 = vadd.f32 %v3552, %v3568
      %3572 = vset.pattern.permute.xlu0 11
      %3573 = vperm.xlu0 %3572, %v3326
      %v3574 = vpop.permute.xlu0 %3573
      %v3576 = vperm.slane %v3514, 3
      %v3577 = vperm.slane %v3514, 7
      %v3578 = vperm.slane %v3515, 3
      %v3582 = vperm.slane %v3576, 3
      %v3583 = vperm.slane %v3577, 3
      %v3584 = vperm.slane %v3578, 3
      %v3585 = vmul.f32 %v3574, %v3582
      %v3586 = vmul.f32 %v3574, %v3583
      %v3587 = vmul.f32 %v3574, %v3584
      %v3588 = vadd.f32 %v3569, %v3585
      %v3589 = vadd.f32 %v3570, %v3586
      %v3590 = vadd.f32 %v3571, %v3587
      %3594 = vrot.lane.b32.xlu0 %v3588, 126
      %v3595 = vpop.permute.xlu0 %3594
      %3596 = vrot.lane.b32.xlu0 %v3589, 126
      %v3597 = vpop.permute.xlu0 %3596
      %3598 = vrot.lane.b32.xlu0 %v3590, 126
      %v3599 = vpop.permute.xlu0 %3598
      %v3600 = vsel %vm991, %v3595, %v3597
      %v3601 = vsel %vm991, %v3597, %v3599
      %v3605 = vadd.f32 %v3511, %v3600
      %v3606 = vadd.f32 %v3512, %v3601
      %v3607 = vadd.f32 %v3513, %v3599
      %v3608 = vmul.f32 %v3342, %v1003
      %v3609 = vmul.f32 %v3343, %v1002
      %3610 = vset.pattern.permute.xlu0 12
      %3611 = vperm.xlu0 %3610, %v3326
      %v3612 = vpop.permute.xlu0 %3611
      %v3616 = vperm.slane %v3608, 0
      %v3617 = vperm.slane %v3608, 4
      %v3618 = vperm.slane %v3609, 0
      %v3622 = vperm.slane %v3616, 0
      %v3623 = vperm.slane %v3617, 0
      %v3624 = vperm.slane %v3618, 0
      %v3625 = vmul.f32 %v3612, %v3622
      %v3626 = vmul.f32 %v3612, %v3623
      %v3627 = vmul.f32 %v3612, %v3624
      %3628 = vset.pattern.permute.xlu0 13
      %3629 = vperm.xlu0 %3628, %v3326
      %v3630 = vpop.permute.xlu0 %3629
      %v3632 = vperm.slane %v3608, 1
      %v3633 = vperm.slane %v3608, 5
      %v3634 = vperm.slane %v3609, 1
      %v3638 = vperm.slane %v3632, 1
      %v3639 = vperm.slane %v3633, 1
      %v3640 = vperm.slane %v3634, 1
      %v3641 = vmul.f32 %v3630, %v3638
      %v3642 = vmul.f32 %v3630, %v3639
      %v3643 = vmul.f32 %v3630, %v3640
      %v3644 = vadd.f32 %v3625, %v3641
      %v3645 = vadd.f32 %v3626, %v3642
      %v3646 = vadd.f32 %v3627, %v3643
      %3647 = vset.pattern.permute.xlu0 14
      %3648 = vperm.xlu0 %3647, %v3326
      %v3649 = vpop.permute.xlu0 %3648
      %v3651 = vperm.slane %v3608, 2
      %v3652 = vperm.slane %v3608, 6
      %v3653 = vperm.slane %v3609, 2
      %v3657 = vperm.slane %v3651, 2
      %v3658 = vperm.slane %v3652, 2
      %v3659 = vperm.slane %v3653, 2
      %v3660 = vmul.f32 %v3649, %v3657
      %v3661 = vmul.f32 %v3649, %v3658
      %v3662 = vmul.f32 %v3649, %v3659
      %v3663 = vadd.f32 %v3644, %v3660
      %v3664 = vadd.f32 %v3645, %v3661
      %v3665 = vadd.f32 %v3646, %v3662
      %3666 = vset.pattern.permute.xlu0 15
      %3667 = vperm.xlu0 %3666, %v3326
      %v3668 = vpop.permute.xlu0 %3667
      %v3670 = vperm.slane %v3608, 3
      %v3671 = vperm.slane %v3608, 7
      %v3672 = vperm.slane %v3609, 3
      %v3676 = vperm.slane %v3670, 3
      %v3677 = vperm.slane %v3671, 3
      %v3678 = vperm.slane %v3672, 3
      %v3679 = vmul.f32 %v3668, %v3676
      %v3680 = vmul.f32 %v3668, %v3677
      %v3681 = vmul.f32 %v3668, %v3678
      %v3682 = vadd.f32 %v3663, %v3679
      %v3683 = vadd.f32 %v3664, %v3680
      %v3684 = vadd.f32 %v3665, %v3681
      %3688 = vrot.lane.b32.xlu0 %v3682, 112
      %v3689 = vpop.permute.xlu0 %3688
      %3690 = vrot.lane.b32.xlu0 %v3683, 112
      %v3691 = vpop.permute.xlu0 %3690
      %3692 = vrot.lane.b32.xlu0 %v3684, 112
      %v3693 = vpop.permute.xlu0 %3692
      %v3694 = vsel %vm1092, %v3689, %v3691
      %v3695 = vsel %vm1092, %v3691, %v3693
      %v3699 = vadd.f32 %v3605, %v3694
      %v3700 = vadd.f32 %v3606, %v3695
      %v3701 = vadd.f32 %v3607, %v3693
      %3702 = vset.pattern.permute.xlu0 16
      %3703 = vperm.xlu0 %3702, %v3326
      %v3704 = vpop.permute.xlu0 %3703
      %v3706 = vperm.slane %v3323, 0
      %v3707 = vperm.slane %v3324, 0
      %v3708 = vperm.slane %v3325, 0
      %v3709 = vmul.f32 %v3704, %v3706
      %v3710 = vmul.f32 %v3704, %v3707
      %v3711 = vmul.f32 %v3704, %v3708
      %3712 = vset.pattern.permute.xlu0 17
      %3713 = vperm.xlu0 %3712, %v3326
      %v3714 = vpop.permute.xlu0 %3713
      %v3716 = vperm.slane %v3323, 1
      %v3717 = vperm.slane %v3324, 1
      %v3718 = vperm.slane %v3325, 1
      %v3719 = vmul.f32 %v3714, %v3716
      %v3720 = vmul.f32 %v3714, %v3717
      %v3721 = vmul.f32 %v3714, %v3718
      %v3722 = vadd.f32 %v3709, %v3719
      %v3723 = vadd.f32 %v3710, %v3720
      %v3724 = vadd.f32 %v3711, %v3721
      %3725 = vset.pattern.permute.xlu0 18
      %3726 = vperm.xlu0 %3725, %v3326
      %v3727 = vpop.permute.xlu0 %3726
      %v3729 = vperm.slane %v3323, 2
      %v3730 = vperm.slane %v3324, 2
      %v3731 = vperm.slane %v3325, 2
      %v3732 = vmul.f32 %v3727, %v3729
      %v3733 = vmul.f32 %v3727, %v3730
      %v3734 = vmul.f32 %v3727, %v3731
      %v3735 = vadd.f32 %v3722, %v3732
      %v3736 = vadd.f32 %v3723, %v3733
      %v3737 = vadd.f32 %v3724, %v3734
      %3738 = vset.pattern.permute.xlu0 19
      %3739 = vperm.xlu0 %3738, %v3326
      %v3740 = vpop.permute.xlu0 %3739
      %v3742 = vperm.slane %v3323, 3
      %v3743 = vperm.slane %v3324, 3
      %v3744 = vperm.slane %v3325, 3
      %v3745 = vmul.f32 %v3740, %v3742
      %v3746 = vmul.f32 %v3740, %v3743
      %v3747 = vmul.f32 %v3740, %v3744
      %v3748 = vadd.f32 %v3735, %v3745
      %v3749 = vadd.f32 %v3736, %v3746
      %v3750 = vadd.f32 %v3737, %v3747
      %v3751 = vadd.f32 %v3699, %v3748
      %v3752 = vadd.f32 %v3700, %v3749
      %v3753 = vadd.f32 %v3701, %v3750
      %v3754 = vld [vmem:[#allocation2 + $0x4] sm:$0xff]
      %v3755 = vld [vmem:[#allocation2 + $0xc] sm:$0xf]
      %v3756 = vmul.f32 %v3754, %v1150
      %v3757 = vmul.f32 %v3755, %v1148
      %3758 = vset.pattern.permute.xlu0 20
      %3759 = vperm.xlu0 %3758, %v3326
      %v3760 = vpop.permute.xlu0 %3759
      %v3764 = vperm.slane %v3756, 0
      %v3765 = vperm.slane %v3756, 4
      %v3766 = vperm.slane %v3757, 0
      %v3770 = vperm.slane %v3764, 0
      %v3771 = vperm.slane %v3765, 0
      %v3772 = vperm.slane %v3766, 0
      %v3773 = vmul.f32 %v3760, %v3770
      %v3774 = vmul.f32 %v3760, %v3771
      %v3775 = vmul.f32 %v3760, %v3772
      %3776 = vset.pattern.permute.xlu0 21
      %3777 = vperm.xlu0 %3776, %v3326
      %v3778 = vpop.permute.xlu0 %3777
      %v3780 = vperm.slane %v3756, 1
      %v3781 = vperm.slane %v3756, 5
      %v3782 = vperm.slane %v3757, 1
      %v3786 = vperm.slane %v3780, 1
      %v3787 = vperm.slane %v3781, 1
      %v3788 = vperm.slane %v3782, 1
      %v3789 = vmul.f32 %v3778, %v3786
      %v3790 = vmul.f32 %v3778, %v3787
      %v3791 = vmul.f32 %v3778, %v3788
      %v3792 = vadd.f32 %v3773, %v3789
      %v3793 = vadd.f32 %v3774, %v3790
      %v3794 = vadd.f32 %v3775, %v3791
      %3795 = vset.pattern.permute.xlu0 22
      %3796 = vperm.xlu0 %3795, %v3326
      %v3797 = vpop.permute.xlu0 %3796
      %v3799 = vperm.slane %v3756, 2
      %v3800 = vperm.slane %v3756, 6
      %v3801 = vperm.slane %v3757, 2
      %v3805 = vperm.slane %v3799, 2
      %v3806 = vperm.slane %v3800, 2
      %v3807 = vperm.slane %v3801, 2
      %v3808 = vmul.f32 %v3797, %v3805
      %v3809 = vmul.f32 %v3797, %v3806
      %v3810 = vmul.f32 %v3797, %v3807
      %v3811 = vadd.f32 %v3792, %v3808
      %v3812 = vadd.f32 %v3793, %v3809
      %v3813 = vadd.f32 %v3794, %v3810
      %3814 = vset.pattern.permute.xlu0 23
      %3815 = vperm.xlu0 %3814, %v3326
      %v3816 = vpop.permute.xlu0 %3815
      %v3818 = vperm.slane %v3756, 3
      %v3819 = vperm.slane %v3756, 7
      %v3820 = vperm.slane %v3757, 3
      %v3824 = vperm.slane %v3818, 3
      %v3825 = vperm.slane %v3819, 3
      %v3826 = vperm.slane %v3820, 3
      %v3827 = vmul.f32 %v3816, %v3824
      %v3828 = vmul.f32 %v3816, %v3825
      %v3829 = vmul.f32 %v3816, %v3826
      %v3830 = vadd.f32 %v3811, %v3827
      %v3831 = vadd.f32 %v3812, %v3828
      %v3832 = vadd.f32 %v3813, %v3829
      %3836 = vrot.lane.b32.xlu0 %v3830, 110
      %v3837 = vpop.permute.xlu0 %3836
      %3838 = vrot.lane.b32.xlu0 %v3831, 110
      %v3839 = vpop.permute.xlu0 %3838
      %3840 = vrot.lane.b32.xlu0 %v3832, 110
      %v3841 = vpop.permute.xlu0 %3840
      %v3842 = vsel %vm1239, %v3837, %v3839
      %v3843 = vsel %vm1239, %v3839, %v3841
      %v3847 = vadd.f32 %v3751, %v3837
      %v3848 = vadd.f32 %v3752, %v3842
      %v3849 = vadd.f32 %v3753, %v3843
      %v3850 = vmul.f32 %v3754, %v1252
      %v3851 = vmul.f32 %v3755, %v1250
      %3852 = vset.pattern.permute.xlu0 24
      %3853 = vperm.xlu0 %3852, %v3326
      %v3854 = vpop.permute.xlu0 %3853
      %v3858 = vperm.slane %v3850, 0
      %v3859 = vperm.slane %v3850, 4
      %v3860 = vperm.slane %v3851, 0
      %v3864 = vperm.slane %v3858, 0
      %v3865 = vperm.slane %v3859, 0
      %v3866 = vperm.slane %v3860, 0
      %v3867 = vmul.f32 %v3854, %v3864
      %v3868 = vmul.f32 %v3854, %v3865
      %v3869 = vmul.f32 %v3854, %v3866
      %3870 = vset.pattern.permute.xlu0 25
      %3871 = vperm.xlu0 %3870, %v3326
      %v3872 = vpop.permute.xlu0 %3871
      %v3874 = vperm.slane %v3850, 1
      %v3875 = vperm.slane %v3850, 5
      %v3876 = vperm.slane %v3851, 1
      %v3880 = vperm.slane %v3874, 1
      %v3881 = vperm.slane %v3875, 1
      %v3882 = vperm.slane %v3876, 1
      %v3883 = vmul.f32 %v3872, %v3880
      %v3884 = vmul.f32 %v3872, %v3881
      %v3885 = vmul.f32 %v3872, %v3882
      %v3886 = vadd.f32 %v3867, %v3883
      %v3887 = vadd.f32 %v3868, %v3884
      %v3888 = vadd.f32 %v3869, %v3885
      %3889 = vset.pattern.permute.xlu0 26
      %3890 = vperm.xlu0 %3889, %v3326
      %v3891 = vpop.permute.xlu0 %3890
      %v3893 = vperm.slane %v3850, 2
      %v3894 = vperm.slane %v3850, 6
      %v3895 = vperm.slane %v3851, 2
      %v3899 = vperm.slane %v3893, 2
      %v3900 = vperm.slane %v3894, 2
      %v3901 = vperm.slane %v3895, 2
      %v3902 = vmul.f32 %v3891, %v3899
      %v3903 = vmul.f32 %v3891, %v3900
      %v3904 = vmul.f32 %v3891, %v3901
      %v3905 = vadd.f32 %v3886, %v3902
      %v3906 = vadd.f32 %v3887, %v3903
      %v3907 = vadd.f32 %v3888, %v3904
      %3908 = vset.pattern.permute.xlu0 27
      %3909 = vperm.xlu0 %3908, %v3326
      %v3910 = vpop.permute.xlu0 %3909
      %v3912 = vperm.slane %v3850, 3
      %v3913 = vperm.slane %v3850, 7
      %v3914 = vperm.slane %v3851, 3
      %v3918 = vperm.slane %v3912, 3
      %v3919 = vperm.slane %v3913, 3
      %v3920 = vperm.slane %v3914, 3
      %v3921 = vmul.f32 %v3910, %v3918
      %v3922 = vmul.f32 %v3910, %v3919
      %v3923 = vmul.f32 %v3910, %v3920
      %v3924 = vadd.f32 %v3905, %v3921
      %v3925 = vadd.f32 %v3906, %v3922
      %v3926 = vadd.f32 %v3907, %v3923
      %3930 = vrot.lane.b32.xlu0 %v3924, 96
      %v3931 = vpop.permute.xlu0 %3930
      %3932 = vrot.lane.b32.xlu0 %v3925, 96
      %v3933 = vpop.permute.xlu0 %3932
      %3934 = vrot.lane.b32.xlu0 %v3926, 96
      %v3935 = vpop.permute.xlu0 %3934
      %v3936 = vsel %vm1341, %v3931, %v3933
      %v3937 = vsel %vm1341, %v3933, %v3935
      %v3941 = vadd.f32 %v3847, %v3931
      %v3942 = vadd.f32 %v3848, %v3936
      %v3943 = vadd.f32 %v3849, %v3937
      %3944 = vset.pattern.permute.xlu0 28
      %3945 = vperm.xlu0 %3944, %v3326
      %v3946 = vpop.permute.xlu0 %3945
      %v3950 = vperm.slane %v3754, 0
      %v3951 = vperm.slane %v3754, 4
      %v3952 = vperm.slane %v3755, 0
      %v3956 = vperm.slane %v3950, 0
      %v3957 = vperm.slane %v3951, 0
      %v3958 = vperm.slane %v3952, 0
      %v3959 = vmul.f32 %v3946, %v3956
      %v3960 = vmul.f32 %v3946, %v3957
      %v3961 = vmul.f32 %v3946, %v3958
      %3962 = vset.pattern.permute.xlu0 29
      %3963 = vperm.xlu0 %3962, %v3326
      %v3964 = vpop.permute.xlu0 %3963
      %v3966 = vperm.slane %v3754, 1
      %v3967 = vperm.slane %v3754, 5
      %v3968 = vperm.slane %v3755, 1
      %v3972 = vperm.slane %v3966, 1
      %v3973 = vperm.slane %v3967, 1
      %v3974 = vperm.slane %v3968, 1
      %v3975 = vmul.f32 %v3964, %v3972
      %v3976 = vmul.f32 %v3964, %v3973
      %v3977 = vmul.f32 %v3964, %v3974
      %v3978 = vadd.f32 %v3959, %v3975
      %v3979 = vadd.f32 %v3960, %v3976
      %v3980 = vadd.f32 %v3961, %v3977
      %3981 = vset.pattern.permute.xlu0 30
      %3982 = vperm.xlu0 %3981, %v3326
      %v3983 = vpop.permute.xlu0 %3982
      %v3985 = vperm.slane %v3754, 2
      %v3986 = vperm.slane %v3754, 6
      %v3987 = vperm.slane %v3755, 2
      %v3991 = vperm.slane %v3985, 2
      %v3992 = vperm.slane %v3986, 2
      %v3993 = vperm.slane %v3987, 2
      %v3994 = vmul.f32 %v3983, %v3991
      %v3995 = vmul.f32 %v3983, %v3992
      %v3996 = vmul.f32 %v3983, %v3993
      %v3997 = vadd.f32 %v3978, %v3994
      %v3998 = vadd.f32 %v3979, %v3995
      %v3999 = vadd.f32 %v3980, %v3996
      %4000 = vset.pattern.permute.xlu0 31
      %4001 = vperm.xlu0 %4000, %v3326
      %v4002 = vpop.permute.xlu0 %4001
      %v4004 = vperm.slane %v3754, 3
      %v4005 = vperm.slane %v3754, 7
      %v4006 = vperm.slane %v3755, 3
      %v4010 = vperm.slane %v4004, 3
      %v4011 = vperm.slane %v4005, 3
      %v4012 = vperm.slane %v4006, 3
      %v4013 = vmul.f32 %v4002, %v4010
      %v4014 = vmul.f32 %v4002, %v4011
      %v4015 = vmul.f32 %v4002, %v4012
      %v4016 = vadd.f32 %v3997, %v4013
      %v4017 = vadd.f32 %v3998, %v4014
      %v4018 = vadd.f32 %v3999, %v4015
      %4022 = vrot.lane.b32.xlu0 %v4016, 95
      %v4023 = vpop.permute.xlu0 %4022
      %4024 = vrot.lane.b32.xlu0 %v4017, 95
      %v4025 = vpop.permute.xlu0 %4024
      %4026 = vrot.lane.b32.xlu0 %v4018, 95
      %v4027 = vpop.permute.xlu0 %4026
      %v4028 = vsel %vm1434, %v4023, %v4025
      %v4029 = vsel %vm1434, %v4025, %v4027
      %v4033 = vadd.f32 %v3941, %v4023
      %v4034 = vadd.f32 %v3942, %v4028
      %v4035 = vadd.f32 %v3943, %v4029
      %v4036 = vmul.f32 %v3754, %v1447
      %v4037 = vmul.f32 %v3755, %v1445
      %4038 = vset.pattern.permute.xlu0 32
      %4039 = vperm.xlu0 %4038, %v3326
      %v4040 = vpop.permute.xlu0 %4039
      %v4044 = vperm.slane %v4036, 0
      %v4045 = vperm.slane %v4036, 4
      %v4046 = vperm.slane %v4037, 0
      %v4050 = vperm.slane %v4044, 0
      %v4051 = vperm.slane %v4045, 0
      %v4052 = vperm.slane %v4046, 0
      %v4053 = vmul.f32 %v4040, %v4050
      %v4054 = vmul.f32 %v4040, %v4051
      %v4055 = vmul.f32 %v4040, %v4052
      %4056 = vset.pattern.permute.xlu0 33
      %4057 = vperm.xlu0 %4056, %v3326
      %v4058 = vpop.permute.xlu0 %4057
      %v4060 = vperm.slane %v4036, 1
      %v4061 = vperm.slane %v4036, 5
      %v4062 = vperm.slane %v4037, 1
      %v4066 = vperm.slane %v4060, 1
      %v4067 = vperm.slane %v4061, 1
      %v4068 = vperm.slane %v4062, 1
      %v4069 = vmul.f32 %v4058, %v4066
      %v4070 = vmul.f32 %v4058, %v4067
      %v4071 = vmul.f32 %v4058, %v4068
      %v4072 = vadd.f32 %v4053, %v4069
      %v4073 = vadd.f32 %v4054, %v4070
      %v4074 = vadd.f32 %v4055, %v4071
      %4075 = vset.pattern.permute.xlu0 34
      %4076 = vperm.xlu0 %4075, %v3326
      %v4077 = vpop.permute.xlu0 %4076
      %v4079 = vperm.slane %v4036, 2
      %v4080 = vperm.slane %v4036, 6
      %v4081 = vperm.slane %v4037, 2
      %v4085 = vperm.slane %v4079, 2
      %v4086 = vperm.slane %v4080, 2
      %v4087 = vperm.slane %v4081, 2
      %v4088 = vmul.f32 %v4077, %v4085
      %v4089 = vmul.f32 %v4077, %v4086
      %v4090 = vmul.f32 %v4077, %v4087
      %v4091 = vadd.f32 %v4072, %v4088
      %v4092 = vadd.f32 %v4073, %v4089
      %v4093 = vadd.f32 %v4074, %v4090
      %4094 = vset.pattern.permute.xlu0 35
      %4095 = vperm.xlu0 %4094, %v3326
      %v4096 = vpop.permute.xlu0 %4095
      %v4098 = vperm.slane %v4036, 3
      %v4099 = vperm.slane %v4036, 7
      %v4100 = vperm.slane %v4037, 3
      %v4104 = vperm.slane %v4098, 3
      %v4105 = vperm.slane %v4099, 3
      %v4106 = vperm.slane %v4100, 3
      %v4107 = vmul.f32 %v4096, %v4104
      %v4108 = vmul.f32 %v4096, %v4105
      %v4109 = vmul.f32 %v4096, %v4106
      %v4110 = vadd.f32 %v4091, %v4107
      %v4111 = vadd.f32 %v4092, %v4108
      %v4112 = vadd.f32 %v4093, %v4109
      %4116 = vrot.lane.b32.xlu0 %v4110, 94
      %v4117 = vpop.permute.xlu0 %4116
      %4118 = vrot.lane.b32.xlu0 %v4111, 94
      %v4119 = vpop.permute.xlu0 %4118
      %4120 = vrot.lane.b32.xlu0 %v4112, 94
      %v4121 = vpop.permute.xlu0 %4120
      %v4122 = vsel %vm1536, %v4117, %v4119
      %v4123 = vsel %vm1536, %v4119, %v4121
      %v4127 = vadd.f32 %v4033, %v4117
      %v4128 = vadd.f32 %v4034, %v4122
      %v4129 = vadd.f32 %v4035, %v4123
      %v4130 = vld [vmem:[%s15] sm:$0xf]
      %4132 = vset.pattern.permute.xlu0 0
      %4133 = vperm.xlu0 %4132, %v4130
      %v4134 = vpop.permute.xlu0 %4133
      %v4136 = vadd.f32 %v4127, %v4134
      %v4137 = vadd.f32 %v4128, %v4134
      %v4138 = vadd.f32 %v4129, %v4134
      %v4139 = vmul.f32 %v4136, 0.2
      %v4140 = vmul.f32 %v4137, 0.2
      %v4141 = vmul.f32 %v4138, 0.2
      %v4142 = vmax.f32 %v4136, %v4139
      %v4143 = vmax.f32 %v4137, %v4140
      %v4144 = vmax.f32 %v4138, %v4141
      %v4145 = vld [vmem:[%s16] sm:$0xf]
      %4147 = vset.pattern.permute.xlu0 0
      %4148 = vperm.xlu0 %4147, %v4145
      %v4149 = vpop.permute.xlu0 %4148
      %v4151 = vperm.slane %v703, 0
      %v4152 = vperm.slane %v704, 0
      %v4153 = vmul.f32 %v4149, %v4151
      %v4154 = vmul.f32 %v4149, %v4152
      %4155 = vset.pattern.permute.xlu0 1
      %4156 = vperm.xlu0 %4155, %v4145
      %v4157 = vpop.permute.xlu0 %4156
      %v4159 = vperm.slane %v703, 1
      %v4160 = vperm.slane %v704, 1
      %v4161 = vmul.f32 %v4157, %v4159
      %v4162 = vmul.f32 %v4157, %v4160
      %v4163 = vadd.f32 %v4153, %v4161
      %v4164 = vadd.f32 %v4154, %v4162
      %4165 = vset.pattern.permute.xlu0 2
      %4166 = vperm.xlu0 %4165, %v4145
      %v4167 = vpop.permute.xlu0 %4166
      %v4169 = vperm.slane %v703, 2
      %v4170 = vperm.slane %v704, 2
      %v4171 = vmul.f32 %v4167, %v4169
      %v4172 = vmul.f32 %v4167, %v4170
      %v4173 = vadd.f32 %v4163, %v4171
      %v4174 = vadd.f32 %v4164, %v4172
      %4175 = vset.pattern.permute.xlu0 3
      %4176 = vperm.xlu0 %4175, %v4145
      %v4177 = vpop.permute.xlu0 %4176
      %v4179 = vperm.slane %v703, 3
      %v4180 = vperm.slane %v704, 3
      %v4181 = vmul.f32 %v4177, %v4179
      %v4182 = vmul.f32 %v4177, %v4180
      %v4183 = vadd.f32 %v4173, %v4181
      %v4184 = vadd.f32 %v4174, %v4182
      %4185 = vset.pattern.permute.xlu0 4
      %4186 = vperm.xlu0 %4185, %v4145
      %v4187 = vpop.permute.xlu0 %4186
      %v4189 = vperm.slane %v1637, 0
      %v4190 = vperm.slane %v1638, 0
      %v4191 = vperm.slane %v1639, 0
      %v4192 = vmul.f32 %v4187, %v4189
      %v4193 = vmul.f32 %v4187, %v4190
      %v4194 = vmul.f32 %v4187, %v4191
      %4195 = vset.pattern.permute.xlu0 5
      %4196 = vperm.xlu0 %4195, %v4145
      %v4197 = vpop.permute.xlu0 %4196
      %v4199 = vperm.slane %v1637, 1
      %v4200 = vperm.slane %v1638, 1
      %v4201 = vperm.slane %v1639, 1
      %v4202 = vmul.f32 %v4197, %v4199
      %v4203 = vmul.f32 %v4197, %v4200
      %v4204 = vmul.f32 %v4197, %v4201
      %v4205 = vadd.f32 %v4192, %v4202
      %v4206 = vadd.f32 %v4193, %v4203
      %v4207 = vadd.f32 %v4194, %v4204
      %4208 = vset.pattern.permute.xlu0 6
      %4209 = vperm.xlu0 %4208, %v4145
      %v4210 = vpop.permute.xlu0 %4209
      %v4212 = vperm.slane %v1637, 2
      %v4213 = vperm.slane %v1638, 2
      %v4214 = vperm.slane %v1639, 2
      %v4215 = vmul.f32 %v4210, %v4212
      %v4216 = vmul.f32 %v4210, %v4213
      %v4217 = vmul.f32 %v4210, %v4214
      %v4218 = vadd.f32 %v4205, %v4215
      %v4219 = vadd.f32 %v4206, %v4216
      %v4220 = vadd.f32 %v4207, %v4217
      %4221 = vset.pattern.permute.xlu0 7
      %4222 = vperm.xlu0 %4221, %v4145
      %v4223 = vpop.permute.xlu0 %4222
      %v4225 = vperm.slane %v1637, 3
      %v4226 = vperm.slane %v1638, 3
      %v4227 = vperm.slane %v1639, 3
      %v4228 = vmul.f32 %v4223, %v4225
      %v4229 = vmul.f32 %v4223, %v4226
      %v4230 = vmul.f32 %v4223, %v4227
      %v4231 = vadd.f32 %v4218, %v4228
      %v4232 = vadd.f32 %v4219, %v4229
      %v4233 = vadd.f32 %v4220, %v4230
      %4237 = vrot.lane.b32.xlu0 %v4231, 17
      %v4238 = vpop.permute.xlu0 %4237
      %4239 = vrot.lane.b32.xlu0 %v4232, 17
      %v4240 = vpop.permute.xlu0 %4239
      %4241 = vrot.lane.b32.xlu0 %v4233, 17
      %v4242 = vpop.permute.xlu0 %4241
      %v4243 = vsel %vm1446, %v4238, %v4240
      %v4244 = vsel %vm1446, %v4240, %v4242
      %v4247 = vadd.f32 %v4183, %v4243
      %v4248 = vadd.f32 %v4184, %v4244
      %4249 = vset.pattern.permute.xlu0 8
      %4250 = vperm.xlu0 %4249, %v4145
      %v4251 = vpop.permute.xlu0 %4250
      %v4253 = vperm.slane %v2513, 0
      %v4254 = vperm.slane %v2514, 0
      %v4255 = vperm.slane %v2515, 0
      %v4256 = vmul.f32 %v4251, %v4253
      %v4257 = vmul.f32 %v4251, %v4254
      %v4258 = vmul.f32 %v4251, %v4255
      %4259 = vset.pattern.permute.xlu0 9
      %4260 = vperm.xlu0 %4259, %v4145
      %v4261 = vpop.permute.xlu0 %4260
      %v4263 = vperm.slane %v2513, 1
      %v4264 = vperm.slane %v2514, 1
      %v4265 = vperm.slane %v2515, 1
      %v4266 = vmul.f32 %v4261, %v4263
      %v4267 = vmul.f32 %v4261, %v4264
      %v4268 = vmul.f32 %v4261, %v4265
      %v4269 = vadd.f32 %v4256, %v4266
      %v4270 = vadd.f32 %v4257, %v4267
      %v4271 = vadd.f32 %v4258, %v4268
      %4272 = vset.pattern.permute.xlu0 10
      %4273 = vperm.xlu0 %4272, %v4145
      %v4274 = vpop.permute.xlu0 %4273
      %v4276 = vperm.slane %v2513, 2
      %v4277 = vperm.slane %v2514, 2
      %v4278 = vperm.slane %v2515, 2
      %v4279 = vmul.f32 %v4274, %v4276
      %v4280 = vmul.f32 %v4274, %v4277
      %v4281 = vmul.f32 %v4274, %v4278
      %v4282 = vadd.f32 %v4269, %v4279
      %v4283 = vadd.f32 %v4270, %v4280
      %v4284 = vadd.f32 %v4271, %v4281
      %4285 = vset.pattern.permute.xlu0 11
      %4286 = vperm.xlu0 %4285, %v4145
      %v4287 = vpop.permute.xlu0 %4286
      %v4289 = vperm.slane %v2513, 3
      %v4290 = vperm.slane %v2514, 3
      %v4291 = vperm.slane %v2515, 3
      %v4292 = vmul.f32 %v4287, %v4289
      %v4293 = vmul.f32 %v4287, %v4290
      %v4294 = vmul.f32 %v4287, %v4291
      %v4295 = vadd.f32 %v4282, %v4292
      %v4296 = vadd.f32 %v4283, %v4293
      %v4297 = vadd.f32 %v4284, %v4294
      %4301 = vrot.lane.b32.xlu0 %v4295, 17
      %v4302 = vpop.permute.xlu0 %4301
      %4303 = vrot.lane.b32.xlu0 %v4296, 17
      %v4304 = vpop.permute.xlu0 %4303
      %4305 = vrot.lane.b32.xlu0 %v4297, 17
      %v4306 = vpop.permute.xlu0 %4305
      %v4307 = vsel %vm1446, %v4302, %v4304
      %v4308 = vsel %vm1446, %v4304, %v4306
      %v4311 = vadd.f32 %v4247, %v4307
      %v4312 = vadd.f32 %v4248, %v4308
      %4313 = vset.pattern.permute.xlu0 12
      %4314 = vperm.xlu0 %4313, %v4145
      %v4315 = vpop.permute.xlu0 %4314
      %v4317 = vperm.slane %v4142, 0
      %v4318 = vperm.slane %v4143, 0
      %v4319 = vperm.slane %v4144, 0
      %v4320 = vmul.f32 %v4315, %v4317
      %v4321 = vmul.f32 %v4315, %v4318
      %v4322 = vmul.f32 %v4315, %v4319
      %4323 = vset.pattern.permute.xlu0 13
      %4324 = vperm.xlu0 %4323, %v4145
      %v4325 = vpop.permute.xlu0 %4324
      %v4327 = vperm.slane %v4142, 1
      %v4328 = vperm.slane %v4143, 1
      %v4329 = vperm.slane %v4144, 1
      %v4330 = vmul.f32 %v4325, %v4327
      %v4331 = vmul.f32 %v4325, %v4328
      %v4332 = vmul.f32 %v4325, %v4329
      %v4333 = vadd.f32 %v4320, %v4330
      %v4334 = vadd.f32 %v4321, %v4331
      %v4335 = vadd.f32 %v4322, %v4332
      %4336 = vset.pattern.permute.xlu0 14
      %4337 = vperm.xlu0 %4336, %v4145
      %v4338 = vpop.permute.xlu0 %4337
      %v4340 = vperm.slane %v4142, 2
      %v4341 = vperm.slane %v4143, 2
      %v4342 = vperm.slane %v4144, 2
      %v4343 = vmul.f32 %v4338, %v4340
      %v4344 = vmul.f32 %v4338, %v4341
      %v4345 = vmul.f32 %v4338, %v4342
      %v4346 = vadd.f32 %v4333, %v4343
      %v4347 = vadd.f32 %v4334, %v4344
      %v4348 = vadd.f32 %v4335, %v4345
      %4349 = vset.pattern.permute.xlu0 15
      %4350 = vperm.xlu0 %4349, %v4145
      %v4351 = vpop.permute.xlu0 %4350
      %v4353 = vperm.slane %v4142, 3
      %v4354 = vperm.slane %v4143, 3
      %v4355 = vperm.slane %v4144, 3
      %v4356 = vmul.f32 %v4351, %v4353
      %v4357 = vmul.f32 %v4351, %v4354
      %v4358 = vmul.f32 %v4351, %v4355
      %v4359 = vadd.f32 %v4346, %v4356
      %v4360 = vadd.f32 %v4347, %v4357
      %v4361 = vadd.f32 %v4348, %v4358
      %4365 = vrot.lane.b32.xlu0 %v4359, 17
      %v4366 = vpop.permute.xlu0 %4365
      %4367 = vrot.lane.b32.xlu0 %v4360, 17
      %v4368 = vpop.permute.xlu0 %4367
      %4369 = vrot.lane.b32.xlu0 %v4361, 17
      %v4370 = vpop.permute.xlu0 %4369
      %v4371 = vsel %vm1446, %v4366, %v4368
      %v4372 = vsel %vm1446, %v4368, %v4370
      %v4375 = vadd.f32 %v4311, %v4371
      %v4376 = vadd.f32 %v4312, %v4372
      %v4377 = vld [vmem:[%s17] sm:$0xf]
      %4379 = vset.pattern.permute.xlu0 0
      %4380 = vperm.xlu0 %4379, %v4377
      %v4381 = vpop.permute.xlu0 %4380
      %v4383 = vadd.f32 %v4375, %v4381
      %v4384 = vadd.f32 %v4376, %v4381
      %v4385 = vld [vmem:[%s18] sm:$0xf]
      %4387 = vset.pattern.permute.xlu0 0
      %4388 = vperm.xlu0 %4387, %v4385
      %v4389 = vpop.permute.xlu0 %4388
      %v4391 = vperm.slane %v4383, 0
      %v4392 = vperm.slane %v4384, 0
      %v4393 = vmul.f32 %v4389, %v4391
      %v4394 = vmul.f32 %v4389, %v4392
      %4395 = vset.pattern.permute.xlu0 1
      %4396 = vperm.xlu0 %4395, %v4385
      %v4397 = vpop.permute.xlu0 %4396
      %v4399 = vperm.slane %v4383, 1
      %v4400 = vperm.slane %v4384, 1
      %v4401 = vmul.f32 %v4397, %v4399
      %v4402 = vmul.f32 %v4397, %v4400
      %v4403 = vadd.f32 %v4393, %v4401
      %v4404 = vadd.f32 %v4394, %v4402
      %4405 = vset.pattern.permute.xlu0 2
      %4406 = vperm.xlu0 %4405, %v4385
      %v4407 = vpop.permute.xlu0 %4406
      %v4409 = vperm.slane %v4383, 2
      %v4410 = vperm.slane %v4384, 2
      %v4411 = vmul.f32 %v4407, %v4409
      %v4412 = vmul.f32 %v4407, %v4410
      %v4413 = vadd.f32 %v4403, %v4411
      %v4414 = vadd.f32 %v4404, %v4412
      %4415 = vset.pattern.permute.xlu0 3
      %4416 = vperm.xlu0 %4415, %v4385
      %v4417 = vpop.permute.xlu0 %4416
      %v4419 = vperm.slane %v4383, 3
      %v4420 = vperm.slane %v4384, 3
      %v4421 = vmul.f32 %v4417, %v4419
      %v4422 = vmul.f32 %v4417, %v4420
      %v4423 = vadd.f32 %v4413, %v4421
      %v4424 = vadd.f32 %v4414, %v4422
      %v4425 = vld [vmem:[%s19] sm:$0xf]
      %4427 = vset.pattern.permute.xlu0 0
      %4428 = vperm.xlu0 %4427, %v4425
      %v4429 = vpop.permute.xlu0 %4428
      %v4431 = vadd.f32 %v4423, %v4429
      %v4432 = vadd.f32 %v4424, %v4429
      %v4433 = vsub.f32 0.0, %v4431
      %v4434 = vsub.f32 0.0, %v4432
      %v4435 = vmul.f32 %v4433, 1.442695
      %v4436 = vpow.pop %v4435
      %v4437 = vmul.f32 %v4434, 1.442695
      %v4438 = vpow.pop %v4437
      %v4439 = vadd.f32 %v4436, 1.0
      %v4440 = vadd.f32 %v4438, 1.0
      %v4441 = vrcp.pop %v4439
      %v4442 = vrcp.pop %v4440
      %v4443 = vmul.f32 %v4383, %v4441
      %v4444 = vmul.f32 %v4384, %v4442
      %v4447 = vrot.slane %v4444, 4
      %v4448 = vsel %vm713, %v4443, %v4447
      %4450 = vst [vmem:[%s629] sm:$0xff] %v4448
      %p4451 = scmp.lt.s32.totalorder %s31, 1
      %s4452 = scalar_select %p4451, %s31, 1
      %s4453 = smul.addr %s4452, 2
      %s4454 = smul.addr %s4453, 4
      %s4455 = scalar_lea.vmem %s20, %s4454
      // Predicated region
      $region101: #{padb_forward.1} parent=99 // pred_check
        %p4456 = pneg %p474
      $region102: #{padb_forward.1} parent=99 // pred_check_branch
        %4458 = sbr.rel (%p4456) target = $region104
      $region103: #{padb_forward.1} parent=99 // pred_region
        _
      $region104: #{padb_forward.1} parent=99 // pred_fallthru
        _
    $region100: #{padb_forward.1} parent=5 // pred_fallthru
      _
    %p4459 = scmp.le.s32.totalorder 2, %s26
    // Predicated region
    $region105: #{padb_forward.1} parent=5 // pred_check
      %p4460 = pneg %p4459
    $region106: #{padb_forward.1} parent=5 // pred_check_branch
      %4462 = sbr.rel (%p4460) target = $region108
    $region107: #{padb_forward.1} parent=5 // pred_region
      %s4463 = ssub.s32 %s26, 2
      // Predicated region
      $region109: #{padb_forward.1} parent=107 // pred_check
        %p4464 = pneg %p480
      $region110: #{padb_forward.1} parent=107 // pred_check_branch
        %4466 = sbr.rel (%p4464) target = $region112
      $region111: #{padb_forward.1} parent=107 // pred_region
        %p4467 = scmp.lt.s32.totalorder %s32, 1
        %s4468 = scalar_select %p4467, %s32, 1
        %s4469 = smul.addr %s4468, 2
        %s4470 = smul.addr %s4469, 4
        %s4471 = scalar_lea.vmem %s20, %s4470
      $region112: #{padb_forward.1} parent=107 // pred_fallthru
        _
    $region108: #{padb_forward.1} parent=5 // pred_fallthru
      _
  $region6: #{padb_forward.1} parent=0 // loop_footer
    %s30 = sadd.s32 1, %s26
  $region7: #{padb_forward.1} parent=0 // loop_footer_branch
    %25 = sbr.rel target = $region3
  $region8: #{padb_forward.1} parent=0 // loop_exit
    _

</llo_original>
